<compile_context>
chip_gen: v6e
topology: v6e:2x2x1
jax: 0.10.0
libtpu: 0.0.40
codegen_flags: <defaults>
</compile_context>

<pallas_src>
import jax
import jax.numpy as jnp
from jax import lax
from jax.experimental import pallas as pl
from jax.experimental.pallas import tpu as pltpu

NUM_RNN_LAYERS = 2   # stand-in for const.NUM_RNN_LAYERS
BN_EPS = 1e-5
NEG_PAD = -1e30      # bias for padded output lanes (exp underflows to 0)


def _nocond_lstm_kernel(xp1_ref,        # (T, Bp, 4H) x@W_ih_l0^T + b (pre-gathered)
                        whh1_ref,       # (H, 4H)
                        wih2_ref,       # (H, 4H)
                        whh2_ref,       # (H, 4H)
                        bg2_ref,        # (1, 4H)     b_ih_l1 + b_hh_l1
                        w1_ref,         # (H, Mp)     decode1 (lane-padded)
                        bd1_ref,        # (1, Mp)
                        bn_scale_ref,   # (T, 1, Mp)  gamma * rsqrt(var+eps)
                        bn_shift_ref,   # (T, 1, Mp)  beta - mean * scale
                        w2_ref,         # (Mp, Op)    decode2 (lane-padded)
                        bd2_ref,        # (1, Op)     padded lanes = NEG_PAD
                        out_ref):       # (T, Bp, Op)
    T, Bp, G = xp1_ref.shape            # G = 4H
    H = whh1_ref.shape[0]
    Mp = w1_ref.shape[1]
    Op = w2_ref.shape[1]

    # Hoist weight loads and the bias broadcast out of the unrolled loop
    # (ref-load CSE / broadcast CSE across iterations is not guaranteed).
    whh1 = whh1_ref[...]
    wih2 = wih2_ref[...]
    whh2 = whh2_ref[...]
    bg2 = jnp.broadcast_to(bg2_ref[...], (Bp, G))

    def gates_to_hc(g, c):
        # PyTorch gate order [i | f | g | o] along the 4H lane axis.
        # One sigmoid + one tanh over the full 128-lane gate vreg (instead of
        # four quarter-width activations), then cheap offset slices.
        sig = jax.nn.sigmoid(g)
        tnh = jnp.tanh(g)
        i = sig[:, 0 * H:1 * H]
        f = sig[:, 1 * H:2 * H]
        gg = tnh[:, 2 * H:3 * H]
        o = sig[:, 3 * H:4 * H]
        c_new = f * c + i * gg
        h_new = o * jnp.tanh(c_new)
        return h_new, c_new

    # ---- Serial 2-layer LSTM recurrence (the only true data dependency) ----
    # T is small & static -> full unroll for scheduler visibility.
    # (Switch to lax.fori_loop(..., unroll=4..8) if T grows beyond ~32.)
    # TODO(synk): nn.LSTM inter-layer dropout (p=0.5) is train-mode only; the
    # deterministic eval forward is implemented here.
    zq = jnp.zeros((Bp, H), jnp.float32)
    h1, c1, c2 = zq, zq, zq
    h2w = bg2                     # h2_prev @ W_hh_l1 + bias, with h2_prev = 0
    h2_steps = []
    for t in range(T):
        g1 = xp1_ref[t] + jnp.dot(h1, whh1, preferred_element_type=jnp.float32)
        h1, c1 = gates_to_hc(g1, c1)
        # Layer-2 serial chain only contains h1 @ W_ih_l1 + precomputed term.
        g2 = jnp.dot(h1, wih2, preferred_element_type=jnp.float32) + h2w
        h2, c2 = gates_to_hc(g2, c2)
        h2_steps.append(h2)
        if t + 1 < T:
            # Off the critical path: only depends on h2[t], so it overlaps
            # with layer-1's matmul + activations of step t+1.
            h2w = jnp.dot(h2, whh2, preferred_element_type=jnp.float32) + bg2

    # ---- Hoisted decode path: 2 batched matmuls + vectorized epilogue ----
    h2_all = jnp.concatenate(h2_steps, axis=0)                  # (T*Bp, H)
    d1 = (jnp.dot(h2_all, w1_ref[...], preferred_element_type=jnp.float32)
          + bd1_ref[...])                                       # (T*Bp, Mp)
    d1 = d1.reshape(T, Bp, Mp)
    # BatchNorm1d(num_features=seq_len), eval mode: per-timestep affine.
    d1 = d1 * bn_scale_ref[...] + bn_shift_ref[...]
    d1 = jnp.maximum(d1, 0.0).reshape(T * Bp, Mp)               # ReLU
    d2 = (jnp.dot(d1, w2_ref[...], preferred_element_type=jnp.float32)
          + bd2_ref[...])                                       # (T*Bp, Op)
    # LogSoftmax over the lane-padded feature dim; padded lanes sit at
    # NEG_PAD so exp() underflows to 0 and the normalizer is exact.
    m = jnp.max(d2, axis=-1, keepdims=True)
    s = d2 - m
    out = s - jnp.log(jnp.sum(jnp.exp(s), axis=-1, keepdims=True))
    out_ref[...] = out.reshape(T, Bp, Op)


def init_params(key, vocab_size, embed_dim, hidden_dim, output_dim, seq_len):
    mid_dim = (hidden_dim + output_dim) // 2
    ks = jax.random.split(key, 16)
    u = lambda k, shape, bound: jax.random.uniform(
        k, shape, jnp.float32, -bound, bound)
    sh = 1.0 / jnp.sqrt(hidden_dim)
    p = {
        "embedding": jax.random.normal(ks[0], (vocab_size, embed_dim),
                                       jnp.float32),
        # LSTM layer 0
        "w_ih_l0": u(ks[1], (4 * hidden_dim, embed_dim), sh),
        "w_hh_l0": u(ks[2], (4 * hidden_dim, hidden_dim), sh),
        "b_ih_l0": u(ks[3], (4 * hidden_dim,), sh),
        "b_hh_l0": u(ks[4], (4 * hidden_dim,), sh),
        # LSTM layer 1
        "w_ih_l1": u(ks[5], (4 * hidden_dim, hidden_dim), sh),
        "w_hh_l1": u(ks[6], (4 * hidden_dim, hidden_dim), sh),
        "b_ih_l1": u(ks[7], (4 * hidden_dim,), sh),
        "b_hh_l1": u(ks[8], (4 * hidden_dim,), sh),
        # decode1
        "w_dec1": u(ks[9], (mid_dim, hidden_dim), 1.0 / jnp.sqrt(hidden_dim)),
        "b_dec1": u(ks[10], (mid_dim,), 1.0 / jnp.sqrt(hidden_dim)),
        # BatchNorm1d(seq_len): affine + running stats (fresh init)
        "bn_gamma": jnp.ones((seq_len,), jnp.float32),
        "bn_beta": jnp.zeros((seq_len,), jnp.float32),
        "bn_rmean": jnp.zeros((seq_len,), jnp.float32),
        "bn_rvar": jnp.ones((seq_len,), jnp.float32),
        # decode2
        "w_dec2": u(ks[11], (output_dim, mid_dim), 1.0 / jnp.sqrt(mid_dim)),
        "b_dec2": u(ks[12], (output_dim,), 1.0 / jnp.sqrt(mid_dim)),
    }
    return p


@jax.jit
def nocond_lstm_forward(data, params):
    """data: (B, T) int32 token ids -> log-probs (B, T, output_dim)."""
    B, T = data.shape
    H = params["w_hh_l0"].shape[1]
    mid = params["w_dec1"].shape[0]
    O = params["w_dec2"].shape[0]
    G = 4 * H

    # Pad batch to a sublane multiple and the lane dims to 128 (lane-dense
    # intermediates and unmasked output stores).  Padding is exact: padded
    # weight rows/cols are zero, padded softmax lanes get a NEG_PAD bias,
    # padded batch rows are sliced off.
    Bp = ((B + 7) // 8) * 8
    Mp = ((mid + 127) // 128) * 128
    Op = ((O + 127) // 128) * 128

    # Embedding folded into the layer-1 input projection: one (vocab, 4H)
    # table gather of lane-dense 128-wide rows instead of an in-kernel K=E
    # matmul + narrow embedding DMA.  Both LSTM layer-0 biases folded in.
    gate_table = (params["embedding"].astype(jnp.float32)
                  @ params["w_ih_l0"].T.astype(jnp.float32)
                  + (params["b_ih_l0"] + params["b_hh_l0"])[None, :])
    xp1 = jnp.take(gate_table, data, axis=0)                  # (B, T, 4H)
    xp1 = jnp.transpose(xp1, (1, 0, 2))                       # (T, B, 4H)
    xp1 = jnp.pad(xp1, ((0, 0), (0, Bp - B), (0, 0)))         # (T, Bp, 4H)

    # Recurrent / layer-2 weights pre-transposed so the kernel does x @ W.
    whh1_t = params["w_hh_l0"].T.astype(jnp.float32)          # (H, 4H)
    wih2_t = params["w_ih_l1"].T.astype(jnp.float32)          # (H, 4H)
    whh2_t = params["w_hh_l1"].T.astype(jnp.float32)          # (H, 4H)
    bg2 = (params["b_ih_l1"] + params["b_hh_l1"]).reshape(1, G).astype(
        jnp.float32)

    # decode1 padded to Mp lanes (zero pad -> exact).
    w1p = jnp.zeros((H, Mp), jnp.float32).at[:, :mid].set(params["w_dec1"].T)
    bd1p = jnp.zeros((1, Mp), jnp.float32).at[:, :mid].set(params["b_dec1"])

    # Eval-mode BN folded into a per-timestep scale/shift (precomputed once).
    bn_scale = params["bn_gamma"] * lax.rsqrt(params["bn_rvar"] + BN_EPS)
    bn_shift = params["bn_beta"] - params["bn_rmean"] * bn_scale
    bn_scale3 = jnp.broadcast_to(bn_scale[:, None, None],
                                 (T, 1, Mp)).astype(jnp.float32)
    bn_shift3 = jnp.broadcast_to(bn_shift[:, None, None],
                                 (T, 1, Mp)).astype(jnp.float32)

    # decode2 padded to (Mp, Op); padded rows/cols zero, padded bias = NEG_PAD
    # so padded lanes do not perturb the log-softmax normalizer.
    w2p = jnp.zeros((Mp, Op), jnp.float32).at[:mid, :O].set(params["w_dec2"].T)
    bd2p = jnp.full((1, Op), NEG_PAD, jnp.float32).at[:, :O].set(
        params["b_dec2"])

    vmem = pl.BlockSpec(memory_space=pltpu.MemorySpace.VMEM)

    # TODO(synk): at real batch sizes add a batch grid
    # (dimension_semantics=("parallel",)) for v7x's 2 TensorCores, bf16 MXU
    # inputs and a batch-major in-kernel store; all are no-ops at B=2.
    out_tmaj = pl.pallas_call(
        _nocond_lstm_kernel,
        out_shape=jax.ShapeDtypeStruct((T, Bp, Op), jnp.float32),
        in_specs=[vmem] * 11,
        out_specs=vmem,
    )(xp1,
      whh1_t, wih2_t, whh2_t, bg2,
      w1p, bd1p,
      bn_scale3, bn_shift3,
      w2p, bd2p)

    # back to batch-first, drop batch/lane padding (negligible at this size)
    return jnp.transpose(out_tmaj, (1, 0, 2))[:B, :, :O]


def _reference_forward(data, params):
    """Pure-JAX (non-Pallas) reference of the same eval-mode forward."""
    emb = jnp.take(params["embedding"], data, axis=0).astype(jnp.float32)
    B, T, _ = emb.shape
    H = params["w_hh_l0"].shape[1]

    def cell(x, h, c, wih, whh, bih, bhh):
        g = x @ wih.T + bih + h @ whh.T + bhh
        i = jax.nn.sigmoid(g[:, :H])
        f = jax.nn.sigmoid(g[:, H:2 * H])
        gg = jnp.tanh(g[:, 2 * H:3 * H])
        o = jax.nn.sigmoid(g[:, 3 * H:])
        c = f * c + i * gg
        h = o * jnp.tanh(c)
        return h, c

    h1 = c1 = h2 = c2 = jnp.zeros((B, H), jnp.float32)
    outs = []
    for t in range(T):
        x = emb[:, t, :]
        h1, c1 = cell(x, h1, c1, params["w_ih_l0"], params["w_hh_l0"],
                      params["b_ih_l0"], params["b_hh_l0"])
        h2, c2 = cell(h1, h2, c2, params["w_ih_l1"], params["w_hh_l1"],
                      params["b_ih_l1"], params["b_hh_l1"])
        outs.append(h2)
    lstm_out = jnp.stack(outs, axis=1)                        # (B, T, H)
    d1 = lstm_out @ params["w_dec1"].T + params["b_dec1"]     # (B, T, mid)
    inv = lax.rsqrt(params["bn_rvar"] + BN_EPS)
    d1 = ((d1 - params["bn_rmean"][None, :, None]) * inv[None, :, None]
          * params["bn_gamma"][None, :, None]
          + params["bn_beta"][None, :, None])
    d1 = jnp.maximum(d1, 0.0)
    d2 = d1 @ params["w_dec2"].T + params["b_dec2"]
    return jax.nn.log_softmax(d2, axis=-1)


if __name__ == "__main__":
    vocab_size = 50
    embed_dim = 16
    hidden_dim = 32
    output_dim = 16
    seq_len = 8
    batch_size = 2

    key = jax.random.PRNGKey(0)
    k_data, k_params = jax.random.split(key)
    data = jax.random.randint(k_data, (batch_size, seq_len), 0, vocab_size,
                              dtype=jnp.int32)
    params = init_params(k_params, vocab_size, embed_dim, hidden_dim,
                         output_dim, seq_len)

    out = nocond_lstm_forward(data, params)
    out = jax.block_until_ready(out)

    assert out.shape == (batch_size, seq_len, output_dim)
    assert bool(jnp.all(jnp.isfinite(out)))
    # log-softmax rows must (approximately) sum to 1 in prob space
    assert bool(jnp.allclose(jnp.sum(jnp.exp(out), axis=-1), 1.0, atol=1e-4))
    # match the pure-JAX reference
    ref = _reference_forward(data, params)
    assert bool(jnp.allclose(out, ref, atol=2e-4, rtol=2e-4))
    print("KERNEL_OK")
</pallas_src>

<mosaic_0001>
module attributes {stable_mosaic.version = 11 : i64} {
  func.func @_nocond_lstm_kernel(%arg0: memref<8x8x128xf32, #tpu.memory_space<vmem>>, %arg1: memref<32x128xf32, #tpu.memory_space<vmem>>, %arg2: memref<32x128xf32, #tpu.memory_space<vmem>>, %arg3: memref<32x128xf32, #tpu.memory_space<vmem>>, %arg4: memref<1x128xf32, #tpu.memory_space<vmem>>, %arg5: memref<32x128xf32, #tpu.memory_space<vmem>>, %arg6: memref<1x128xf32, #tpu.memory_space<vmem>>, %arg7: memref<8x1x128xf32, #tpu.memory_space<vmem>>, %arg8: memref<8x1x128xf32, #tpu.memory_space<vmem>>, %arg9: memref<128x128xf32, #tpu.memory_space<vmem>>, %arg10: memref<1x128xf32, #tpu.memory_space<vmem>>, %arg11: memref<8x8x128xf32, #tpu.memory_space<vmem>>) attributes {dimension_semantics = [], scalar_prefetch = 0 : i64, scratch_operands = 0 : i64, tpu.core_type = #tpu.core_type<tc>} {
    %c0 = arith.constant 0 : index
    %c0_0 = arith.constant 0 : index
    %0 = vector.load %arg1[%c0, %c0_0] : memref<32x128xf32, #tpu.memory_space<vmem>>, vector<32x128xf32>
    %c0_1 = arith.constant 0 : index
    %c0_2 = arith.constant 0 : index
    %1 = vector.load %arg2[%c0_1, %c0_2] : memref<32x128xf32, #tpu.memory_space<vmem>>, vector<32x128xf32>
    %c0_3 = arith.constant 0 : index
    %c0_4 = arith.constant 0 : index
    %2 = vector.load %arg3[%c0_3, %c0_4] : memref<32x128xf32, #tpu.memory_space<vmem>>, vector<32x128xf32>
    %c0_5 = arith.constant 0 : index
    %c0_6 = arith.constant 0 : index
    %3 = vector.load %arg4[%c0_5, %c0_6] : memref<1x128xf32, #tpu.memory_space<vmem>>, vector<1x128xf32>
    %4 = vector.shape_cast %3 : vector<1x128xf32> to vector<1x128xf32>
    %5 = vector.broadcast %4 : vector<1x128xf32> to vector<8x128xf32>
    %cst = arith.constant 0.000000e+00 : f32
    %6 = vector.broadcast %cst : f32 to vector<8x32xf32>
    %c0_7 = arith.constant 0 : index
    %c0_8 = arith.constant 0 : index
    %c0_9 = arith.constant 0 : index
    %7 = vector.load %arg0[%c0_7, %c0_8, %c0_9] : memref<8x8x128xf32, #tpu.memory_space<vmem>>, vector<1x8x128xf32>
    %8 = vector.shape_cast %7 : vector<1x8x128xf32> to vector<8x128xf32>
    %cst_10 = arith.constant dense<0.000000e+00> : vector<8x128xf32>
    %9 = tpu.matmul %6, %0, %cst_10 {dimension_numbers = #tpu.dot_dimension_numbers<[1], [0], [0], [1], [0, 0, 1, 1], [], []>} : vector<8x32xf32>, vector<32x128xf32>, vector<8x128xf32> -> vector<8x128xf32>
    %10 = arith.addf %8, %9 : vector<8x128xf32>
    %11 = arith.negf %10 : vector<8x128xf32>
    %12 = math.exp %11 : vector<8x128xf32>
    %cst_11 = arith.constant 1.000000e+00 : f32
    %13 = vector.broadcast %cst_11 : f32 to vector<8x128xf32>
    %14 = arith.addf %13, %12 : vector<8x128xf32>
    %15 = arith.divf %13, %14 : vector<8x128xf32>
    %16 = math.tanh %10 : vector<8x128xf32>
    %17 = vector.extract_strided_slice %15 {offsets = [0, 0], sizes = [8, 32], strides = [1, 1]} : vector<8x128xf32> to vector<8x32xf32>
    %18 = vector.extract_strided_slice %15 {offsets = [0, 32], sizes = [8, 32], strides = [1, 1]} : vector<8x128xf32> to vector<8x32xf32>
    %19 = vector.extract_strided_slice %16 {offsets = [0, 64], sizes = [8, 32], strides = [1, 1]} : vector<8x128xf32> to vector<8x32xf32>
    %20 = vector.extract_strided_slice %15 {offsets = [0, 96], sizes = [8, 32], strides = [1, 1]} : vector<8x128xf32> to vector<8x32xf32>
    %21 = arith.mulf %18, %6 : vector<8x32xf32>
    %22 = arith.mulf %17, %19 : vector<8x32xf32>
    %23 = arith.addf %21, %22 : vector<8x32xf32>
    %24 = math.tanh %23 : vector<8x32xf32>
    %25 = arith.mulf %20, %24 : vector<8x32xf32>
    %cst_12 = arith.constant dense<0.000000e+00> : vector<8x128xf32>
    %26 = tpu.matmul %25, %1, %cst_12 {dimension_numbers = #tpu.dot_dimension_numbers<[1], [0], [0], [1], [0, 0, 1, 1], [], []>} : vector<8x32xf32>, vector<32x128xf32>, vector<8x128xf32> -> vector<8x128xf32>
    %27 = arith.addf %26, %5 : vector<8x128xf32>
    %28 = arith.negf %27 : vector<8x128xf32>
    %29 = math.exp %28 : vector<8x128xf32>
    %cst_13 = arith.constant 1.000000e+00 : f32
    %30 = vector.broadcast %cst_13 : f32 to vector<8x128xf32>
    %31 = arith.addf %30, %29 : vector<8x128xf32>
    %32 = arith.divf %30, %31 : vector<8x128xf32>
    %33 = math.tanh %27 : vector<8x128xf32>
    %34 = vector.extract_strided_slice %32 {offsets = [0, 0], sizes = [8, 32], strides = [1, 1]} : vector<8x128xf32> to vector<8x32xf32>
    %35 = vector.extract_strided_slice %32 {offsets = [0, 32], sizes = [8, 32], strides = [1, 1]} : vector<8x128xf32> to vector<8x32xf32>
    %36 = vector.extract_strided_slice %33 {offsets = [0, 64], sizes = [8, 32], strides = [1, 1]} : vector<8x128xf32> to vector<8x32xf32>
    %37 = vector.extract_strided_slice %32 {offsets = [0, 96], sizes = [8, 32], strides = [1, 1]} : vector<8x128xf32> to vector<8x32xf32>
    %38 = arith.mulf %35, %6 : vector<8x32xf32>
    %39 = arith.mulf %34, %36 : vector<8x32xf32>
    %40 = arith.addf %38, %39 : vector<8x32xf32>
    %41 = math.tanh %40 : vector<8x32xf32>
    %42 = arith.mulf %37, %41 : vector<8x32xf32>
    %cst_14 = arith.constant dense<0.000000e+00> : vector<8x128xf32>
    %43 = tpu.matmul %42, %2, %cst_14 {dimension_numbers = #tpu.dot_dimension_numbers<[1], [0], [0], [1], [0, 0, 1, 1], [], []>} : vector<8x32xf32>, vector<32x128xf32>, vector<8x128xf32> -> vector<8x128xf32>
    %44 = arith.addf %43, %5 : vector<8x128xf32>
    %c1 = arith.constant 1 : index
    %c0_15 = arith.constant 0 : index
    %c0_16 = arith.constant 0 : index
    %45 = vector.load %arg0[%c1, %c0_15, %c0_16] : memref<8x8x128xf32, #tpu.memory_space<vmem>>, vector<1x8x128xf32>
    %46 = vector.shape_cast %45 : vector<1x8x128xf32> to vector<8x128xf32>
    %cst_17 = arith.constant dense<0.000000e+00> : vector<8x128xf32>
    %47 = tpu.matmul %25, %0, %cst_17 {dimension_numbers = #tpu.dot_dimension_numbers<[1], [0], [0], [1], [0, 0, 1, 1], [], []>} : vector<8x32xf32>, vector<32x128xf32>, vector<8x128xf32> -> vector<8x128xf32>
    %48 = arith.addf %46, %47 : vector<8x128xf32>
    %49 = arith.negf %48 : vector<8x128xf32>
    %50 = math.exp %49 : vector<8x128xf32>
    %cst_18 = arith.constant 1.000000e+00 : f32
    %51 = vector.broadcast %cst_18 : f32 to vector<8x128xf32>
    %52 = arith.addf %51, %50 : vector<8x128xf32>
    %53 = arith.divf %51, %52 : vector<8x128xf32>
    %54 = math.tanh %48 : vector<8x128xf32>
    %55 = vector.extract_strided_slice %53 {offsets = [0, 0], sizes = [8, 32], strides = [1, 1]} : vector<8x128xf32> to vector<8x32xf32>
    %56 = vector.extract_strided_slice %53 {offsets = [0, 32], sizes = [8, 32], strides = [1, 1]} : vector<8x128xf32> to vector<8x32xf32>
    %57 = vector.extract_strided_slice %54 {offsets = [0, 64], sizes = [8, 32], strides = [1, 1]} : vector<8x128xf32> to vector<8x32xf32>
    %58 = vector.extract_strided_slice %53 {offsets = [0, 96], sizes = [8, 32], strides = [1, 1]} : vector<8x128xf32> to vector<8x32xf32>
    %59 = arith.mulf %56, %23 : vector<8x32xf32>
    %60 = arith.mulf %55, %57 : vector<8x32xf32>
    %61 = arith.addf %59, %60 : vector<8x32xf32>
    %62 = math.tanh %61 : vector<8x32xf32>
    %63 = arith.mulf %58, %62 : vector<8x32xf32>
    %cst_19 = arith.constant dense<0.000000e+00> : vector<8x128xf32>
    %64 = tpu.matmul %63, %1, %cst_19 {dimension_numbers = #tpu.dot_dimension_numbers<[1], [0], [0], [1], [0, 0, 1, 1], [], []>} : vector<8x32xf32>, vector<32x128xf32>, vector<8x128xf32> -> vector<8x128xf32>
    %65 = arith.addf %64, %44 : vector<8x128xf32>
    %66 = arith.negf %65 : vector<8x128xf32>
    %67 = math.exp %66 : vector<8x128xf32>
    %cst_20 = arith.constant 1.000000e+00 : f32
    %68 = vector.broadcast %cst_20 : f32 to vector<8x128xf32>
    %69 = arith.addf %68, %67 : vector<8x128xf32>
    %70 = arith.divf %68, %69 : vector<8x128xf32>
    %71 = math.tanh %65 : vector<8x128xf32>
    %72 = vector.extract_strided_slice %70 {offsets = [0, 0], sizes = [8, 32], strides = [1, 1]} : vector<8x128xf32> to vector<8x32xf32>
    %73 = vector.extract_strided_slice %70 {offsets = [0, 32], sizes = [8, 32], strides = [1, 1]} : vector<8x128xf32> to vector<8x32xf32>
    %74 = vector.extract_strided_slice %71 {offsets = [0, 64], sizes = [8, 32], strides = [1, 1]} : vector<8x128xf32> to vector<8x32xf32>
    %75 = vector.extract_strided_slice %70 {offsets = [0, 96], sizes = [8, 32], strides = [1, 1]} : vector<8x128xf32> to vector<8x32xf32>
    %76 = arith.mulf %73, %40 : vector<8x32xf32>
    %77 = arith.mulf %72, %74 : vector<8x32xf32>
    %78 = arith.addf %76, %77 : vector<8x32xf32>
    %79 = math.tanh %78 : vector<8x32xf32>
    %80 = arith.mulf %75, %79 : vector<8x32xf32>
    %cst_21 = arith.constant dense<0.000000e+00> : vector<8x128xf32>
    %81 = tpu.matmul %80, %2, %cst_21 {dimension_numbers = #tpu.dot_dimension_numbers<[1], [0], [0], [1], [0, 0, 1, 1], [], []>} : vector<8x32xf32>, vector<32x128xf32>, vector<8x128xf32> -> vector<8x128xf32>
    %82 = arith.addf %81, %5 : vector<8x128xf32>
    %c2 = arith.constant 2 : index
    %c0_22 = arith.constant 0 : index
    %c0_23 = arith.constant 0 : index
    %83 = vector.load %arg0[%c2, %c0_22, %c0_23] : memref<8x8x128xf32, #tpu.memory_space<vmem>>, vector<1x8x128xf32>
    %84 = vector.shape_cast %83 : vector<1x8x128xf32> to vector<8x128xf32>
    %cst_24 = arith.constant dense<0.000000e+00> : vector<8x128xf32>
    %85 = tpu.matmul %63, %0, %cst_24 {dimension_numbers = #tpu.dot_dimension_numbers<[1], [0], [0], [1], [0, 0, 1, 1], [], []>} : vector<8x32xf32>, vector<32x128xf32>, vector<8x128xf32> -> vector<8x128xf32>
    %86 = arith.addf %84, %85 : vector<8x128xf32>
    %87 = arith.negf %86 : vector<8x128xf32>
    %88 = math.exp %87 : vector<8x128xf32>
    %cst_25 = arith.constant 1.000000e+00 : f32
    %89 = vector.broadcast %cst_25 : f32 to vector<8x128xf32>
    %90 = arith.addf %89, %88 : vector<8x128xf32>
    %91 = arith.divf %89, %90 : vector<8x128xf32>
    %92 = math.tanh %86 : vector<8x128xf32>
    %93 = vector.extract_strided_slice %91 {offsets = [0, 0], sizes = [8, 32], strides = [1, 1]} : vector<8x128xf32> to vector<8x32xf32>
    %94 = vector.extract_strided_slice %91 {offsets = [0, 32], sizes = [8, 32], strides = [1, 1]} : vector<8x128xf32> to vector<8x32xf32>
    %95 = vector.extract_strided_slice %92 {offsets = [0, 64], sizes = [8, 32], strides = [1, 1]} : vector<8x128xf32> to vector<8x32xf32>
    %96 = vector.extract_strided_slice %91 {offsets = [0, 96], sizes = [8, 32], strides = [1, 1]} : vector<8x128xf32> to vector<8x32xf32>
    %97 = arith.mulf %94, %61 : vector<8x32xf32>
    %98 = arith.mulf %93, %95 : vector<8x32xf32>
    %99 = arith.addf %97, %98 : vector<8x32xf32>
    %100 = math.tanh %99 : vector<8x32xf32>
    %101 = arith.mulf %96, %100 : vector<8x32xf32>
    %cst_26 = arith.constant dense<0.000000e+00> : vector<8x128xf32>
    %102 = tpu.matmul %101, %1, %cst_26 {dimension_numbers = #tpu.dot_dimension_numbers<[1], [0], [0], [1], [0, 0, 1, 1], [], []>} : vector<8x32xf32>, vector<32x128xf32>, vector<8x128xf32> -> vector<8x128xf32>
    %103 = arith.addf %102, %82 : vector<8x128xf32>
    %104 = arith.negf %103 : vector<8x128xf32>
    %105 = math.exp %104 : vector<8x128xf32>
    %cst_27 = arith.constant 1.000000e+00 : f32
    %106 = vector.broadcast %cst_27 : f32 to vector<8x128xf32>
    %107 = arith.addf %106, %105 : vector<8x128xf32>
    %108 = arith.divf %106, %107 : vector<8x128xf32>
    %109 = math.tanh %103 : vector<8x128xf32>
    %110 = vector.extract_strided_slice %108 {offsets = [0, 0], sizes = [8, 32], strides = [1, 1]} : vector<8x128xf32> to vector<8x32xf32>
    %111 = vector.extract_strided_slice %108 {offsets = [0, 32], sizes = [8, 32], strides = [1, 1]} : vector<8x128xf32> to vector<8x32xf32>
    %112 = vector.extract_strided_slice %109 {offsets = [0, 64], sizes = [8, 32], strides = [1, 1]} : vector<8x128xf32> to vector<8x32xf32>
    %113 = vector.extract_strided_slice %108 {offsets = [0, 96], sizes = [8, 32], strides = [1, 1]} : vector<8x128xf32> to vector<8x32xf32>
    %114 = arith.mulf %111, %78 : vector<8x32xf32>
    %115 = arith.mulf %110, %112 : vector<8x32xf32>
    %116 = arith.addf %114, %115 : vector<8x32xf32>
    %117 = math.tanh %116 : vector<8x32xf32>
    %118 = arith.mulf %113, %117 : vector<8x32xf32>
    %cst_28 = arith.constant dense<0.000000e+00> : vector<8x128xf32>
    %119 = tpu.matmul %118, %2, %cst_28 {dimension_numbers = #tpu.dot_dimension_numbers<[1], [0], [0], [1], [0, 0, 1, 1], [], []>} : vector<8x32xf32>, vector<32x128xf32>, vector<8x128xf32> -> vector<8x128xf32>
    %120 = arith.addf %119, %5 : vector<8x128xf32>
    %c3 = arith.constant 3 : index
    %c0_29 = arith.constant 0 : index
    %c0_30 = arith.constant 0 : index
    %121 = vector.load %arg0[%c3, %c0_29, %c0_30] : memref<8x8x128xf32, #tpu.memory_space<vmem>>, vector<1x8x128xf32>
    %122 = vector.shape_cast %121 : vector<1x8x128xf32> to vector<8x128xf32>
    %cst_31 = arith.constant dense<0.000000e+00> : vector<8x128xf32>
    %123 = tpu.matmul %101, %0, %cst_31 {dimension_numbers = #tpu.dot_dimension_numbers<[1], [0], [0], [1], [0, 0, 1, 1], [], []>} : vector<8x32xf32>, vector<32x128xf32>, vector<8x128xf32> -> vector<8x128xf32>
    %124 = arith.addf %122, %123 : vector<8x128xf32>
    %125 = arith.negf %124 : vector<8x128xf32>
    %126 = math.exp %125 : vector<8x128xf32>
    %cst_32 = arith.constant 1.000000e+00 : f32
    %127 = vector.broadcast %cst_32 : f32 to vector<8x128xf32>
    %128 = arith.addf %127, %126 : vector<8x128xf32>
    %129 = arith.divf %127, %128 : vector<8x128xf32>
    %130 = math.tanh %124 : vector<8x128xf32>
    %131 = vector.extract_strided_slice %129 {offsets = [0, 0], sizes = [8, 32], strides = [1, 1]} : vector<8x128xf32> to vector<8x32xf32>
    %132 = vector.extract_strided_slice %129 {offsets = [0, 32], sizes = [8, 32], strides = [1, 1]} : vector<8x128xf32> to vector<8x32xf32>
    %133 = vector.extract_strided_slice %130 {offsets = [0, 64], sizes = [8, 32], strides = [1, 1]} : vector<8x128xf32> to vector<8x32xf32>
    %134 = vector.extract_strided_slice %129 {offsets = [0, 96], sizes = [8, 32], strides = [1, 1]} : vector<8x128xf32> to vector<8x32xf32>
    %135 = arith.mulf %132, %99 : vector<8x32xf32>
    %136 = arith.mulf %131, %133 : vector<8x32xf32>
    %137 = arith.addf %135, %136 : vector<8x32xf32>
    %138 = math.tanh %137 : vector<8x32xf32>
    %139 = arith.mulf %134, %138 : vector<8x32xf32>
    %cst_33 = arith.constant dense<0.000000e+00> : vector<8x128xf32>
    %140 = tpu.matmul %139, %1, %cst_33 {dimension_numbers = #tpu.dot_dimension_numbers<[1], [0], [0], [1], [0, 0, 1, 1], [], []>} : vector<8x32xf32>, vector<32x128xf32>, vector<8x128xf32> -> vector<8x128xf32>
    %141 = arith.addf %140, %120 : vector<8x128xf32>
    %142 = arith.negf %141 : vector<8x128xf32>
    %143 = math.exp %142 : vector<8x128xf32>
    %cst_34 = arith.constant 1.000000e+00 : f32
    %144 = vector.broadcast %cst_34 : f32 to vector<8x128xf32>
    %145 = arith.addf %144, %143 : vector<8x128xf32>
    %146 = arith.divf %144, %145 : vector<8x128xf32>
    %147 = math.tanh %141 : vector<8x128xf32>
    %148 = vector.extract_strided_slice %146 {offsets = [0, 0], sizes = [8, 32], strides = [1, 1]} : vector<8x128xf32> to vector<8x32xf32>
    %149 = vector.extract_strided_slice %146 {offsets = [0, 32], sizes = [8, 32], strides = [1, 1]} : vector<8x128xf32> to vector<8x32xf32>
    %150 = vector.extract_strided_slice %147 {offsets = [0, 64], sizes = [8, 32], strides = [1, 1]} : vector<8x128xf32> to vector<8x32xf32>
    %151 = vector.extract_strided_slice %146 {offsets = [0, 96], sizes = [8, 32], strides = [1, 1]} : vector<8x128xf32> to vector<8x32xf32>
    %152 = arith.mulf %149, %116 : vector<8x32xf32>
    %153 = arith.mulf %148, %150 : vector<8x32xf32>
    %154 = arith.addf %152, %153 : vector<8x32xf32>
    %155 = math.tanh %154 : vector<8x32xf32>
    %156 = arith.mulf %151, %155 : vector<8x32xf32>
    %cst_35 = arith.constant dense<0.000000e+00> : vector<8x128xf32>
    %157 = tpu.matmul %156, %2, %cst_35 {dimension_numbers = #tpu.dot_dimension_numbers<[1], [0], [0], [1], [0, 0, 1, 1], [], []>} : vector<8x32xf32>, vector<32x128xf32>, vector<8x128xf32> -> vector<8x128xf32>
    %158 = arith.addf %157, %5 : vector<8x128xf32>
    %c4 = arith.constant 4 : index
    %c0_36 = arith.constant 0 : index
    %c0_37 = arith.constant 0 : index
    %159 = vector.load %arg0[%c4, %c0_36, %c0_37] : memref<8x8x128xf32, #tpu.memory_space<vmem>>, vector<1x8x128xf32>
    %160 = vector.shape_cast %159 : vector<1x8x128xf32> to vector<8x128xf32>
    %cst_38 = arith.constant dense<0.000000e+00> : vector<8x128xf32>
    %161 = tpu.matmul %139, %0, %cst_38 {dimension_numbers = #tpu.dot_dimension_numbers<[1], [0], [0], [1], [0, 0, 1, 1], [], []>} : vector<8x32xf32>, vector<32x128xf32>, vector<8x128xf32> -> vector<8x128xf32>
    %162 = arith.addf %160, %161 : vector<8x128xf32>
    %163 = arith.negf %162 : vector<8x128xf32>
    %164 = math.exp %163 : vector<8x128xf32>
    %cst_39 = arith.constant 1.000000e+00 : f32
    %165 = vector.broadcast %cst_39 : f32 to vector<8x128xf32>
    %166 = arith.addf %165, %164 : vector<8x128xf32>
    %167 = arith.divf %165, %166 : vector<8x128xf32>
    %168 = math.tanh %162 : vector<8x128xf32>
    %169 = vector.extract_strided_slice %167 {offsets = [0, 0], sizes = [8, 32], strides = [1, 1]} : vector<8x128xf32> to vector<8x32xf32>
    %170 = vector.extract_strided_slice %167 {offsets = [0, 32], sizes = [8, 32], strides = [1, 1]} : vector<8x128xf32> to vector<8x32xf32>
    %171 = vector.extract_strided_slice %168 {offsets = [0, 64], sizes = [8, 32], strides = [1, 1]} : vector<8x128xf32> to vector<8x32xf32>
    %172 = vector.extract_strided_slice %167 {offsets = [0, 96], sizes = [8, 32], strides = [1, 1]} : vector<8x128xf32> to vector<8x32xf32>
    %173 = arith.mulf %170, %137 : vector<8x32xf32>
    %174 = arith.mulf %169, %171 : vector<8x32xf32>
    %175 = arith.addf %173, %174 : vector<8x32xf32>
    %176 = math.tanh %175 : vector<8x32xf32>
    %177 = arith.mulf %172, %176 : vector<8x32xf32>
    %cst_40 = arith.constant dense<0.000000e+00> : vector<8x128xf32>
    %178 = tpu.matmul %177, %1, %cst_40 {dimension_numbers = #tpu.dot_dimension_numbers<[1], [0], [0], [1], [0, 0, 1, 1], [], []>} : vector<8x32xf32>, vector<32x128xf32>, vector<8x128xf32> -> vector<8x128xf32>
    %179 = arith.addf %178, %158 : vector<8x128xf32>
    %180 = arith.negf %179 : vector<8x128xf32>
    %181 = math.exp %180 : vector<8x128xf32>
    %cst_41 = arith.constant 1.000000e+00 : f32
    %182 = vector.broadcast %cst_41 : f32 to vector<8x128xf32>
    %183 = arith.addf %182, %181 : vector<8x128xf32>
    %184 = arith.divf %182, %183 : vector<8x128xf32>
    %185 = math.tanh %179 : vector<8x128xf32>
    %186 = vector.extract_strided_slice %184 {offsets = [0, 0], sizes = [8, 32], strides = [1, 1]} : vector<8x128xf32> to vector<8x32xf32>
    %187 = vector.extract_strided_slice %184 {offsets = [0, 32], sizes = [8, 32], strides = [1, 1]} : vector<8x128xf32> to vector<8x32xf32>
    %188 = vector.extract_strided_slice %185 {offsets = [0, 64], sizes = [8, 32], strides = [1, 1]} : vector<8x128xf32> to vector<8x32xf32>
    %189 = vector.extract_strided_slice %184 {offsets = [0, 96], sizes = [8, 32], strides = [1, 1]} : vector<8x128xf32> to vector<8x32xf32>
    %190 = arith.mulf %187, %154 : vector<8x32xf32>
    %191 = arith.mulf %186, %188 : vector<8x32xf32>
    %192 = arith.addf %190, %191 : vector<8x32xf32>
    %193 = math.tanh %192 : vector<8x32xf32>
    %194 = arith.mulf %189, %193 : vector<8x32xf32>
    %cst_42 = arith.constant dense<0.000000e+00> : vector<8x128xf32>
    %195 = tpu.matmul %194, %2, %cst_42 {dimension_numbers = #tpu.dot_dimension_numbers<[1], [0], [0], [1], [0, 0, 1, 1], [], []>} : vector<8x32xf32>, vector<32x128xf32>, vector<8x128xf32> -> vector<8x128xf32>
    %196 = arith.addf %195, %5 : vector<8x128xf32>
    %c5 = arith.constant 5 : index
    %c0_43 = arith.constant 0 : index
    %c0_44 = arith.constant 0 : index
    %197 = vector.load %arg0[%c5, %c0_43, %c0_44] : memref<8x8x128xf32, #tpu.memory_space<vmem>>, vector<1x8x128xf32>
    %198 = vector.shape_cast %197 : vector<1x8x128xf32> to vector<8x128xf32>
    %cst_45 = arith.constant dense<0.000000e+00> : vector<8x128xf32>
    %199 = tpu.matmul %177, %0, %cst_45 {dimension_numbers = #tpu.dot_dimension_numbers<[1], [0], [0], [1], [0, 0, 1, 1], [], []>} : vector<8x32xf32>, vector<32x128xf32>, vector<8x128xf32> -> vector<8x128xf32>
    %200 = arith.addf %198, %199 : vector<8x128xf32>
    %201 = arith.negf %200 : vector<8x128xf32>
    %202 = math.exp %201 : vector<8x128xf32>
    %cst_46 = arith.constant 1.000000e+00 : f32
    %203 = vector.broadcast %cst_46 : f32 to vector<8x128xf32>
    %204 = arith.addf %203, %202 : vector<8x128xf32>
    %205 = arith.divf %203, %204 : vector<8x128xf32>
    %206 = math.tanh %200 : vector<8x128xf32>
    %207 = vector.extract_strided_slice %205 {offsets = [0, 0], sizes = [8, 32], strides = [1, 1]} : vector<8x128xf32> to vector<8x32xf32>
    %208 = vector.extract_strided_slice %205 {offsets = [0, 32], sizes = [8, 32], strides = [1, 1]} : vector<8x128xf32> to vector<8x32xf32>
    %209 = vector.extract_strided_slice %206 {offsets = [0, 64], sizes = [8, 32], strides = [1, 1]} : vector<8x128xf32> to vector<8x32xf32>
    %210 = vector.extract_strided_slice %205 {offsets = [0, 96], sizes = [8, 32], strides = [1, 1]} : vector<8x128xf32> to vector<8x32xf32>
    %211 = arith.mulf %208, %175 : vector<8x32xf32>
    %212 = arith.mulf %207, %209 : vector<8x32xf32>
    %213 = arith.addf %211, %212 : vector<8x32xf32>
    %214 = math.tanh %213 : vector<8x32xf32>
    %215 = arith.mulf %210, %214 : vector<8x32xf32>
    %cst_47 = arith.constant dense<0.000000e+00> : vector<8x128xf32>
    %216 = tpu.matmul %215, %1, %cst_47 {dimension_numbers = #tpu.dot_dimension_numbers<[1], [0], [0], [1], [0, 0, 1, 1], [], []>} : vector<8x32xf32>, vector<32x128xf32>, vector<8x128xf32> -> vector<8x128xf32>
    %217 = arith.addf %216, %196 : vector<8x128xf32>
    %218 = arith.negf %217 : vector<8x128xf32>
    %219 = math.exp %218 : vector<8x128xf32>
    %cst_48 = arith.constant 1.000000e+00 : f32
    %220 = vector.broadcast %cst_48 : f32 to vector<8x128xf32>
    %221 = arith.addf %220, %219 : vector<8x128xf32>
    %222 = arith.divf %220, %221 : vector<8x128xf32>
    %223 = math.tanh %217 : vector<8x128xf32>
    %224 = vector.extract_strided_slice %222 {offsets = [0, 0], sizes = [8, 32], strides = [1, 1]} : vector<8x128xf32> to vector<8x32xf32>
    %225 = vector.extract_strided_slice %222 {offsets = [0, 32], sizes = [8, 32], strides = [1, 1]} : vector<8x128xf32> to vector<8x32xf32>
    %226 = vector.extract_strided_slice %223 {offsets = [0, 64], sizes = [8, 32], strides = [1, 1]} : vector<8x128xf32> to vector<8x32xf32>
    %227 = vector.extract_strided_slice %222 {offsets = [0, 96], sizes = [8, 32], strides = [1, 1]} : vector<8x128xf32> to vector<8x32xf32>
    %228 = arith.mulf %225, %192 : vector<8x32xf32>
    %229 = arith.mulf %224, %226 : vector<8x32xf32>
    %230 = arith.addf %228, %229 : vector<8x32xf32>
    %231 = math.tanh %230 : vector<8x32xf32>
    %232 = arith.mulf %227, %231 : vector<8x32xf32>
    %cst_49 = arith.constant dense<0.000000e+00> : vector<8x128xf32>
    %233 = tpu.matmul %232, %2, %cst_49 {dimension_numbers = #tpu.dot_dimension_numbers<[1], [0], [0], [1], [0, 0, 1, 1], [], []>} : vector<8x32xf32>, vector<32x128xf32>, vector<8x128xf32> -> vector<8x128xf32>
    %234 = arith.addf %233, %5 : vector<8x128xf32>
    %c6 = arith.constant 6 : index
    %c0_50 = arith.constant 0 : index
    %c0_51 = arith.constant 0 : index
    %235 = vector.load %arg0[%c6, %c0_50, %c0_51] : memref<8x8x128xf32, #tpu.memory_space<vmem>>, vector<1x8x128xf32>
    %236 = vector.shape_cast %235 : vector<1x8x128xf32> to vector<8x128xf32>
    %cst_52 = arith.constant dense<0.000000e+00> : vector<8x128xf32>
    %237 = tpu.matmul %215, %0, %cst_52 {dimension_numbers = #tpu.dot_dimension_numbers<[1], [0], [0], [1], [0, 0, 1, 1], [], []>} : vector<8x32xf32>, vector<32x128xf32>, vector<8x128xf32> -> vector<8x128xf32>
    %238 = arith.addf %236, %237 : vector<8x128xf32>
    %239 = arith.negf %238 : vector<8x128xf32>
    %240 = math.exp %239 : vector<8x128xf32>
    %cst_53 = arith.constant 1.000000e+00 : f32
    %241 = vector.broadcast %cst_53 : f32 to vector<8x128xf32>
    %242 = arith.addf %241, %240 : vector<8x128xf32>
    %243 = arith.divf %241, %242 : vector<8x128xf32>
    %244 = math.tanh %238 : vector<8x128xf32>
    %245 = vector.extract_strided_slice %243 {offsets = [0, 0], sizes = [8, 32], strides = [1, 1]} : vector<8x128xf32> to vector<8x32xf32>
    %246 = vector.extract_strided_slice %243 {offsets = [0, 32], sizes = [8, 32], strides = [1, 1]} : vector<8x128xf32> to vector<8x32xf32>
    %247 = vector.extract_strided_slice %244 {offsets = [0, 64], sizes = [8, 32], strides = [1, 1]} : vector<8x128xf32> to vector<8x32xf32>
    %248 = vector.extract_strided_slice %243 {offsets = [0, 96], sizes = [8, 32], strides = [1, 1]} : vector<8x128xf32> to vector<8x32xf32>
    %249 = arith.mulf %246, %213 : vector<8x32xf32>
    %250 = arith.mulf %245, %247 : vector<8x32xf32>
    %251 = arith.addf %249, %250 : vector<8x32xf32>
    %252 = math.tanh %251 : vector<8x32xf32>
    %253 = arith.mulf %248, %252 : vector<8x32xf32>
    %cst_54 = arith.constant dense<0.000000e+00> : vector<8x128xf32>
    %254 = tpu.matmul %253, %1, %cst_54 {dimension_numbers = #tpu.dot_dimension_numbers<[1], [0], [0], [1], [0, 0, 1, 1], [], []>} : vector<8x32xf32>, vector<32x128xf32>, vector<8x128xf32> -> vector<8x128xf32>
    %255 = arith.addf %254, %234 : vector<8x128xf32>
    %256 = arith.negf %255 : vector<8x128xf32>
    %257 = math.exp %256 : vector<8x128xf32>
    %cst_55 = arith.constant 1.000000e+00 : f32
    %258 = vector.broadcast %cst_55 : f32 to vector<8x128xf32>
    %259 = arith.addf %258, %257 : vector<8x128xf32>
    %260 = arith.divf %258, %259 : vector<8x128xf32>
    %261 = math.tanh %255 : vector<8x128xf32>
    %262 = vector.extract_strided_slice %260 {offsets = [0, 0], sizes = [8, 32], strides = [1, 1]} : vector<8x128xf32> to vector<8x32xf32>
    %263 = vector.extract_strided_slice %260 {offsets = [0, 32], sizes = [8, 32], strides = [1, 1]} : vector<8x128xf32> to vector<8x32xf32>
    %264 = vector.extract_strided_slice %261 {offsets = [0, 64], sizes = [8, 32], strides = [1, 1]} : vector<8x128xf32> to vector<8x32xf32>
    %265 = vector.extract_strided_slice %260 {offsets = [0, 96], sizes = [8, 32], strides = [1, 1]} : vector<8x128xf32> to vector<8x32xf32>
    %266 = arith.mulf %263, %230 : vector<8x32xf32>
    %267 = arith.mulf %262, %264 : vector<8x32xf32>
    %268 = arith.addf %266, %267 : vector<8x32xf32>
    %269 = math.tanh %268 : vector<8x32xf32>
    %270 = arith.mulf %265, %269 : vector<8x32xf32>
    %cst_56 = arith.constant dense<0.000000e+00> : vector<8x128xf32>
    %271 = tpu.matmul %270, %2, %cst_56 {dimension_numbers = #tpu.dot_dimension_numbers<[1], [0], [0], [1], [0, 0, 1, 1], [], []>} : vector<8x32xf32>, vector<32x128xf32>, vector<8x128xf32> -> vector<8x128xf32>
    %272 = arith.addf %271, %5 : vector<8x128xf32>
    %c7 = arith.constant 7 : index
    %c0_57 = arith.constant 0 : index
    %c0_58 = arith.constant 0 : index
    %273 = vector.load %arg0[%c7, %c0_57, %c0_58] : memref<8x8x128xf32, #tpu.memory_space<vmem>>, vector<1x8x128xf32>
    %274 = vector.shape_cast %273 : vector<1x8x128xf32> to vector<8x128xf32>
    %cst_59 = arith.constant dense<0.000000e+00> : vector<8x128xf32>
    %275 = tpu.matmul %253, %0, %cst_59 {dimension_numbers = #tpu.dot_dimension_numbers<[1], [0], [0], [1], [0, 0, 1, 1], [], []>} : vector<8x32xf32>, vector<32x128xf32>, vector<8x128xf32> -> vector<8x128xf32>
    %276 = arith.addf %274, %275 : vector<8x128xf32>
    %277 = arith.negf %276 : vector<8x128xf32>
    %278 = math.exp %277 : vector<8x128xf32>
    %cst_60 = arith.constant 1.000000e+00 : f32
    %279 = vector.broadcast %cst_60 : f32 to vector<8x128xf32>
    %280 = arith.addf %279, %278 : vector<8x128xf32>
    %281 = arith.divf %279, %280 : vector<8x128xf32>
    %282 = math.tanh %276 : vector<8x128xf32>
    %283 = vector.extract_strided_slice %281 {offsets = [0, 0], sizes = [8, 32], strides = [1, 1]} : vector<8x128xf32> to vector<8x32xf32>
    %284 = vector.extract_strided_slice %281 {offsets = [0, 32], sizes = [8, 32], strides = [1, 1]} : vector<8x128xf32> to vector<8x32xf32>
    %285 = vector.extract_strided_slice %282 {offsets = [0, 64], sizes = [8, 32], strides = [1, 1]} : vector<8x128xf32> to vector<8x32xf32>
    %286 = vector.extract_strided_slice %281 {offsets = [0, 96], sizes = [8, 32], strides = [1, 1]} : vector<8x128xf32> to vector<8x32xf32>
    %287 = arith.mulf %284, %251 : vector<8x32xf32>
    %288 = arith.mulf %283, %285 : vector<8x32xf32>
    %289 = arith.addf %287, %288 : vector<8x32xf32>
    %290 = math.tanh %289 : vector<8x32xf32>
    %291 = arith.mulf %286, %290 : vector<8x32xf32>
    %cst_61 = arith.constant dense<0.000000e+00> : vector<8x128xf32>
    %292 = tpu.matmul %291, %1, %cst_61 {dimension_numbers = #tpu.dot_dimension_numbers<[1], [0], [0], [1], [0, 0, 1, 1], [], []>} : vector<8x32xf32>, vector<32x128xf32>, vector<8x128xf32> -> vector<8x128xf32>
    %293 = arith.addf %292, %272 : vector<8x128xf32>
    %294 = arith.negf %293 : vector<8x128xf32>
    %295 = math.exp %294 : vector<8x128xf32>
    %cst_62 = arith.constant 1.000000e+00 : f32
    %296 = vector.broadcast %cst_62 : f32 to vector<8x128xf32>
    %297 = arith.addf %296, %295 : vector<8x128xf32>
    %298 = arith.divf %296, %297 : vector<8x128xf32>
    %299 = math.tanh %293 : vector<8x128xf32>
    %300 = vector.extract_strided_slice %298 {offsets = [0, 0], sizes = [8, 32], strides = [1, 1]} : vector<8x128xf32> to vector<8x32xf32>
    %301 = vector.extract_strided_slice %298 {offsets = [0, 32], sizes = [8, 32], strides = [1, 1]} : vector<8x128xf32> to vector<8x32xf32>
    %302 = vector.extract_strided_slice %299 {offsets = [0, 64], sizes = [8, 32], strides = [1, 1]} : vector<8x128xf32> to vector<8x32xf32>
    %303 = vector.extract_strided_slice %298 {offsets = [0, 96], sizes = [8, 32], strides = [1, 1]} : vector<8x128xf32> to vector<8x32xf32>
    %304 = arith.mulf %301, %268 : vector<8x32xf32>
    %305 = arith.mulf %300, %302 : vector<8x32xf32>
    %306 = arith.addf %304, %305 : vector<8x32xf32>
    %307 = math.tanh %306 : vector<8x32xf32>
    %308 = arith.mulf %303, %307 : vector<8x32xf32>
    %309 = tpu.concatenate %42, %80, %118, %156, %194, %232, %270, %308 in 0 : vector<8x32xf32>, vector<8x32xf32>, vector<8x32xf32>, vector<8x32xf32>, vector<8x32xf32>, vector<8x32xf32>, vector<8x32xf32>, vector<8x32xf32> -> vector<64x32xf32>
    %c0_63 = arith.constant 0 : index
    %c0_64 = arith.constant 0 : index
    %310 = vector.load %arg5[%c0_63, %c0_64] : memref<32x128xf32, #tpu.memory_space<vmem>>, vector<32x128xf32>
    %cst_65 = arith.constant dense<0.000000e+00> : vector<64x128xf32>
    %311 = tpu.matmul %309, %310, %cst_65 {dimension_numbers = #tpu.dot_dimension_numbers<[1], [0], [0], [1], [0, 0, 1, 1], [], []>} : vector<64x32xf32>, vector<32x128xf32>, vector<64x128xf32> -> vector<64x128xf32>
    %c0_66 = arith.constant 0 : index
    %c0_67 = arith.constant 0 : index
    %312 = vector.load %arg6[%c0_66, %c0_67] : memref<1x128xf32, #tpu.memory_space<vmem>>, vector<1x128xf32>
    %313 = vector.broadcast %312 : vector<1x128xf32> to vector<64x128xf32>
    %314 = arith.addf %311, %313 : vector<64x128xf32>
    %315 = vector.shape_cast %314 : vector<64x128xf32> to vector<8x8x128xf32>
    %c0_68 = arith.constant 0 : index
    %c0_69 = arith.constant 0 : index
    %c0_70 = arith.constant 0 : index
    %316 = vector.load %arg7[%c0_68, %c0_69, %c0_70] : memref<8x1x128xf32, #tpu.memory_space<vmem>>, vector<8x1x128xf32>
    %317 = vector.broadcast %316 : vector<8x1x128xf32> to vector<8x8x128xf32>
    %318 = arith.mulf %315, %317 : vector<8x8x128xf32>
    %c0_71 = arith.constant 0 : index
    %c0_72 = arith.constant 0 : index
    %c0_73 = arith.constant 0 : index
    %319 = vector.load %arg8[%c0_71, %c0_72, %c0_73] : memref<8x1x128xf32, #tpu.memory_space<vmem>>, vector<8x1x128xf32>
    %320 = vector.broadcast %319 : vector<8x1x128xf32> to vector<8x8x128xf32>
    %321 = arith.addf %318, %320 : vector<8x8x128xf32>
    %cst_74 = arith.constant 0.000000e+00 : f32
    %322 = vector.broadcast %cst_74 : f32 to vector<8x8x128xf32>
    %323 = arith.maximumf %321, %322 : vector<8x8x128xf32>
    %324 = vector.shape_cast %323 : vector<8x8x128xf32> to vector<64x128xf32>
    %c0_75 = arith.constant 0 : index
    %c0_76 = arith.constant 0 : index
    %325 = vector.load %arg9[%c0_75, %c0_76] : memref<128x128xf32, #tpu.memory_space<vmem>>, vector<128x128xf32>
    %cst_77 = arith.constant dense<0.000000e+00> : vector<64x128xf32>
    %326 = tpu.matmul %324, %325, %cst_77 {dimension_numbers = #tpu.dot_dimension_numbers<[1], [0], [0], [1], [0, 0, 1, 1], [], []>} : vector<64x128xf32>, vector<128x128xf32>, vector<64x128xf32> -> vector<64x128xf32>
    %c0_78 = arith.constant 0 : index
    %c0_79 = arith.constant 0 : index
    %327 = vector.load %arg10[%c0_78, %c0_79] : memref<1x128xf32, #tpu.memory_space<vmem>>, vector<1x128xf32>
    %328 = vector.broadcast %327 : vector<1x128xf32> to vector<64x128xf32>
    %329 = arith.addf %326, %328 : vector<64x128xf32>
    %cst_80 = arith.constant dense<0xFF800000> : vector<64xf32>
    %330 = vector.multi_reduction <maximumf>, %329, %cst_80 [1] : vector<64x128xf32> to vector<64xf32>
    %331 = vector.shape_cast %330 : vector<64xf32> to vector<64x1xf32>
    %332 = vector.broadcast %331 : vector<64x1xf32> to vector<64x128xf32>
    %333 = arith.subf %329, %332 : vector<64x128xf32>
    %334 = math.exp %333 : vector<64x128xf32>
    %cst_81 = arith.constant dense<0.000000e+00> : vector<64xf32>
    %335 = vector.multi_reduction <add>, %334, %cst_81 [1] : vector<64x128xf32> to vector<64xf32>
    %336 = vector.shape_cast %335 : vector<64xf32> to vector<64x1xf32>
    %337 = math.log %336 : vector<64x1xf32>
    %338 = vector.broadcast %337 : vector<64x1xf32> to vector<64x128xf32>
    %339 = arith.subf %333, %338 : vector<64x128xf32>
    %340 = vector.shape_cast %339 : vector<64x128xf32> to vector<8x8x128xf32>
    %c0_82 = arith.constant 0 : index
    %c0_83 = arith.constant 0 : index
    %c0_84 = arith.constant 0 : index
    %341 = vector.load %arg11[%c0_82, %c0_83, %c0_84] : memref<8x8x128xf32, #tpu.memory_space<vmem>>, vector<8x8x128xf32>
    tpu.vector_store %arg11[%c0_82, %c0_83, %c0_84], %340 {strides = array<i32>} : memref<8x8x128xf32, #tpu.memory_space<vmem>>, vector<8x8x128xf32>,
    return
  }
}

</mosaic_0001>

<llo_original>
// kernel: nocond_lstm_forward.1
$region0: #{nocond_lstm_forward.1}
  #allocation0 [shape = 'u32[]', space=smem, size = 0x4, offset = 0x4, fixed_abs, tag = 'smem constant byte address 0x4 - core index']
  #allocation1 [shape = 'u32[144,128]{1,0:T(1,128)}', space=vmem, size = 0x12000, scoped, tag = 'internal scratch']
  %s0 = inlined_call_operand.vmem [shape: f32[8,8,128], index: 0, kind: input, shape index: {}]
  %s1 = inlined_call_operand.vmem [shape: f32[32,128], index: 1, kind: input, shape index: {}]
  %s2 = inlined_call_operand.vmem [shape: f32[32,128], index: 2, kind: input, shape index: {}]
  %s3 = inlined_call_operand.vmem [shape: f32[32,128], index: 3, kind: input, shape index: {}]
  %s4 = inlined_call_operand.vmem [shape: f32[1,128], index: 4, kind: input, shape index: {}]
  %s5 = inlined_call_operand.vmem [shape: f32[32,128], index: 5, kind: input, shape index: {}]
  %s6 = inlined_call_operand.vmem [shape: f32[1,128], index: 6, kind: input, shape index: {}]
  %s7 = inlined_call_operand.vmem [shape: f32[8,1,128], index: 7, kind: input, shape index: {}]
  %s8 = inlined_call_operand.vmem [shape: f32[8,1,128], index: 8, kind: input, shape index: {}]
  %s9 = inlined_call_operand.vmem [shape: f32[128,128], index: 9, kind: input, shape index: {}]
  %s10 = inlined_call_operand.vmem [shape: f32[1,128], index: 10, kind: input, shape index: {}]
  %s11 = inlined_call_operand.vmem [shape: f32[8,8,128], index: 11, kind: output, shape index: {}]
  %s12 = sld [smem:[#allocation0]]
  $region54: #{nocond_lstm_forward.1} parent=0
    _
  %s14 = ssub.s32 1, %s12
  %s15 = scalar_select 0, %s14, %s12
  // Predicated region
  $region2: #{nocond_lstm_forward.1} parent=0 // pred_check
    _
  $region3: #{nocond_lstm_forward.1} parent=0 // pred_check_branch
    %17 = sbr.rel (0) target = $region5
  $region4: #{nocond_lstm_forward.1} parent=0 // pred_region
    _
  $region5: #{nocond_lstm_forward.1} parent=0 // pred_fallthru
    _
  // Predicated region
  $region6: #{nocond_lstm_forward.1} parent=0 // pred_check
    _
  $region7: #{nocond_lstm_forward.1} parent=0 // pred_check_branch
    %19 = sbr.rel (0) target = $region9
  $region8: #{nocond_lstm_forward.1} parent=0 // pred_region
    _
  $region9: #{nocond_lstm_forward.1} parent=0 // pred_fallthru
    _
  // Predicated region
  $region10: #{nocond_lstm_forward.1} parent=0 // pred_check
    _
  $region11: #{nocond_lstm_forward.1} parent=0 // pred_check_branch
    %21 = sbr.rel (0) target = $region13
  $region12: #{nocond_lstm_forward.1} parent=0 // pred_region
    _
  $region13: #{nocond_lstm_forward.1} parent=0 // pred_fallthru
    _
  // Predicated region
  $region14: #{nocond_lstm_forward.1} parent=0 // pred_check
    _
  $region15: #{nocond_lstm_forward.1} parent=0 // pred_check_branch
    %23 = sbr.rel (0) target = $region17
  $region16: #{nocond_lstm_forward.1} parent=0 // pred_region
    _
  $region17: #{nocond_lstm_forward.1} parent=0 // pred_fallthru
    _
  // Predicated region
  $region18: #{nocond_lstm_forward.1} parent=0 // pred_check
    _
  $region19: #{nocond_lstm_forward.1} parent=0 // pred_check_branch
    %25 = sbr.rel (0) target = $region21
  $region20: #{nocond_lstm_forward.1} parent=0 // pred_region
    _
  $region21: #{nocond_lstm_forward.1} parent=0 // pred_fallthru
    _
  // Predicated region
  $region22: #{nocond_lstm_forward.1} parent=0 // pred_check
    _
  $region23: #{nocond_lstm_forward.1} parent=0 // pred_check_branch
    %27 = sbr.rel (0) target = $region25
  $region24: #{nocond_lstm_forward.1} parent=0 // pred_region
    _
  $region25: #{nocond_lstm_forward.1} parent=0 // pred_fallthru
    _
  // Predicated region
  $region26: #{nocond_lstm_forward.1} parent=0 // pred_check
    _
  $region27: #{nocond_lstm_forward.1} parent=0 // pred_check_branch
    %29 = sbr.rel (0) target = $region29
  $region28: #{nocond_lstm_forward.1} parent=0 // pred_region
    _
  $region29: #{nocond_lstm_forward.1} parent=0 // pred_fallthru
    _
  // Predicated region
  $region30: #{nocond_lstm_forward.1} parent=0 // pred_check
    _
  $region31: #{nocond_lstm_forward.1} parent=0 // pred_check_branch
    %31 = sbr.rel (0) target = $region33
  $region32: #{nocond_lstm_forward.1} parent=0 // pred_region
    _
  $region33: #{nocond_lstm_forward.1} parent=0 // pred_fallthru
    _
  // Predicated region
  $region34: #{nocond_lstm_forward.1} parent=0 // pred_check
    _
  $region35: #{nocond_lstm_forward.1} parent=0 // pred_check_branch
    %33 = sbr.rel (0) target = $region37
  $region36: #{nocond_lstm_forward.1} parent=0 // pred_region
    _
  $region37: #{nocond_lstm_forward.1} parent=0 // pred_fallthru
    _
  // Predicated region
  $region38: #{nocond_lstm_forward.1} parent=0 // pred_check
    _
  $region39: #{nocond_lstm_forward.1} parent=0 // pred_check_branch
    %35 = sbr.rel (0) target = $region41
  $region40: #{nocond_lstm_forward.1} parent=0 // pred_region
    _
  $region41: #{nocond_lstm_forward.1} parent=0 // pred_fallthru
    _
  // Predicated region
  $region42: #{nocond_lstm_forward.1} parent=0 // pred_check
    _
  $region43: #{nocond_lstm_forward.1} parent=0 // pred_check_branch
    %37 = sbr.rel (0) target = $region45
  $region44: #{nocond_lstm_forward.1} parent=0 // pred_region
    _
  $region45: #{nocond_lstm_forward.1} parent=0 // pred_fallthru
    _
  %v38 = vld [vmem:[%s1] sm:$0xff]
  %v39 = vld [vmem:[%s1 + $0x8] sm:$0xff]
  %v40 = vld [vmem:[%s1 + $0x10] sm:$0xff]
  %v41 = vld [vmem:[%s1 + $0x18] sm:$0xff]
  %v42 = vld [vmem:[%s2] sm:$0xff]
  %v43 = vld [vmem:[%s2 + $0x8] sm:$0xff]
  %v44 = vld [vmem:[%s2 + $0x10] sm:$0xff]
  %v45 = vld [vmem:[%s2 + $0x18] sm:$0xff]
  %v46 = vld [vmem:[%s3] sm:$0xff]
  %v47 = vld [vmem:[%s3 + $0x8] sm:$0xff]
  %v48 = vld [vmem:[%s3 + $0x10] sm:$0xff]
  %v49 = vld [vmem:[%s3 + $0x18] sm:$0xff]
  %v50 = vld [vmem:[%s4] sm:$0x1]
  %v52 = vlaneseq
  %v53 = vshrl.u32 %v52, 7
  %v54 = vsub.s32 0, %v53
  %v55 = vrot.slane %v50, %v54
  %v57 = vld [vmem:[%s0] sm:$0xff]
  %vm58 = vcmask 261120
  %v60 = vsel %vm58, 0.0, 0
  %62 = vmatprep.subr.mxu0 0.0
  %63 = vmatpush1.msra.mxu0 0.0
  %64 = vmatprep.subr.mxu0 0.0
  %65 = vmatpush1.msra.mxu0 0.0
  %66 = vmatprep.subr.mxu0 0.0
  %67 = vmatpush1.msra.mxu0 0.0
  %68 = vmatprep.subr.mxu0 0.0
  %69 = vmatpush1.msra.mxu0 0.0
  %70 = vmatprep.subr.mxu0 0.0
  %71 = vmatpush1.msra.mxu0 0.0
  %72 = vmatprep.subr.mxu0 0.0
  %73 = vmatpush1.msra.mxu0 0.0
  %74 = vmatprep.subr.mxu0 0.0
  %75 = vmatpush1.msra.mxu0 0.0
  %76 = vmatprep.subr.mxu0 0.0
  %77 = vmatpush1.msra.mxu0 0.0
  %78 = vmatprep.subr.mxu0 0.0
  %79 = vmatpush1.msra.mxu0 0.0
  %80 = vmatprep.subr.mxu0 0.0
  %81 = vmatpush1.msra.mxu0 0.0
  %82 = vmatprep.subr.mxu0 0.0
  %83 = vmatpush1.msra.mxu0 0.0
  %84 = vmatprep.subr.mxu0 0.0
  %85 = vmatpush1.msra.mxu0 0.0
  %86 = vmatprep.subr.mxu0 0.0
  %87 = vmatpush1.msra.mxu0 %v41
  %88 = vmatprep.subr.mxu0 0.0
  %89 = vmatpush1.msra.mxu0 %v40
  %90 = vmatprep.subr.mxu0 0.0
  %91 = vmatpush1.msra.mxu0 %v39
  %92 = vmatprep.subr.mxu0 0.0
  %93 = vmatpush1.msra.mxu0 %v38
  %94 = vmatprep.subr.mxu0 0.0
  %95 = vmatpush2.msra.mxu0 0.0
  %96 = vmatprep.subr.mxu0 0.0
  %97 = vmatpush2.msra.mxu0 0.0
  %98 = vmatprep.subr.mxu0 0.0
  %99 = vmatpush2.msra.mxu0 0.0
  %100 = vmatprep.subr.mxu0 0.0
  %101 = vmatpush2.msra.mxu0 0.0
  %102 = vmatprep.subr.mxu0 0.0
  %103 = vmatpush2.msra.mxu0 0.0
  %104 = vmatprep.subr.mxu0 0.0
  %105 = vmatpush2.msra.mxu0 0.0
  %106 = vmatprep.subr.mxu0 0.0
  %107 = vmatpush2.msra.mxu0 0.0
  %108 = vmatprep.subr.mxu0 0.0
  %109 = vmatpush2.msra.mxu0 0.0
  %110 = vmatprep.subr.mxu0 0.0
  %111 = vmatpush2.msra.mxu0 0.0
  %112 = vmatprep.subr.mxu0 0.0
  %113 = vmatpush2.msra.mxu0 0.0
  %114 = vmatprep.subr.mxu0 0.0
  %115 = vmatpush2.msra.mxu0 0.0
  %116 = vmatprep.subr.mxu0 0.0
  %117 = vmatpush2.msra.mxu0 0.0
  %118 = vmatprep.subr.mxu0 0.0
  %119 = vmatpush2.msra.mxu0 0.0
  %120 = vmatprep.subr.mxu0 0.0
  %121 = vmatpush2.msra.mxu0 0.0
  %122 = vmatprep.subr.mxu0 0.0
  %123 = vmatpush2.msra.mxu0 0.0
  %124 = vmatprep.subr.mxu0 0.0
  %125 = vmatpush2.msra.mxu0 0.0
  %126 = vmatprep.mubr.f32.mxu0 0.0
  %127 = vmatmul.mubr.f32.gmra.mxu0 %v60
  %v128 = vpop.f32.mrf.mxu0
  %v129 = vadd.f32 0.0, %v128
  %v130 = vpop.f32.mrf.mxu0
  %131 = vdwg.mxu0
  %v132 = vadd.f32 %v57, %v129
  %v133 = vxor.u32 %v132, 2147483648
  %v134 = vmul.f32 %v133, 1.442695
  %v135 = vpow.pop %v134
  %v136 = vadd.f32 %v135, 1.0
  %v137 = vrcp.pop %v136
  %v138 = vmul.f32 1.0, %v137
  %v139 = vtanh.pop %v132
  %v140 = vmul.f32 %v138, 0.0
  %142 = vrot.lane.b32.xlu0 %v139, 64
  %v143 = vpop.permute.xlu0 %142
  %v145 = vmul.f32 %v138, %v143
  %147 = vrot.lane.b32.xlu0 %v145, 32
  %v148 = vpop.permute.xlu0 %147
  %v150 = vadd.f32 %v140, %v148
  %v151 = vtanh.pop %v150
  %153 = vrot.lane.b32.xlu0 %v151, 64
  %v154 = vpop.permute.xlu0 %153
  %v156 = vmul.f32 %v138, %v154
  %158 = vrot.lane.b32.xlu0 %v156, 32
  %v159 = vpop.permute.xlu0 %158
  %v160 = vsel %vm58, %v159, 0
  %162 = vmatprep.subr.mxu0 0.0
  %163 = vmatpush1.msra.mxu0 0.0
  %164 = vmatprep.subr.mxu0 0.0
  %165 = vmatpush1.msra.mxu0 0.0
  %166 = vmatprep.subr.mxu0 0.0
  %167 = vmatpush1.msra.mxu0 0.0
  %168 = vmatprep.subr.mxu0 0.0
  %169 = vmatpush1.msra.mxu0 0.0
  %170 = vmatprep.subr.mxu0 0.0
  %171 = vmatpush1.msra.mxu0 0.0
  %172 = vmatprep.subr.mxu0 0.0
  %173 = vmatpush1.msra.mxu0 0.0
  %174 = vmatprep.subr.mxu0 0.0
  %175 = vmatpush1.msra.mxu0 0.0
  %176 = vmatprep.subr.mxu0 0.0
  %177 = vmatpush1.msra.mxu0 0.0
  %178 = vmatprep.subr.mxu0 0.0
  %179 = vmatpush1.msra.mxu0 0.0
  %180 = vmatprep.subr.mxu0 0.0
  %181 = vmatpush1.msra.mxu0 0.0
  %182 = vmatprep.subr.mxu0 0.0
  %183 = vmatpush1.msra.mxu0 0.0
  %184 = vmatprep.subr.mxu0 0.0
  %185 = vmatpush1.msra.mxu0 0.0
  %186 = vmatprep.subr.mxu0 0.0
  %187 = vmatpush1.msra.mxu0 %v45
  %188 = vmatprep.subr.mxu0 0.0
  %189 = vmatpush1.msra.mxu0 %v44
  %190 = vmatprep.subr.mxu0 0.0
  %191 = vmatpush1.msra.mxu0 %v43
  %192 = vmatprep.subr.mxu0 0.0
  %193 = vmatpush1.msra.mxu0 %v42
  %194 = vmatprep.subr.mxu0 0.0
  %195 = vmatpush2.msra.mxu0 0.0
  %196 = vmatprep.subr.mxu0 0.0
  %197 = vmatpush2.msra.mxu0 0.0
  %198 = vmatprep.subr.mxu0 0.0
  %199 = vmatpush2.msra.mxu0 0.0
  %200 = vmatprep.subr.mxu0 0.0
  %201 = vmatpush2.msra.mxu0 0.0
  %202 = vmatprep.subr.mxu0 0.0
  %203 = vmatpush2.msra.mxu0 0.0
  %204 = vmatprep.subr.mxu0 0.0
  %205 = vmatpush2.msra.mxu0 0.0
  %206 = vmatprep.subr.mxu0 0.0
  %207 = vmatpush2.msra.mxu0 0.0
  %208 = vmatprep.subr.mxu0 0.0
  %209 = vmatpush2.msra.mxu0 0.0
  %210 = vmatprep.subr.mxu0 0.0
  %211 = vmatpush2.msra.mxu0 0.0
  %212 = vmatprep.subr.mxu0 0.0
  %213 = vmatpush2.msra.mxu0 0.0
  %214 = vmatprep.subr.mxu0 0.0
  %215 = vmatpush2.msra.mxu0 0.0
  %216 = vmatprep.subr.mxu0 0.0
  %217 = vmatpush2.msra.mxu0 0.0
  %218 = vmatprep.subr.mxu0 0.0
  %219 = vmatpush2.msra.mxu0 0.0
  %220 = vmatprep.subr.mxu0 0.0
  %221 = vmatpush2.msra.mxu0 0.0
  %222 = vmatprep.subr.mxu0 0.0
  %223 = vmatpush2.msra.mxu0 0.0
  %224 = vmatprep.subr.mxu0 0.0
  %225 = vmatpush2.msra.mxu0 0.0
  %226 = vmatprep.mubr.f32.mxu0 0.0
  %227 = vmatmul.mubr.f32.gmra.mxu0 %v160
  %v228 = vpop.f32.mrf.mxu0
  %v229 = vadd.f32 %v55, %v228
  %v230 = vpop.f32.mrf.mxu0
  %231 = vdwg.mxu0
  %v232 = vxor.u32 %v229, 2147483648
  %v233 = vmul.f32 %v232, 1.442695
  %v234 = vpow.pop %v233
  %v235 = vadd.f32 %v234, 1.0
  %v236 = vrcp.pop %v235
  %v237 = vmul.f32 1.0, %v236
  %v238 = vtanh.pop %v229
  %v239 = vmul.f32 %v237, 0.0
  %241 = vrot.lane.b32.xlu0 %v238, 64
  %v242 = vpop.permute.xlu0 %241
  %v244 = vmul.f32 %v237, %v242
  %246 = vrot.lane.b32.xlu0 %v244, 32
  %v247 = vpop.permute.xlu0 %246
  %v249 = vadd.f32 %v239, %v247
  %v250 = vtanh.pop %v249
  %252 = vrot.lane.b32.xlu0 %v250, 64
  %v253 = vpop.permute.xlu0 %252
  %v255 = vmul.f32 %v237, %v253
  %257 = vrot.lane.b32.xlu0 %v255, 32
  %v258 = vpop.permute.xlu0 %257
  %v259 = vsel %vm58, %v258, 0
  %261 = vmatprep.subr.mxu0 0.0
  %262 = vmatpush1.msra.mxu0 0.0
  %263 = vmatprep.subr.mxu0 0.0
  %264 = vmatpush1.msra.mxu0 0.0
  %265 = vmatprep.subr.mxu0 0.0
  %266 = vmatpush1.msra.mxu0 0.0
  %267 = vmatprep.subr.mxu0 0.0
  %268 = vmatpush1.msra.mxu0 0.0
  %269 = vmatprep.subr.mxu0 0.0
  %270 = vmatpush1.msra.mxu0 0.0
  %271 = vmatprep.subr.mxu0 0.0
  %272 = vmatpush1.msra.mxu0 0.0
  %273 = vmatprep.subr.mxu0 0.0
  %274 = vmatpush1.msra.mxu0 0.0
  %275 = vmatprep.subr.mxu0 0.0
  %276 = vmatpush1.msra.mxu0 0.0
  %277 = vmatprep.subr.mxu0 0.0
  %278 = vmatpush1.msra.mxu0 0.0
  %279 = vmatprep.subr.mxu0 0.0
  %280 = vmatpush1.msra.mxu0 0.0
  %281 = vmatprep.subr.mxu0 0.0
  %282 = vmatpush1.msra.mxu0 0.0
  %283 = vmatprep.subr.mxu0 0.0
  %284 = vmatpush1.msra.mxu0 0.0
  %285 = vmatprep.subr.mxu0 0.0
  %286 = vmatpush1.msra.mxu0 %v49
  %287 = vmatprep.subr.mxu0 0.0
  %288 = vmatpush1.msra.mxu0 %v48
  %289 = vmatprep.subr.mxu0 0.0
  %290 = vmatpush1.msra.mxu0 %v47
  %291 = vmatprep.subr.mxu0 0.0
  %292 = vmatpush1.msra.mxu0 %v46
  %293 = vmatprep.subr.mxu0 0.0
  %294 = vmatpush2.msra.mxu0 0.0
  %295 = vmatprep.subr.mxu0 0.0
  %296 = vmatpush2.msra.mxu0 0.0
  %297 = vmatprep.subr.mxu0 0.0
  %298 = vmatpush2.msra.mxu0 0.0
  %299 = vmatprep.subr.mxu0 0.0
  %300 = vmatpush2.msra.mxu0 0.0
  %301 = vmatprep.subr.mxu0 0.0
  %302 = vmatpush2.msra.mxu0 0.0
  %303 = vmatprep.subr.mxu0 0.0
  %304 = vmatpush2.msra.mxu0 0.0
  %305 = vmatprep.subr.mxu0 0.0
  %306 = vmatpush2.msra.mxu0 0.0
  %307 = vmatprep.subr.mxu0 0.0
  %308 = vmatpush2.msra.mxu0 0.0
  %309 = vmatprep.subr.mxu0 0.0
  %310 = vmatpush2.msra.mxu0 0.0
  %311 = vmatprep.subr.mxu0 0.0
  %312 = vmatpush2.msra.mxu0 0.0
  %313 = vmatprep.subr.mxu0 0.0
  %314 = vmatpush2.msra.mxu0 0.0
  %315 = vmatprep.subr.mxu0 0.0
  %316 = vmatpush2.msra.mxu0 0.0
  %317 = vmatprep.subr.mxu0 0.0
  %318 = vmatpush2.msra.mxu0 0.0
  %319 = vmatprep.subr.mxu0 0.0
  %320 = vmatpush2.msra.mxu0 0.0
  %321 = vmatprep.subr.mxu0 0.0
  %322 = vmatpush2.msra.mxu0 0.0
  %323 = vmatprep.subr.mxu0 0.0
  %324 = vmatpush2.msra.mxu0 0.0
  %325 = vmatprep.mubr.f32.mxu0 0.0
  %326 = vmatmul.mubr.f32.gmra.mxu0 %v259
  %v327 = vpop.f32.mrf.mxu0
  %v328 = vadd.f32 %v55, %v327
  %v329 = vpop.f32.mrf.mxu0
  %330 = vdwg.mxu0
  %s331 = scalar_lea.vmem %s0, 8
  %v332 = vld [vmem:[%s331] sm:$0xff]
  %333 = vmatprep.subr.mxu0 0.0
  %334 = vmatpush1.msra.mxu0 0.0
  %335 = vmatprep.subr.mxu0 0.0
  %336 = vmatpush1.msra.mxu0 0.0
  %337 = vmatprep.subr.mxu0 0.0
  %338 = vmatpush1.msra.mxu0 0.0
  %339 = vmatprep.subr.mxu0 0.0
  %340 = vmatpush1.msra.mxu0 0.0
  %341 = vmatprep.subr.mxu0 0.0
  %342 = vmatpush1.msra.mxu0 0.0
  %343 = vmatprep.subr.mxu0 0.0
  %344 = vmatpush1.msra.mxu0 0.0
  %345 = vmatprep.subr.mxu0 0.0
  %346 = vmatpush1.msra.mxu0 0.0
  %347 = vmatprep.subr.mxu0 0.0
  %348 = vmatpush1.msra.mxu0 0.0
  %349 = vmatprep.subr.mxu0 0.0
  %350 = vmatpush1.msra.mxu0 0.0
  %351 = vmatprep.subr.mxu0 0.0
  %352 = vmatpush1.msra.mxu0 0.0
  %353 = vmatprep.subr.mxu0 0.0
  %354 = vmatpush1.msra.mxu0 0.0
  %355 = vmatprep.subr.mxu0 0.0
  %356 = vmatpush1.msra.mxu0 0.0
  %357 = vmatprep.subr.mxu0 0.0
  %358 = vmatpush1.msra.mxu0 %v41
  %359 = vmatprep.subr.mxu0 0.0
  %360 = vmatpush1.msra.mxu0 %v40
  %361 = vmatprep.subr.mxu0 0.0
  %362 = vmatpush1.msra.mxu0 %v39
  %363 = vmatprep.subr.mxu0 0.0
  %364 = vmatpush1.msra.mxu0 %v38
  %365 = vmatprep.subr.mxu0 0.0
  %366 = vmatpush2.msra.mxu0 0.0
  %367 = vmatprep.subr.mxu0 0.0
  %368 = vmatpush2.msra.mxu0 0.0
  %369 = vmatprep.subr.mxu0 0.0
  %370 = vmatpush2.msra.mxu0 0.0
  %371 = vmatprep.subr.mxu0 0.0
  %372 = vmatpush2.msra.mxu0 0.0
  %373 = vmatprep.subr.mxu0 0.0
  %374 = vmatpush2.msra.mxu0 0.0
  %375 = vmatprep.subr.mxu0 0.0
  %376 = vmatpush2.msra.mxu0 0.0
  %377 = vmatprep.subr.mxu0 0.0
  %378 = vmatpush2.msra.mxu0 0.0
  %379 = vmatprep.subr.mxu0 0.0
  %380 = vmatpush2.msra.mxu0 0.0
  %381 = vmatprep.subr.mxu0 0.0
  %382 = vmatpush2.msra.mxu0 0.0
  %383 = vmatprep.subr.mxu0 0.0
  %384 = vmatpush2.msra.mxu0 0.0
  %385 = vmatprep.subr.mxu0 0.0
  %386 = vmatpush2.msra.mxu0 0.0
  %387 = vmatprep.subr.mxu0 0.0
  %388 = vmatpush2.msra.mxu0 0.0
  %389 = vmatprep.subr.mxu0 0.0
  %390 = vmatpush2.msra.mxu0 0.0
  %391 = vmatprep.subr.mxu0 0.0
  %392 = vmatpush2.msra.mxu0 0.0
  %393 = vmatprep.subr.mxu0 0.0
  %394 = vmatpush2.msra.mxu0 0.0
  %395 = vmatprep.subr.mxu0 0.0
  %396 = vmatpush2.msra.mxu0 0.0
  %397 = vmatprep.mubr.f32.mxu0 0.0
  %398 = vmatmul.mubr.f32.gmra.mxu0 %v160
  %v399 = vpop.f32.mrf.mxu0
  %v400 = vadd.f32 0.0, %v399
  %v401 = vpop.f32.mrf.mxu0
  %402 = vdwg.mxu0
  %v403 = vadd.f32 %v332, %v400
  %v404 = vxor.u32 %v403, 2147483648
  %v405 = vmul.f32 %v404, 1.442695
  %v406 = vpow.pop %v405
  %v407 = vadd.f32 %v406, 1.0
  %v408 = vrcp.pop %v407
  %v409 = vmul.f32 1.0, %v408
  %v410 = vtanh.pop %v403
  %v411 = vmul.f32 %v409, %v150
  %413 = vrot.lane.b32.xlu0 %v410, 64
  %v414 = vpop.permute.xlu0 %413
  %v416 = vmul.f32 %v409, %v414
  %418 = vrot.lane.b32.xlu0 %v416, 32
  %v419 = vpop.permute.xlu0 %418
  %v421 = vadd.f32 %v411, %v419
  %v422 = vtanh.pop %v421
  %424 = vrot.lane.b32.xlu0 %v422, 64
  %v425 = vpop.permute.xlu0 %424
  %v427 = vmul.f32 %v409, %v425
  %429 = vrot.lane.b32.xlu0 %v427, 32
  %v430 = vpop.permute.xlu0 %429
  %v431 = vsel %vm58, %v430, 0
  %433 = vmatprep.subr.mxu0 0.0
  %434 = vmatpush1.msra.mxu0 0.0
  %435 = vmatprep.subr.mxu0 0.0
  %436 = vmatpush1.msra.mxu0 0.0
  %437 = vmatprep.subr.mxu0 0.0
  %438 = vmatpush1.msra.mxu0 0.0
  %439 = vmatprep.subr.mxu0 0.0
  %440 = vmatpush1.msra.mxu0 0.0
  %441 = vmatprep.subr.mxu0 0.0
  %442 = vmatpush1.msra.mxu0 0.0
  %443 = vmatprep.subr.mxu0 0.0
  %444 = vmatpush1.msra.mxu0 0.0
  %445 = vmatprep.subr.mxu0 0.0
  %446 = vmatpush1.msra.mxu0 0.0
  %447 = vmatprep.subr.mxu0 0.0
  %448 = vmatpush1.msra.mxu0 0.0
  %449 = vmatprep.subr.mxu0 0.0
  %450 = vmatpush1.msra.mxu0 0.0
  %451 = vmatprep.subr.mxu0 0.0
  %452 = vmatpush1.msra.mxu0 0.0
  %453 = vmatprep.subr.mxu0 0.0
  %454 = vmatpush1.msra.mxu0 0.0
  %455 = vmatprep.subr.mxu0 0.0
  %456 = vmatpush1.msra.mxu0 0.0
  %457 = vmatprep.subr.mxu0 0.0
  %458 = vmatpush1.msra.mxu0 %v45
  %459 = vmatprep.subr.mxu0 0.0
  %460 = vmatpush1.msra.mxu0 %v44
  %461 = vmatprep.subr.mxu0 0.0
  %462 = vmatpush1.msra.mxu0 %v43
  %463 = vmatprep.subr.mxu0 0.0
  %464 = vmatpush1.msra.mxu0 %v42
  %465 = vmatprep.subr.mxu0 0.0
  %466 = vmatpush2.msra.mxu0 0.0
  %467 = vmatprep.subr.mxu0 0.0
  %468 = vmatpush2.msra.mxu0 0.0
  %469 = vmatprep.subr.mxu0 0.0
  %470 = vmatpush2.msra.mxu0 0.0
  %471 = vmatprep.subr.mxu0 0.0
  %472 = vmatpush2.msra.mxu0 0.0
  %473 = vmatprep.subr.mxu0 0.0
  %474 = vmatpush2.msra.mxu0 0.0
  %475 = vmatprep.subr.mxu0 0.0
  %476 = vmatpush2.msra.mxu0 0.0
  %477 = vmatprep.subr.mxu0 0.0
  %478 = vmatpush2.msra.mxu0 0.0
  %479 = vmatprep.subr.mxu0 0.0
  %480 = vmatpush2.msra.mxu0 0.0
  %481 = vmatprep.subr.mxu0 0.0
  %482 = vmatpush2.msra.mxu0 0.0
  %483 = vmatprep.subr.mxu0 0.0
  %484 = vmatpush2.msra.mxu0 0.0
  %485 = vmatprep.subr.mxu0 0.0
  %486 = vmatpush2.msra.mxu0 0.0
  %487 = vmatprep.subr.mxu0 0.0
  %488 = vmatpush2.msra.mxu0 0.0
  %489 = vmatprep.subr.mxu0 0.0
  %490 = vmatpush2.msra.mxu0 0.0
  %491 = vmatprep.subr.mxu0 0.0
  %492 = vmatpush2.msra.mxu0 0.0
  %493 = vmatprep.subr.mxu0 0.0
  %494 = vmatpush2.msra.mxu0 0.0
  %495 = vmatprep.subr.mxu0 0.0
  %496 = vmatpush2.msra.mxu0 0.0
  %497 = vmatprep.mubr.f32.mxu0 0.0
  %498 = vmatmul.mubr.f32.gmra.mxu0 %v431
  %v499 = vpop.f32.mrf.mxu0
  %v500 = vadd.f32 %v328, %v499
  %v501 = vpop.f32.mrf.mxu0
  %502 = vdwg.mxu0
  %v503 = vxor.u32 %v500, 2147483648
  %v504 = vmul.f32 %v503, 1.442695
  %v505 = vpow.pop %v504
  %v506 = vadd.f32 %v505, 1.0
  %v507 = vrcp.pop %v506
  %v508 = vmul.f32 1.0, %v507
  %v509 = vtanh.pop %v500
  %v510 = vmul.f32 %v508, %v249
  %512 = vrot.lane.b32.xlu0 %v509, 64
  %v513 = vpop.permute.xlu0 %512
  %v515 = vmul.f32 %v508, %v513
  %517 = vrot.lane.b32.xlu0 %v515, 32
  %v518 = vpop.permute.xlu0 %517
  %v520 = vadd.f32 %v510, %v518
  %v521 = vtanh.pop %v520
  %523 = vrot.lane.b32.xlu0 %v521, 64
  %v524 = vpop.permute.xlu0 %523
  %v526 = vmul.f32 %v508, %v524
  %528 = vrot.lane.b32.xlu0 %v526, 32
  %v529 = vpop.permute.xlu0 %528
  %v530 = vsel %vm58, %v529, 0
  %532 = vmatprep.subr.mxu0 0.0
  %533 = vmatpush1.msra.mxu0 0.0
  %534 = vmatprep.subr.mxu0 0.0
  %535 = vmatpush1.msra.mxu0 0.0
  %536 = vmatprep.subr.mxu0 0.0
  %537 = vmatpush1.msra.mxu0 0.0
  %538 = vmatprep.subr.mxu0 0.0
  %539 = vmatpush1.msra.mxu0 0.0
  %540 = vmatprep.subr.mxu0 0.0
  %541 = vmatpush1.msra.mxu0 0.0
  %542 = vmatprep.subr.mxu0 0.0
  %543 = vmatpush1.msra.mxu0 0.0
  %544 = vmatprep.subr.mxu0 0.0
  %545 = vmatpush1.msra.mxu0 0.0
  %546 = vmatprep.subr.mxu0 0.0
  %547 = vmatpush1.msra.mxu0 0.0
  %548 = vmatprep.subr.mxu0 0.0
  %549 = vmatpush1.msra.mxu0 0.0
  %550 = vmatprep.subr.mxu0 0.0
  %551 = vmatpush1.msra.mxu0 0.0
  %552 = vmatprep.subr.mxu0 0.0
  %553 = vmatpush1.msra.mxu0 0.0
  %554 = vmatprep.subr.mxu0 0.0
  %555 = vmatpush1.msra.mxu0 0.0
  %556 = vmatprep.subr.mxu0 0.0
  %557 = vmatpush1.msra.mxu0 %v49
  %558 = vmatprep.subr.mxu0 0.0
  %559 = vmatpush1.msra.mxu0 %v48
  %560 = vmatprep.subr.mxu0 0.0
  %561 = vmatpush1.msra.mxu0 %v47
  %562 = vmatprep.subr.mxu0 0.0
  %563 = vmatpush1.msra.mxu0 %v46
  %564 = vmatprep.subr.mxu0 0.0
  %565 = vmatpush2.msra.mxu0 0.0
  %566 = vmatprep.subr.mxu0 0.0
  %567 = vmatpush2.msra.mxu0 0.0
  %568 = vmatprep.subr.mxu0 0.0
  %569 = vmatpush2.msra.mxu0 0.0
  %570 = vmatprep.subr.mxu0 0.0
  %571 = vmatpush2.msra.mxu0 0.0
  %572 = vmatprep.subr.mxu0 0.0
  %573 = vmatpush2.msra.mxu0 0.0
  %574 = vmatprep.subr.mxu0 0.0
  %575 = vmatpush2.msra.mxu0 0.0
  %576 = vmatprep.subr.mxu0 0.0
  %577 = vmatpush2.msra.mxu0 0.0
  %578 = vmatprep.subr.mxu0 0.0
  %579 = vmatpush2.msra.mxu0 0.0
  %580 = vmatprep.subr.mxu0 0.0
  %581 = vmatpush2.msra.mxu0 0.0
  %582 = vmatprep.subr.mxu0 0.0
  %583 = vmatpush2.msra.mxu0 0.0
  %584 = vmatprep.subr.mxu0 0.0
  %585 = vmatpush2.msra.mxu0 0.0
  %586 = vmatprep.subr.mxu0 0.0
  %587 = vmatpush2.msra.mxu0 0.0
  %588 = vmatprep.subr.mxu0 0.0
  %589 = vmatpush2.msra.mxu0 0.0
  %590 = vmatprep.subr.mxu0 0.0
  %591 = vmatpush2.msra.mxu0 0.0
  %592 = vmatprep.subr.mxu0 0.0
  %593 = vmatpush2.msra.mxu0 0.0
  %594 = vmatprep.subr.mxu0 0.0
  %595 = vmatpush2.msra.mxu0 0.0
  %596 = vmatprep.mubr.f32.mxu0 0.0
  %597 = vmatmul.mubr.f32.gmra.mxu0 %v530
  %v598 = vpop.f32.mrf.mxu0
  %v599 = vadd.f32 %v55, %v598
  %v600 = vpop.f32.mrf.mxu0
  %601 = vdwg.mxu0
  %s602 = scalar_lea.vmem %s0, 16
  %v603 = vld [vmem:[%s602] sm:$0xff]
  %604 = vmatprep.subr.mxu0 0.0
  %605 = vmatpush1.msra.mxu0 0.0
  %606 = vmatprep.subr.mxu0 0.0
  %607 = vmatpush1.msra.mxu0 0.0
  %608 = vmatprep.subr.mxu0 0.0
  %609 = vmatpush1.msra.mxu0 0.0
  %610 = vmatprep.subr.mxu0 0.0
  %611 = vmatpush1.msra.mxu0 0.0
  %612 = vmatprep.subr.mxu0 0.0
  %613 = vmatpush1.msra.mxu0 0.0
  %614 = vmatprep.subr.mxu0 0.0
  %615 = vmatpush1.msra.mxu0 0.0
  %616 = vmatprep.subr.mxu0 0.0
  %617 = vmatpush1.msra.mxu0 0.0
  %618 = vmatprep.subr.mxu0 0.0
  %619 = vmatpush1.msra.mxu0 0.0
  %620 = vmatprep.subr.mxu0 0.0
  %621 = vmatpush1.msra.mxu0 0.0
  %622 = vmatprep.subr.mxu0 0.0
  %623 = vmatpush1.msra.mxu0 0.0
  %624 = vmatprep.subr.mxu0 0.0
  %625 = vmatpush1.msra.mxu0 0.0
  %626 = vmatprep.subr.mxu0 0.0
  %627 = vmatpush1.msra.mxu0 0.0
  %628 = vmatprep.subr.mxu0 0.0
  %629 = vmatpush1.msra.mxu0 %v41
  %630 = vmatprep.subr.mxu0 0.0
  %631 = vmatpush1.msra.mxu0 %v40
  %632 = vmatprep.subr.mxu0 0.0
  %633 = vmatpush1.msra.mxu0 %v39
  %634 = vmatprep.subr.mxu0 0.0
  %635 = vmatpush1.msra.mxu0 %v38
  %636 = vmatprep.subr.mxu0 0.0
  %637 = vmatpush2.msra.mxu0 0.0
  %638 = vmatprep.subr.mxu0 0.0
  %639 = vmatpush2.msra.mxu0 0.0
  %640 = vmatprep.subr.mxu0 0.0
  %641 = vmatpush2.msra.mxu0 0.0
  %642 = vmatprep.subr.mxu0 0.0
  %643 = vmatpush2.msra.mxu0 0.0
  %644 = vmatprep.subr.mxu0 0.0
  %645 = vmatpush2.msra.mxu0 0.0
  %646 = vmatprep.subr.mxu0 0.0
  %647 = vmatpush2.msra.mxu0 0.0
  %648 = vmatprep.subr.mxu0 0.0
  %649 = vmatpush2.msra.mxu0 0.0
  %650 = vmatprep.subr.mxu0 0.0
  %651 = vmatpush2.msra.mxu0 0.0
  %652 = vmatprep.subr.mxu0 0.0
  %653 = vmatpush2.msra.mxu0 0.0
  %654 = vmatprep.subr.mxu0 0.0
  %655 = vmatpush2.msra.mxu0 0.0
  %656 = vmatprep.subr.mxu0 0.0
  %657 = vmatpush2.msra.mxu0 0.0
  %658 = vmatprep.subr.mxu0 0.0
  %659 = vmatpush2.msra.mxu0 0.0
  %660 = vmatprep.subr.mxu0 0.0
  %661 = vmatpush2.msra.mxu0 0.0
  %662 = vmatprep.subr.mxu0 0.0
  %663 = vmatpush2.msra.mxu0 0.0
  %664 = vmatprep.subr.mxu0 0.0
  %665 = vmatpush2.msra.mxu0 0.0
  %666 = vmatprep.subr.mxu0 0.0
  %667 = vmatpush2.msra.mxu0 0.0
  %668 = vmatprep.mubr.f32.mxu0 0.0
  %669 = vmatmul.mubr.f32.gmra.mxu0 %v431
  %v670 = vpop.f32.mrf.mxu0
  %v671 = vadd.f32 0.0, %v670
  %v672 = vpop.f32.mrf.mxu0
  %673 = vdwg.mxu0
  %v674 = vadd.f32 %v603, %v671
  %v675 = vxor.u32 %v674, 2147483648
  %v676 = vmul.f32 %v675, 1.442695
  %v677 = vpow.pop %v676
  %v678 = vadd.f32 %v677, 1.0
  %v679 = vrcp.pop %v678
  %v680 = vmul.f32 1.0, %v679
  %v681 = vtanh.pop %v674
  %v682 = vmul.f32 %v680, %v421
  %684 = vrot.lane.b32.xlu0 %v681, 64
  %v685 = vpop.permute.xlu0 %684
  %v687 = vmul.f32 %v680, %v685
  %689 = vrot.lane.b32.xlu0 %v687, 32
  %v690 = vpop.permute.xlu0 %689
  %v692 = vadd.f32 %v682, %v690
  %v693 = vtanh.pop %v692
  %695 = vrot.lane.b32.xlu0 %v693, 64
  %v696 = vpop.permute.xlu0 %695
  %v698 = vmul.f32 %v680, %v696
  %700 = vrot.lane.b32.xlu0 %v698, 32
  %v701 = vpop.permute.xlu0 %700
  %v702 = vsel %vm58, %v701, 0
  %704 = vmatprep.subr.mxu0 0.0
  %705 = vmatpush1.msra.mxu0 0.0
  %706 = vmatprep.subr.mxu0 0.0
  %707 = vmatpush1.msra.mxu0 0.0
  %708 = vmatprep.subr.mxu0 0.0
  %709 = vmatpush1.msra.mxu0 0.0
  %710 = vmatprep.subr.mxu0 0.0
  %711 = vmatpush1.msra.mxu0 0.0
  %712 = vmatprep.subr.mxu0 0.0
  %713 = vmatpush1.msra.mxu0 0.0
  %714 = vmatprep.subr.mxu0 0.0
  %715 = vmatpush1.msra.mxu0 0.0
  %716 = vmatprep.subr.mxu0 0.0
  %717 = vmatpush1.msra.mxu0 0.0
  %718 = vmatprep.subr.mxu0 0.0
  %719 = vmatpush1.msra.mxu0 0.0
  %720 = vmatprep.subr.mxu0 0.0
  %721 = vmatpush1.msra.mxu0 0.0
  %722 = vmatprep.subr.mxu0 0.0
  %723 = vmatpush1.msra.mxu0 0.0
  %724 = vmatprep.subr.mxu0 0.0
  %725 = vmatpush1.msra.mxu0 0.0
  %726 = vmatprep.subr.mxu0 0.0
  %727 = vmatpush1.msra.mxu0 0.0
  %728 = vmatprep.subr.mxu0 0.0
  %729 = vmatpush1.msra.mxu0 %v45
  %730 = vmatprep.subr.mxu0 0.0
  %731 = vmatpush1.msra.mxu0 %v44
  %732 = vmatprep.subr.mxu0 0.0
  %733 = vmatpush1.msra.mxu0 %v43
  %734 = vmatprep.subr.mxu0 0.0
  %735 = vmatpush1.msra.mxu0 %v42
  %736 = vmatprep.subr.mxu0 0.0
  %737 = vmatpush2.msra.mxu0 0.0
  %738 = vmatprep.subr.mxu0 0.0
  %739 = vmatpush2.msra.mxu0 0.0
  %740 = vmatprep.subr.mxu0 0.0
  %741 = vmatpush2.msra.mxu0 0.0
  %742 = vmatprep.subr.mxu0 0.0
  %743 = vmatpush2.msra.mxu0 0.0
  %744 = vmatprep.subr.mxu0 0.0
  %745 = vmatpush2.msra.mxu0 0.0
  %746 = vmatprep.subr.mxu0 0.0
  %747 = vmatpush2.msra.mxu0 0.0
  %748 = vmatprep.subr.mxu0 0.0
  %749 = vmatpush2.msra.mxu0 0.0
  %750 = vmatprep.subr.mxu0 0.0
  %751 = vmatpush2.msra.mxu0 0.0
  %752 = vmatprep.subr.mxu0 0.0
  %753 = vmatpush2.msra.mxu0 0.0
  %754 = vmatprep.subr.mxu0 0.0
  %755 = vmatpush2.msra.mxu0 0.0
  %756 = vmatprep.subr.mxu0 0.0
  %757 = vmatpush2.msra.mxu0 0.0
  %758 = vmatprep.subr.mxu0 0.0
  %759 = vmatpush2.msra.mxu0 0.0
  %760 = vmatprep.subr.mxu0 0.0
  %761 = vmatpush2.msra.mxu0 0.0
  %762 = vmatprep.subr.mxu0 0.0
  %763 = vmatpush2.msra.mxu0 0.0
  %764 = vmatprep.subr.mxu0 0.0
  %765 = vmatpush2.msra.mxu0 0.0
  %766 = vmatprep.subr.mxu0 0.0
  %767 = vmatpush2.msra.mxu0 0.0
  %768 = vmatprep.mubr.f32.mxu0 0.0
  %769 = vmatmul.mubr.f32.gmra.mxu0 %v702
  %v770 = vpop.f32.mrf.mxu0
  %v771 = vadd.f32 %v599, %v770
  %v772 = vpop.f32.mrf.mxu0
  %773 = vdwg.mxu0
  %v774 = vxor.u32 %v771, 2147483648
  %v775 = vmul.f32 %v774, 1.442695
  %v776 = vpow.pop %v775
  %v777 = vadd.f32 %v776, 1.0
  %v778 = vrcp.pop %v777
  %v779 = vmul.f32 1.0, %v778
  %v780 = vtanh.pop %v771
  %v781 = vmul.f32 %v779, %v520
  %783 = vrot.lane.b32.xlu0 %v780, 64
  %v784 = vpop.permute.xlu0 %783
  %v786 = vmul.f32 %v779, %v784
  %788 = vrot.lane.b32.xlu0 %v786, 32
  %v789 = vpop.permute.xlu0 %788
  %v791 = vadd.f32 %v781, %v789
  %v792 = vtanh.pop %v791
  %794 = vrot.lane.b32.xlu0 %v792, 64
  %v795 = vpop.permute.xlu0 %794
  %v797 = vmul.f32 %v779, %v795
  %799 = vrot.lane.b32.xlu0 %v797, 32
  %v800 = vpop.permute.xlu0 %799
  %v801 = vsel %vm58, %v800, 0
  %803 = vmatprep.subr.mxu0 0.0
  %804 = vmatpush1.msra.mxu0 0.0
  %805 = vmatprep.subr.mxu0 0.0
  %806 = vmatpush1.msra.mxu0 0.0
  %807 = vmatprep.subr.mxu0 0.0
  %808 = vmatpush1.msra.mxu0 0.0
  %809 = vmatprep.subr.mxu0 0.0
  %810 = vmatpush1.msra.mxu0 0.0
  %811 = vmatprep.subr.mxu0 0.0
  %812 = vmatpush1.msra.mxu0 0.0
  %813 = vmatprep.subr.mxu0 0.0
  %814 = vmatpush1.msra.mxu0 0.0
  %815 = vmatprep.subr.mxu0 0.0
  %816 = vmatpush1.msra.mxu0 0.0
  %817 = vmatprep.subr.mxu0 0.0
  %818 = vmatpush1.msra.mxu0 0.0
  %819 = vmatprep.subr.mxu0 0.0
  %820 = vmatpush1.msra.mxu0 0.0
  %821 = vmatprep.subr.mxu0 0.0
  %822 = vmatpush1.msra.mxu0 0.0
  %823 = vmatprep.subr.mxu0 0.0
  %824 = vmatpush1.msra.mxu0 0.0
  %825 = vmatprep.subr.mxu0 0.0
  %826 = vmatpush1.msra.mxu0 0.0
  %827 = vmatprep.subr.mxu0 0.0
  %828 = vmatpush1.msra.mxu0 %v49
  %829 = vmatprep.subr.mxu0 0.0
  %830 = vmatpush1.msra.mxu0 %v48
  %831 = vmatprep.subr.mxu0 0.0
  %832 = vmatpush1.msra.mxu0 %v47
  %833 = vmatprep.subr.mxu0 0.0
  %834 = vmatpush1.msra.mxu0 %v46
  %835 = vmatprep.subr.mxu0 0.0
  %836 = vmatpush2.msra.mxu0 0.0
  %837 = vmatprep.subr.mxu0 0.0
  %838 = vmatpush2.msra.mxu0 0.0
  %839 = vmatprep.subr.mxu0 0.0
  %840 = vmatpush2.msra.mxu0 0.0
  %841 = vmatprep.subr.mxu0 0.0
  %842 = vmatpush2.msra.mxu0 0.0
  %843 = vmatprep.subr.mxu0 0.0
  %844 = vmatpush2.msra.mxu0 0.0
  %845 = vmatprep.subr.mxu0 0.0
  %846 = vmatpush2.msra.mxu0 0.0
  %847 = vmatprep.subr.mxu0 0.0
  %848 = vmatpush2.msra.mxu0 0.0
  %849 = vmatprep.subr.mxu0 0.0
  %850 = vmatpush2.msra.mxu0 0.0
  %851 = vmatprep.subr.mxu0 0.0
  %852 = vmatpush2.msra.mxu0 0.0
  %853 = vmatprep.subr.mxu0 0.0
  %854 = vmatpush2.msra.mxu0 0.0
  %855 = vmatprep.subr.mxu0 0.0
  %856 = vmatpush2.msra.mxu0 0.0
  %857 = vmatprep.subr.mxu0 0.0
  %858 = vmatpush2.msra.mxu0 0.0
  %859 = vmatprep.subr.mxu0 0.0
  %860 = vmatpush2.msra.mxu0 0.0
  %861 = vmatprep.subr.mxu0 0.0
  %862 = vmatpush2.msra.mxu0 0.0
  %863 = vmatprep.subr.mxu0 0.0
  %864 = vmatpush2.msra.mxu0 0.0
  %865 = vmatprep.subr.mxu0 0.0
  %866 = vmatpush2.msra.mxu0 0.0
  %867 = vmatprep.mubr.f32.mxu0 0.0
  %868 = vmatmul.mubr.f32.gmra.mxu0 %v801
  %v869 = vpop.f32.mrf.mxu0
  %v870 = vadd.f32 %v55, %v869
  %v871 = vpop.f32.mrf.mxu0
  %872 = vdwg.mxu0
  %s873 = scalar_lea.vmem %s0, 24
  %v874 = vld [vmem:[%s873] sm:$0xff]
  %875 = vmatprep.subr.mxu0 0.0
  %876 = vmatpush1.msra.mxu0 0.0
  %877 = vmatprep.subr.mxu0 0.0
  %878 = vmatpush1.msra.mxu0 0.0
  %879 = vmatprep.subr.mxu0 0.0
  %880 = vmatpush1.msra.mxu0 0.0
  %881 = vmatprep.subr.mxu0 0.0
  %882 = vmatpush1.msra.mxu0 0.0
  %883 = vmatprep.subr.mxu0 0.0
  %884 = vmatpush1.msra.mxu0 0.0
  %885 = vmatprep.subr.mxu0 0.0
  %886 = vmatpush1.msra.mxu0 0.0
  %887 = vmatprep.subr.mxu0 0.0
  %888 = vmatpush1.msra.mxu0 0.0
  %889 = vmatprep.subr.mxu0 0.0
  %890 = vmatpush1.msra.mxu0 0.0
  %891 = vmatprep.subr.mxu0 0.0
  %892 = vmatpush1.msra.mxu0 0.0
  %893 = vmatprep.subr.mxu0 0.0
  %894 = vmatpush1.msra.mxu0 0.0
  %895 = vmatprep.subr.mxu0 0.0
  %896 = vmatpush1.msra.mxu0 0.0
  %897 = vmatprep.subr.mxu0 0.0
  %898 = vmatpush1.msra.mxu0 0.0
  %899 = vmatprep.subr.mxu0 0.0
  %900 = vmatpush1.msra.mxu0 %v41
  %901 = vmatprep.subr.mxu0 0.0
  %902 = vmatpush1.msra.mxu0 %v40
  %903 = vmatprep.subr.mxu0 0.0
  %904 = vmatpush1.msra.mxu0 %v39
  %905 = vmatprep.subr.mxu0 0.0
  %906 = vmatpush1.msra.mxu0 %v38
  %907 = vmatprep.subr.mxu0 0.0
  %908 = vmatpush2.msra.mxu0 0.0
  %909 = vmatprep.subr.mxu0 0.0
  %910 = vmatpush2.msra.mxu0 0.0
  %911 = vmatprep.subr.mxu0 0.0
  %912 = vmatpush2.msra.mxu0 0.0
  %913 = vmatprep.subr.mxu0 0.0
  %914 = vmatpush2.msra.mxu0 0.0
  %915 = vmatprep.subr.mxu0 0.0
  %916 = vmatpush2.msra.mxu0 0.0
  %917 = vmatprep.subr.mxu0 0.0
  %918 = vmatpush2.msra.mxu0 0.0
  %919 = vmatprep.subr.mxu0 0.0
  %920 = vmatpush2.msra.mxu0 0.0
  %921 = vmatprep.subr.mxu0 0.0
  %922 = vmatpush2.msra.mxu0 0.0
  %923 = vmatprep.subr.mxu0 0.0
  %924 = vmatpush2.msra.mxu0 0.0
  %925 = vmatprep.subr.mxu0 0.0
  %926 = vmatpush2.msra.mxu0 0.0
  %927 = vmatprep.subr.mxu0 0.0
  %928 = vmatpush2.msra.mxu0 0.0
  %929 = vmatprep.subr.mxu0 0.0
  %930 = vmatpush2.msra.mxu0 0.0
  %931 = vmatprep.subr.mxu0 0.0
  %932 = vmatpush2.msra.mxu0 0.0
  %933 = vmatprep.subr.mxu0 0.0
  %934 = vmatpush2.msra.mxu0 0.0
  %935 = vmatprep.subr.mxu0 0.0
  %936 = vmatpush2.msra.mxu0 0.0
  %937 = vmatprep.subr.mxu0 0.0
  %938 = vmatpush2.msra.mxu0 0.0
  %939 = vmatprep.mubr.f32.mxu0 0.0
  %940 = vmatmul.mubr.f32.gmra.mxu0 %v702
  %v941 = vpop.f32.mrf.mxu0
  %v942 = vadd.f32 0.0, %v941
  %v943 = vpop.f32.mrf.mxu0
  %944 = vdwg.mxu0
  %v945 = vadd.f32 %v874, %v942
  %v946 = vxor.u32 %v945, 2147483648
  %v947 = vmul.f32 %v946, 1.442695
  %v948 = vpow.pop %v947
  %v949 = vadd.f32 %v948, 1.0
  %v950 = vrcp.pop %v949
  %v951 = vmul.f32 1.0, %v950
  %v952 = vtanh.pop %v945
  %v953 = vmul.f32 %v951, %v692
  %955 = vrot.lane.b32.xlu0 %v952, 64
  %v956 = vpop.permute.xlu0 %955
  %v958 = vmul.f32 %v951, %v956
  %960 = vrot.lane.b32.xlu0 %v958, 32
  %v961 = vpop.permute.xlu0 %960
  %v963 = vadd.f32 %v953, %v961
  %v964 = vtanh.pop %v963
  %966 = vrot.lane.b32.xlu0 %v964, 64
  %v967 = vpop.permute.xlu0 %966
  %v969 = vmul.f32 %v951, %v967
  %971 = vrot.lane.b32.xlu0 %v969, 32
  %v972 = vpop.permute.xlu0 %971
  %v973 = vsel %vm58, %v972, 0
  %975 = vmatprep.subr.mxu0 0.0
  %976 = vmatpush1.msra.mxu0 0.0
  %977 = vmatprep.subr.mxu0 0.0
  %978 = vmatpush1.msra.mxu0 0.0
  %979 = vmatprep.subr.mxu0 0.0
  %980 = vmatpush1.msra.mxu0 0.0
  %981 = vmatprep.subr.mxu0 0.0
  %982 = vmatpush1.msra.mxu0 0.0
  %983 = vmatprep.subr.mxu0 0.0
  %984 = vmatpush1.msra.mxu0 0.0
  %985 = vmatprep.subr.mxu0 0.0
  %986 = vmatpush1.msra.mxu0 0.0
  %987 = vmatprep.subr.mxu0 0.0
  %988 = vmatpush1.msra.mxu0 0.0
  %989 = vmatprep.subr.mxu0 0.0
  %990 = vmatpush1.msra.mxu0 0.0
  %991 = vmatprep.subr.mxu0 0.0
  %992 = vmatpush1.msra.mxu0 0.0
  %993 = vmatprep.subr.mxu0 0.0
  %994 = vmatpush1.msra.mxu0 0.0
  %995 = vmatprep.subr.mxu0 0.0
  %996 = vmatpush1.msra.mxu0 0.0
  %997 = vmatprep.subr.mxu0 0.0
  %998 = vmatpush1.msra.mxu0 0.0
  %999 = vmatprep.subr.mxu0 0.0
  %1000 = vmatpush1.msra.mxu0 %v45
  %1001 = vmatprep.subr.mxu0 0.0
  %1002 = vmatpush1.msra.mxu0 %v44
  %1003 = vmatprep.subr.mxu0 0.0
  %1004 = vmatpush1.msra.mxu0 %v43
  %1005 = vmatprep.subr.mxu0 0.0
  %1006 = vmatpush1.msra.mxu0 %v42
  %1007 = vmatprep.subr.mxu0 0.0
  %1008 = vmatpush2.msra.mxu0 0.0
  %1009 = vmatprep.subr.mxu0 0.0
  %1010 = vmatpush2.msra.mxu0 0.0
  %1011 = vmatprep.subr.mxu0 0.0
  %1012 = vmatpush2.msra.mxu0 0.0
  %1013 = vmatprep.subr.mxu0 0.0
  %1014 = vmatpush2.msra.mxu0 0.0
  %1015 = vmatprep.subr.mxu0 0.0
  %1016 = vmatpush2.msra.mxu0 0.0
  %1017 = vmatprep.subr.mxu0 0.0
  %1018 = vmatpush2.msra.mxu0 0.0
  %1019 = vmatprep.subr.mxu0 0.0
  %1020 = vmatpush2.msra.mxu0 0.0
  %1021 = vmatprep.subr.mxu0 0.0
  %1022 = vmatpush2.msra.mxu0 0.0
  %1023 = vmatprep.subr.mxu0 0.0
  %1024 = vmatpush2.msra.mxu0 0.0
  %1025 = vmatprep.subr.mxu0 0.0
  %1026 = vmatpush2.msra.mxu0 0.0
  %1027 = vmatprep.subr.mxu0 0.0
  %1028 = vmatpush2.msra.mxu0 0.0
  %1029 = vmatprep.subr.mxu0 0.0
  %1030 = vmatpush2.msra.mxu0 0.0
  %1031 = vmatprep.subr.mxu0 0.0
  %1032 = vmatpush2.msra.mxu0 0.0
  %1033 = vmatprep.subr.mxu0 0.0
  %1034 = vmatpush2.msra.mxu0 0.0
  %1035 = vmatprep.subr.mxu0 0.0
  %1036 = vmatpush2.msra.mxu0 0.0
  %1037 = vmatprep.subr.mxu0 0.0
  %1038 = vmatpush2.msra.mxu0 0.0
  %1039 = vmatprep.mubr.f32.mxu0 0.0
  %1040 = vmatmul.mubr.f32.gmra.mxu0 %v973
  %v1041 = vpop.f32.mrf.mxu0
  %v1042 = vadd.f32 %v870, %v1041
  %v1043 = vpop.f32.mrf.mxu0
  %1044 = vdwg.mxu0
  %v1045 = vxor.u32 %v1042, 2147483648
  %v1046 = vmul.f32 %v1045, 1.442695
  %v1047 = vpow.pop %v1046
  %v1048 = vadd.f32 %v1047, 1.0
  %v1049 = vrcp.pop %v1048
  %v1050 = vmul.f32 1.0, %v1049
  %v1051 = vtanh.pop %v1042
  %v1052 = vmul.f32 %v1050, %v791
  %1054 = vrot.lane.b32.xlu0 %v1051, 64
  %v1055 = vpop.permute.xlu0 %1054
  %v1057 = vmul.f32 %v1050, %v1055
  %1059 = vrot.lane.b32.xlu0 %v1057, 32
  %v1060 = vpop.permute.xlu0 %1059
  %v1062 = vadd.f32 %v1052, %v1060
  %v1063 = vtanh.pop %v1062
  %1065 = vrot.lane.b32.xlu0 %v1063, 64
  %v1066 = vpop.permute.xlu0 %1065
  %v1068 = vmul.f32 %v1050, %v1066
  %1070 = vrot.lane.b32.xlu0 %v1068, 32
  %v1071 = vpop.permute.xlu0 %1070
  %v1072 = vsel %vm58, %v1071, 0
  %1074 = vmatprep.subr.mxu0 0.0
  %1075 = vmatpush1.msra.mxu0 0.0
  %1076 = vmatprep.subr.mxu0 0.0
  %1077 = vmatpush1.msra.mxu0 0.0
  %1078 = vmatprep.subr.mxu0 0.0
  %1079 = vmatpush1.msra.mxu0 0.0
  %1080 = vmatprep.subr.mxu0 0.0
  %1081 = vmatpush1.msra.mxu0 0.0
  %1082 = vmatprep.subr.mxu0 0.0
  %1083 = vmatpush1.msra.mxu0 0.0
  %1084 = vmatprep.subr.mxu0 0.0
  %1085 = vmatpush1.msra.mxu0 0.0
  %1086 = vmatprep.subr.mxu0 0.0
  %1087 = vmatpush1.msra.mxu0 0.0
  %1088 = vmatprep.subr.mxu0 0.0
  %1089 = vmatpush1.msra.mxu0 0.0
  %1090 = vmatprep.subr.mxu0 0.0
  %1091 = vmatpush1.msra.mxu0 0.0
  %1092 = vmatprep.subr.mxu0 0.0
  %1093 = vmatpush1.msra.mxu0 0.0
  %1094 = vmatprep.subr.mxu0 0.0
  %1095 = vmatpush1.msra.mxu0 0.0
  %1096 = vmatprep.subr.mxu0 0.0
  %1097 = vmatpush1.msra.mxu0 0.0
  %1098 = vmatprep.subr.mxu0 0.0
  %1099 = vmatpush1.msra.mxu0 %v49
  %1100 = vmatprep.subr.mxu0 0.0
  %1101 = vmatpush1.msra.mxu0 %v48
  %1102 = vmatprep.subr.mxu0 0.0
  %1103 = vmatpush1.msra.mxu0 %v47
  %1104 = vmatprep.subr.mxu0 0.0
  %1105 = vmatpush1.msra.mxu0 %v46
  %1106 = vmatprep.subr.mxu0 0.0
  %1107 = vmatpush2.msra.mxu0 0.0
  %1108 = vmatprep.subr.mxu0 0.0
  %1109 = vmatpush2.msra.mxu0 0.0
  %1110 = vmatprep.subr.mxu0 0.0
  %1111 = vmatpush2.msra.mxu0 0.0
  %1112 = vmatprep.subr.mxu0 0.0
  %1113 = vmatpush2.msra.mxu0 0.0
  %1114 = vmatprep.subr.mxu0 0.0
  %1115 = vmatpush2.msra.mxu0 0.0
  %1116 = vmatprep.subr.mxu0 0.0
  %1117 = vmatpush2.msra.mxu0 0.0
  %1118 = vmatprep.subr.mxu0 0.0
  %1119 = vmatpush2.msra.mxu0 0.0
  %1120 = vmatprep.subr.mxu0 0.0
  %1121 = vmatpush2.msra.mxu0 0.0
  %1122 = vmatprep.subr.mxu0 0.0
  %1123 = vmatpush2.msra.mxu0 0.0
  %1124 = vmatprep.subr.mxu0 0.0
  %1125 = vmatpush2.msra.mxu0 0.0
  %1126 = vmatprep.subr.mxu0 0.0
  %1127 = vmatpush2.msra.mxu0 0.0
  %1128 = vmatprep.subr.mxu0 0.0
  %1129 = vmatpush2.msra.mxu0 0.0
  %1130 = vmatprep.subr.mxu0 0.0
  %1131 = vmatpush2.msra.mxu0 0.0
  %1132 = vmatprep.subr.mxu0 0.0
  %1133 = vmatpush2.msra.mxu0 0.0
  %1134 = vmatprep.subr.mxu0 0.0
  %1135 = vmatpush2.msra.mxu0 0.0
  %1136 = vmatprep.subr.mxu0 0.0
  %1137 = vmatpush2.msra.mxu0 0.0
  %1138 = vmatprep.mubr.f32.mxu0 0.0
  %1139 = vmatmul.mubr.f32.gmra.mxu0 %v1072
  %v1140 = vpop.f32.mrf.mxu0
  %v1141 = vadd.f32 %v55, %v1140
  %v1142 = vpop.f32.mrf.mxu0
  %1143 = vdwg.mxu0
  %s1144 = scalar_lea.vmem %s0, 32
  %v1145 = vld [vmem:[%s1144] sm:$0xff]
  %1146 = vmatprep.subr.mxu0 0.0
  %1147 = vmatpush1.msra.mxu0 0.0
  %1148 = vmatprep.subr.mxu0 0.0
  %1149 = vmatpush1.msra.mxu0 0.0
  %1150 = vmatprep.subr.mxu0 0.0
  %1151 = vmatpush1.msra.mxu0 0.0
  %1152 = vmatprep.subr.mxu0 0.0
  %1153 = vmatpush1.msra.mxu0 0.0
  %1154 = vmatprep.subr.mxu0 0.0
  %1155 = vmatpush1.msra.mxu0 0.0
  %1156 = vmatprep.subr.mxu0 0.0
  %1157 = vmatpush1.msra.mxu0 0.0
  %1158 = vmatprep.subr.mxu0 0.0
  %1159 = vmatpush1.msra.mxu0 0.0
  %1160 = vmatprep.subr.mxu0 0.0
  %1161 = vmatpush1.msra.mxu0 0.0
  %1162 = vmatprep.subr.mxu0 0.0
  %1163 = vmatpush1.msra.mxu0 0.0
  %1164 = vmatprep.subr.mxu0 0.0
  %1165 = vmatpush1.msra.mxu0 0.0
  %1166 = vmatprep.subr.mxu0 0.0
  %1167 = vmatpush1.msra.mxu0 0.0
  %1168 = vmatprep.subr.mxu0 0.0
  %1169 = vmatpush1.msra.mxu0 0.0
  %1170 = vmatprep.subr.mxu0 0.0
  %1171 = vmatpush1.msra.mxu0 %v41
  %1172 = vmatprep.subr.mxu0 0.0
  %1173 = vmatpush1.msra.mxu0 %v40
  %1174 = vmatprep.subr.mxu0 0.0
  %1175 = vmatpush1.msra.mxu0 %v39
  %1176 = vmatprep.subr.mxu0 0.0
  %1177 = vmatpush1.msra.mxu0 %v38
  %1178 = vmatprep.subr.mxu0 0.0
  %1179 = vmatpush2.msra.mxu0 0.0
  %1180 = vmatprep.subr.mxu0 0.0
  %1181 = vmatpush2.msra.mxu0 0.0
  %1182 = vmatprep.subr.mxu0 0.0
  %1183 = vmatpush2.msra.mxu0 0.0
  %1184 = vmatprep.subr.mxu0 0.0
  %1185 = vmatpush2.msra.mxu0 0.0
  %1186 = vmatprep.subr.mxu0 0.0
  %1187 = vmatpush2.msra.mxu0 0.0
  %1188 = vmatprep.subr.mxu0 0.0
  %1189 = vmatpush2.msra.mxu0 0.0
  %1190 = vmatprep.subr.mxu0 0.0
  %1191 = vmatpush2.msra.mxu0 0.0
  %1192 = vmatprep.subr.mxu0 0.0
  %1193 = vmatpush2.msra.mxu0 0.0
  %1194 = vmatprep.subr.mxu0 0.0
  %1195 = vmatpush2.msra.mxu0 0.0
  %1196 = vmatprep.subr.mxu0 0.0
  %1197 = vmatpush2.msra.mxu0 0.0
  %1198 = vmatprep.subr.mxu0 0.0
  %1199 = vmatpush2.msra.mxu0 0.0
  %1200 = vmatprep.subr.mxu0 0.0
  %1201 = vmatpush2.msra.mxu0 0.0
  %1202 = vmatprep.subr.mxu0 0.0
  %1203 = vmatpush2.msra.mxu0 0.0
  %1204 = vmatprep.subr.mxu0 0.0
  %1205 = vmatpush2.msra.mxu0 0.0
  %1206 = vmatprep.subr.mxu0 0.0
  %1207 = vmatpush2.msra.mxu0 0.0
  %1208 = vmatprep.subr.mxu0 0.0
  %1209 = vmatpush2.msra.mxu0 0.0
  %1210 = vmatprep.mubr.f32.mxu0 0.0
  %1211 = vmatmul.mubr.f32.gmra.mxu0 %v973
  %v1212 = vpop.f32.mrf.mxu0
  %v1213 = vadd.f32 0.0, %v1212
  %v1214 = vpop.f32.mrf.mxu0
  %1215 = vdwg.mxu0
  %v1216 = vadd.f32 %v1145, %v1213
  %v1217 = vxor.u32 %v1216, 2147483648
  %v1218 = vmul.f32 %v1217, 1.442695
  %v1219 = vpow.pop %v1218
  %v1220 = vadd.f32 %v1219, 1.0
  %v1221 = vrcp.pop %v1220
  %v1222 = vmul.f32 1.0, %v1221
  %v1223 = vtanh.pop %v1216
  %v1224 = vmul.f32 %v1222, %v963
  %1226 = vrot.lane.b32.xlu0 %v1223, 64
  %v1227 = vpop.permute.xlu0 %1226
  %v1229 = vmul.f32 %v1222, %v1227
  %1231 = vrot.lane.b32.xlu0 %v1229, 32
  %v1232 = vpop.permute.xlu0 %1231
  %v1234 = vadd.f32 %v1224, %v1232
  %v1235 = vtanh.pop %v1234
  %1237 = vrot.lane.b32.xlu0 %v1235, 64
  %v1238 = vpop.permute.xlu0 %1237
  %v1240 = vmul.f32 %v1222, %v1238
  %1242 = vrot.lane.b32.xlu0 %v1240, 32
  %v1243 = vpop.permute.xlu0 %1242
  %v1244 = vsel %vm58, %v1243, 0
  %1246 = vmatprep.subr.mxu0 0.0
  %1247 = vmatpush1.msra.mxu0 0.0
  %1248 = vmatprep.subr.mxu0 0.0
  %1249 = vmatpush1.msra.mxu0 0.0
  %1250 = vmatprep.subr.mxu0 0.0
  %1251 = vmatpush1.msra.mxu0 0.0
  %1252 = vmatprep.subr.mxu0 0.0
  %1253 = vmatpush1.msra.mxu0 0.0
  %1254 = vmatprep.subr.mxu0 0.0
  %1255 = vmatpush1.msra.mxu0 0.0
  %1256 = vmatprep.subr.mxu0 0.0
  %1257 = vmatpush1.msra.mxu0 0.0
  %1258 = vmatprep.subr.mxu0 0.0
  %1259 = vmatpush1.msra.mxu0 0.0
  %1260 = vmatprep.subr.mxu0 0.0
  %1261 = vmatpush1.msra.mxu0 0.0
  %1262 = vmatprep.subr.mxu0 0.0
  %1263 = vmatpush1.msra.mxu0 0.0
  %1264 = vmatprep.subr.mxu0 0.0
  %1265 = vmatpush1.msra.mxu0 0.0
  %1266 = vmatprep.subr.mxu0 0.0
  %1267 = vmatpush1.msra.mxu0 0.0
  %1268 = vmatprep.subr.mxu0 0.0
  %1269 = vmatpush1.msra.mxu0 0.0
  %1270 = vmatprep.subr.mxu0 0.0
  %1271 = vmatpush1.msra.mxu0 %v45
  %1272 = vmatprep.subr.mxu0 0.0
  %1273 = vmatpush1.msra.mxu0 %v44
  %1274 = vmatprep.subr.mxu0 0.0
  %1275 = vmatpush1.msra.mxu0 %v43
  %1276 = vmatprep.subr.mxu0 0.0
  %1277 = vmatpush1.msra.mxu0 %v42
  %1278 = vmatprep.subr.mxu0 0.0
  %1279 = vmatpush2.msra.mxu0 0.0
  %1280 = vmatprep.subr.mxu0 0.0
  %1281 = vmatpush2.msra.mxu0 0.0
  %1282 = vmatprep.subr.mxu0 0.0
  %1283 = vmatpush2.msra.mxu0 0.0
  %1284 = vmatprep.subr.mxu0 0.0
  %1285 = vmatpush2.msra.mxu0 0.0
  %1286 = vmatprep.subr.mxu0 0.0
  %1287 = vmatpush2.msra.mxu0 0.0
  %1288 = vmatprep.subr.mxu0 0.0
  %1289 = vmatpush2.msra.mxu0 0.0
  %1290 = vmatprep.subr.mxu0 0.0
  %1291 = vmatpush2.msra.mxu0 0.0
  %1292 = vmatprep.subr.mxu0 0.0
  %1293 = vmatpush2.msra.mxu0 0.0
  %1294 = vmatprep.subr.mxu0 0.0
  %1295 = vmatpush2.msra.mxu0 0.0
  %1296 = vmatprep.subr.mxu0 0.0
  %1297 = vmatpush2.msra.mxu0 0.0
  %1298 = vmatprep.subr.mxu0 0.0
  %1299 = vmatpush2.msra.mxu0 0.0
  %1300 = vmatprep.subr.mxu0 0.0
  %1301 = vmatpush2.msra.mxu0 0.0
  %1302 = vmatprep.subr.mxu0 0.0
  %1303 = vmatpush2.msra.mxu0 0.0
  %1304 = vmatprep.subr.mxu0 0.0
  %1305 = vmatpush2.msra.mxu0 0.0
  %1306 = vmatprep.subr.mxu0 0.0
  %1307 = vmatpush2.msra.mxu0 0.0
  %1308 = vmatprep.subr.mxu0 0.0
  %1309 = vmatpush2.msra.mxu0 0.0
  %1310 = vmatprep.mubr.f32.mxu0 0.0
  %1311 = vmatmul.mubr.f32.gmra.mxu0 %v1244
  %v1312 = vpop.f32.mrf.mxu0
  %v1313 = vadd.f32 %v1141, %v1312
  %v1314 = vpop.f32.mrf.mxu0
  %1315 = vdwg.mxu0
  %v1316 = vxor.u32 %v1313, 2147483648
  %v1317 = vmul.f32 %v1316, 1.442695
  %v1318 = vpow.pop %v1317
  %v1319 = vadd.f32 %v1318, 1.0
  %v1320 = vrcp.pop %v1319
  %v1321 = vmul.f32 1.0, %v1320
  %v1322 = vtanh.pop %v1313
  %v1323 = vmul.f32 %v1321, %v1062
  %1325 = vrot.lane.b32.xlu0 %v1322, 64
  %v1326 = vpop.permute.xlu0 %1325
  %v1328 = vmul.f32 %v1321, %v1326
  %1330 = vrot.lane.b32.xlu0 %v1328, 32
  %v1331 = vpop.permute.xlu0 %1330
  %v1333 = vadd.f32 %v1323, %v1331
  %v1334 = vtanh.pop %v1333
  %1336 = vrot.lane.b32.xlu0 %v1334, 64
  %v1337 = vpop.permute.xlu0 %1336
  %v1339 = vmul.f32 %v1321, %v1337
  %1341 = vrot.lane.b32.xlu0 %v1339, 32
  %v1342 = vpop.permute.xlu0 %1341
  %v1343 = vsel %vm58, %v1342, 0
  %1345 = vmatprep.subr.mxu0 0.0
  %1346 = vmatpush1.msra.mxu0 0.0
  %1347 = vmatprep.subr.mxu0 0.0
  %1348 = vmatpush1.msra.mxu0 0.0
  %1349 = vmatprep.subr.mxu0 0.0
  %1350 = vmatpush1.msra.mxu0 0.0
  %1351 = vmatprep.subr.mxu0 0.0
  %1352 = vmatpush1.msra.mxu0 0.0
  %1353 = vmatprep.subr.mxu0 0.0
  %1354 = vmatpush1.msra.mxu0 0.0
  %1355 = vmatprep.subr.mxu0 0.0
  %1356 = vmatpush1.msra.mxu0 0.0
  %1357 = vmatprep.subr.mxu0 0.0
  %1358 = vmatpush1.msra.mxu0 0.0
  %1359 = vmatprep.subr.mxu0 0.0
  %1360 = vmatpush1.msra.mxu0 0.0
  %1361 = vmatprep.subr.mxu0 0.0
  %1362 = vmatpush1.msra.mxu0 0.0
  %1363 = vmatprep.subr.mxu0 0.0
  %1364 = vmatpush1.msra.mxu0 0.0
  %1365 = vmatprep.subr.mxu0 0.0
  %1366 = vmatpush1.msra.mxu0 0.0
  %1367 = vmatprep.subr.mxu0 0.0
  %1368 = vmatpush1.msra.mxu0 0.0
  %1369 = vmatprep.subr.mxu0 0.0
  %1370 = vmatpush1.msra.mxu0 %v49
  %1371 = vmatprep.subr.mxu0 0.0
  %1372 = vmatpush1.msra.mxu0 %v48
  %1373 = vmatprep.subr.mxu0 0.0
  %1374 = vmatpush1.msra.mxu0 %v47
  %1375 = vmatprep.subr.mxu0 0.0
  %1376 = vmatpush1.msra.mxu0 %v46
  %1377 = vmatprep.subr.mxu0 0.0
  %1378 = vmatpush2.msra.mxu0 0.0
  %1379 = vmatprep.subr.mxu0 0.0
  %1380 = vmatpush2.msra.mxu0 0.0
  %1381 = vmatprep.subr.mxu0 0.0
  %1382 = vmatpush2.msra.mxu0 0.0
  %1383 = vmatprep.subr.mxu0 0.0
  %1384 = vmatpush2.msra.mxu0 0.0
  %1385 = vmatprep.subr.mxu0 0.0
  %1386 = vmatpush2.msra.mxu0 0.0
  %1387 = vmatprep.subr.mxu0 0.0
  %1388 = vmatpush2.msra.mxu0 0.0
  %1389 = vmatprep.subr.mxu0 0.0
  %1390 = vmatpush2.msra.mxu0 0.0
  %1391 = vmatprep.subr.mxu0 0.0
  %1392 = vmatpush2.msra.mxu0 0.0
  %1393 = vmatprep.subr.mxu0 0.0
  %1394 = vmatpush2.msra.mxu0 0.0
  %1395 = vmatprep.subr.mxu0 0.0
  %1396 = vmatpush2.msra.mxu0 0.0
  %1397 = vmatprep.subr.mxu0 0.0
  %1398 = vmatpush2.msra.mxu0 0.0
  %1399 = vmatprep.subr.mxu0 0.0
  %1400 = vmatpush2.msra.mxu0 0.0
  %1401 = vmatprep.subr.mxu0 0.0
  %1402 = vmatpush2.msra.mxu0 0.0
  %1403 = vmatprep.subr.mxu0 0.0
  %1404 = vmatpush2.msra.mxu0 0.0
  %1405 = vmatprep.subr.mxu0 0.0
  %1406 = vmatpush2.msra.mxu0 0.0
  %1407 = vmatprep.subr.mxu0 0.0
  %1408 = vmatpush2.msra.mxu0 0.0
  %1409 = vmatprep.mubr.f32.mxu0 0.0
  %1410 = vmatmul.mubr.f32.gmra.mxu0 %v1343
  %v1411 = vpop.f32.mrf.mxu0
  %v1412 = vadd.f32 %v55, %v1411
  %v1413 = vpop.f32.mrf.mxu0
  %1414 = vdwg.mxu0
  %s1415 = scalar_lea.vmem %s0, 40
  %v1416 = vld [vmem:[%s1415] sm:$0xff]
  %1417 = vmatprep.subr.mxu0 0.0
  %1418 = vmatpush1.msra.mxu0 0.0
  %1419 = vmatprep.subr.mxu0 0.0
  %1420 = vmatpush1.msra.mxu0 0.0
  %1421 = vmatprep.subr.mxu0 0.0
  %1422 = vmatpush1.msra.mxu0 0.0
  %1423 = vmatprep.subr.mxu0 0.0
  %1424 = vmatpush1.msra.mxu0 0.0
  %1425 = vmatprep.subr.mxu0 0.0
  %1426 = vmatpush1.msra.mxu0 0.0
  %1427 = vmatprep.subr.mxu0 0.0
  %1428 = vmatpush1.msra.mxu0 0.0
  %1429 = vmatprep.subr.mxu0 0.0
  %1430 = vmatpush1.msra.mxu0 0.0
  %1431 = vmatprep.subr.mxu0 0.0
  %1432 = vmatpush1.msra.mxu0 0.0
  %1433 = vmatprep.subr.mxu0 0.0
  %1434 = vmatpush1.msra.mxu0 0.0
  %1435 = vmatprep.subr.mxu0 0.0
  %1436 = vmatpush1.msra.mxu0 0.0
  %1437 = vmatprep.subr.mxu0 0.0
  %1438 = vmatpush1.msra.mxu0 0.0
  %1439 = vmatprep.subr.mxu0 0.0
  %1440 = vmatpush1.msra.mxu0 0.0
  %1441 = vmatprep.subr.mxu0 0.0
  %1442 = vmatpush1.msra.mxu0 %v41
  %1443 = vmatprep.subr.mxu0 0.0
  %1444 = vmatpush1.msra.mxu0 %v40
  %1445 = vmatprep.subr.mxu0 0.0
  %1446 = vmatpush1.msra.mxu0 %v39
  %1447 = vmatprep.subr.mxu0 0.0
  %1448 = vmatpush1.msra.mxu0 %v38
  %1449 = vmatprep.subr.mxu0 0.0
  %1450 = vmatpush2.msra.mxu0 0.0
  %1451 = vmatprep.subr.mxu0 0.0
  %1452 = vmatpush2.msra.mxu0 0.0
  %1453 = vmatprep.subr.mxu0 0.0
  %1454 = vmatpush2.msra.mxu0 0.0
  %1455 = vmatprep.subr.mxu0 0.0
  %1456 = vmatpush2.msra.mxu0 0.0
  %1457 = vmatprep.subr.mxu0 0.0
  %1458 = vmatpush2.msra.mxu0 0.0
  %1459 = vmatprep.subr.mxu0 0.0
  %1460 = vmatpush2.msra.mxu0 0.0
  %1461 = vmatprep.subr.mxu0 0.0
  %1462 = vmatpush2.msra.mxu0 0.0
  %1463 = vmatprep.subr.mxu0 0.0
  %1464 = vmatpush2.msra.mxu0 0.0
  %1465 = vmatprep.subr.mxu0 0.0
  %1466 = vmatpush2.msra.mxu0 0.0
  %1467 = vmatprep.subr.mxu0 0.0
  %1468 = vmatpush2.msra.mxu0 0.0
  %1469 = vmatprep.subr.mxu0 0.0
  %1470 = vmatpush2.msra.mxu0 0.0
  %1471 = vmatprep.subr.mxu0 0.0
  %1472 = vmatpush2.msra.mxu0 0.0
  %1473 = vmatprep.subr.mxu0 0.0
  %1474 = vmatpush2.msra.mxu0 0.0
  %1475 = vmatprep.subr.mxu0 0.0
  %1476 = vmatpush2.msra.mxu0 0.0
  %1477 = vmatprep.subr.mxu0 0.0
  %1478 = vmatpush2.msra.mxu0 0.0
  %1479 = vmatprep.subr.mxu0 0.0
  %1480 = vmatpush2.msra.mxu0 0.0
  %1481 = vmatprep.mubr.f32.mxu0 0.0
  %1482 = vmatmul.mubr.f32.gmra.mxu0 %v1244
  %v1483 = vpop.f32.mrf.mxu0
  %v1484 = vadd.f32 0.0, %v1483
  %v1485 = vpop.f32.mrf.mxu0
  %1486 = vdwg.mxu0
  %v1487 = vadd.f32 %v1416, %v1484
  %v1488 = vxor.u32 %v1487, 2147483648
  %v1489 = vmul.f32 %v1488, 1.442695
  %v1490 = vpow.pop %v1489
  %v1491 = vadd.f32 %v1490, 1.0
  %v1492 = vrcp.pop %v1491
  %v1493 = vmul.f32 1.0, %v1492
  %v1494 = vtanh.pop %v1487
  %v1495 = vmul.f32 %v1493, %v1234
  %1497 = vrot.lane.b32.xlu0 %v1494, 64
  %v1498 = vpop.permute.xlu0 %1497
  %v1500 = vmul.f32 %v1493, %v1498
  %1502 = vrot.lane.b32.xlu0 %v1500, 32
  %v1503 = vpop.permute.xlu0 %1502
  %v1505 = vadd.f32 %v1495, %v1503
  %v1506 = vtanh.pop %v1505
  %1508 = vrot.lane.b32.xlu0 %v1506, 64
  %v1509 = vpop.permute.xlu0 %1508
  %v1511 = vmul.f32 %v1493, %v1509
  %1513 = vrot.lane.b32.xlu0 %v1511, 32
  %v1514 = vpop.permute.xlu0 %1513
  %v1515 = vsel %vm58, %v1514, 0
  %1517 = vmatprep.subr.mxu0 0.0
  %1518 = vmatpush1.msra.mxu0 0.0
  %1519 = vmatprep.subr.mxu0 0.0
  %1520 = vmatpush1.msra.mxu0 0.0
  %1521 = vmatprep.subr.mxu0 0.0
  %1522 = vmatpush1.msra.mxu0 0.0
  %1523 = vmatprep.subr.mxu0 0.0
  %1524 = vmatpush1.msra.mxu0 0.0
  %1525 = vmatprep.subr.mxu0 0.0
  %1526 = vmatpush1.msra.mxu0 0.0
  %1527 = vmatprep.subr.mxu0 0.0
  %1528 = vmatpush1.msra.mxu0 0.0
  %1529 = vmatprep.subr.mxu0 0.0
  %1530 = vmatpush1.msra.mxu0 0.0
  %1531 = vmatprep.subr.mxu0 0.0
  %1532 = vmatpush1.msra.mxu0 0.0
  %1533 = vmatprep.subr.mxu0 0.0
  %1534 = vmatpush1.msra.mxu0 0.0
  %1535 = vmatprep.subr.mxu0 0.0
  %1536 = vmatpush1.msra.mxu0 0.0
  %1537 = vmatprep.subr.mxu0 0.0
  %1538 = vmatpush1.msra.mxu0 0.0
  %1539 = vmatprep.subr.mxu0 0.0
  %1540 = vmatpush1.msra.mxu0 0.0
  %1541 = vmatprep.subr.mxu0 0.0
  %1542 = vmatpush1.msra.mxu0 %v45
  %1543 = vmatprep.subr.mxu0 0.0
  %1544 = vmatpush1.msra.mxu0 %v44
  %1545 = vmatprep.subr.mxu0 0.0
  %1546 = vmatpush1.msra.mxu0 %v43
  %1547 = vmatprep.subr.mxu0 0.0
  %1548 = vmatpush1.msra.mxu0 %v42
  %1549 = vmatprep.subr.mxu0 0.0
  %1550 = vmatpush2.msra.mxu0 0.0
  %1551 = vmatprep.subr.mxu0 0.0
  %1552 = vmatpush2.msra.mxu0 0.0
  %1553 = vmatprep.subr.mxu0 0.0
  %1554 = vmatpush2.msra.mxu0 0.0
  %1555 = vmatprep.subr.mxu0 0.0
  %1556 = vmatpush2.msra.mxu0 0.0
  %1557 = vmatprep.subr.mxu0 0.0
  %1558 = vmatpush2.msra.mxu0 0.0
  %1559 = vmatprep.subr.mxu0 0.0
  %1560 = vmatpush2.msra.mxu0 0.0
  %1561 = vmatprep.subr.mxu0 0.0
  %1562 = vmatpush2.msra.mxu0 0.0
  %1563 = vmatprep.subr.mxu0 0.0
  %1564 = vmatpush2.msra.mxu0 0.0
  %1565 = vmatprep.subr.mxu0 0.0
  %1566 = vmatpush2.msra.mxu0 0.0
  %1567 = vmatprep.subr.mxu0 0.0
  %1568 = vmatpush2.msra.mxu0 0.0
  %1569 = vmatprep.subr.mxu0 0.0
  %1570 = vmatpush2.msra.mxu0 0.0
  %1571 = vmatprep.subr.mxu0 0.0
  %1572 = vmatpush2.msra.mxu0 0.0
  %1573 = vmatprep.subr.mxu0 0.0
  %1574 = vmatpush2.msra.mxu0 0.0
  %1575 = vmatprep.subr.mxu0 0.0
  %1576 = vmatpush2.msra.mxu0 0.0
  %1577 = vmatprep.subr.mxu0 0.0
  %1578 = vmatpush2.msra.mxu0 0.0
  %1579 = vmatprep.subr.mxu0 0.0
  %1580 = vmatpush2.msra.mxu0 0.0
  %1581 = vmatprep.mubr.f32.mxu0 0.0
  %1582 = vmatmul.mubr.f32.gmra.mxu0 %v1515
  %v1583 = vpop.f32.mrf.mxu0
  %v1584 = vadd.f32 %v1412, %v1583
  %v1585 = vpop.f32.mrf.mxu0
  %1586 = vdwg.mxu0
  %v1587 = vxor.u32 %v1584, 2147483648
  %v1588 = vmul.f32 %v1587, 1.442695
  %v1589 = vpow.pop %v1588
  %v1590 = vadd.f32 %v1589, 1.0
  %v1591 = vrcp.pop %v1590
  %v1592 = vmul.f32 1.0, %v1591
  %v1593 = vtanh.pop %v1584
  %v1594 = vmul.f32 %v1592, %v1333
  %1596 = vrot.lane.b32.xlu0 %v1593, 64
  %v1597 = vpop.permute.xlu0 %1596
  %v1599 = vmul.f32 %v1592, %v1597
  %1601 = vrot.lane.b32.xlu0 %v1599, 32
  %v1602 = vpop.permute.xlu0 %1601
  %v1604 = vadd.f32 %v1594, %v1602
  %v1605 = vtanh.pop %v1604
  %1607 = vrot.lane.b32.xlu0 %v1605, 64
  %v1608 = vpop.permute.xlu0 %1607
  %v1610 = vmul.f32 %v1592, %v1608
  %1612 = vrot.lane.b32.xlu0 %v1610, 32
  %v1613 = vpop.permute.xlu0 %1612
  %v1614 = vsel %vm58, %v1613, 0
  %1616 = vmatprep.subr.mxu0 0.0
  %1617 = vmatpush1.msra.mxu0 0.0
  %1618 = vmatprep.subr.mxu0 0.0
  %1619 = vmatpush1.msra.mxu0 0.0
  %1620 = vmatprep.subr.mxu0 0.0
  %1621 = vmatpush1.msra.mxu0 0.0
  %1622 = vmatprep.subr.mxu0 0.0
  %1623 = vmatpush1.msra.mxu0 0.0
  %1624 = vmatprep.subr.mxu0 0.0
  %1625 = vmatpush1.msra.mxu0 0.0
  %1626 = vmatprep.subr.mxu0 0.0
  %1627 = vmatpush1.msra.mxu0 0.0
  %1628 = vmatprep.subr.mxu0 0.0
  %1629 = vmatpush1.msra.mxu0 0.0
  %1630 = vmatprep.subr.mxu0 0.0
  %1631 = vmatpush1.msra.mxu0 0.0
  %1632 = vmatprep.subr.mxu0 0.0
  %1633 = vmatpush1.msra.mxu0 0.0
  %1634 = vmatprep.subr.mxu0 0.0
  %1635 = vmatpush1.msra.mxu0 0.0
  %1636 = vmatprep.subr.mxu0 0.0
  %1637 = vmatpush1.msra.mxu0 0.0
  %1638 = vmatprep.subr.mxu0 0.0
  %1639 = vmatpush1.msra.mxu0 0.0
  %1640 = vmatprep.subr.mxu0 0.0
  %1641 = vmatpush1.msra.mxu0 %v49
  %1642 = vmatprep.subr.mxu0 0.0
  %1643 = vmatpush1.msra.mxu0 %v48
  %1644 = vmatprep.subr.mxu0 0.0
  %1645 = vmatpush1.msra.mxu0 %v47
  %1646 = vmatprep.subr.mxu0 0.0
  %1647 = vmatpush1.msra.mxu0 %v46
  %1648 = vmatprep.subr.mxu0 0.0
  %1649 = vmatpush2.msra.mxu0 0.0
  %1650 = vmatprep.subr.mxu0 0.0
  %1651 = vmatpush2.msra.mxu0 0.0
  %1652 = vmatprep.subr.mxu0 0.0
  %1653 = vmatpush2.msra.mxu0 0.0
  %1654 = vmatprep.subr.mxu0 0.0
  %1655 = vmatpush2.msra.mxu0 0.0
  %1656 = vmatprep.subr.mxu0 0.0
  %1657 = vmatpush2.msra.mxu0 0.0
  %1658 = vmatprep.subr.mxu0 0.0
  %1659 = vmatpush2.msra.mxu0 0.0
  %1660 = vmatprep.subr.mxu0 0.0
  %1661 = vmatpush2.msra.mxu0 0.0
  %1662 = vmatprep.subr.mxu0 0.0
  %1663 = vmatpush2.msra.mxu0 0.0
  %1664 = vmatprep.subr.mxu0 0.0
  %1665 = vmatpush2.msra.mxu0 0.0
  %1666 = vmatprep.subr.mxu0 0.0
  %1667 = vmatpush2.msra.mxu0 0.0
  %1668 = vmatprep.subr.mxu0 0.0
  %1669 = vmatpush2.msra.mxu0 0.0
  %1670 = vmatprep.subr.mxu0 0.0
  %1671 = vmatpush2.msra.mxu0 0.0
  %1672 = vmatprep.subr.mxu0 0.0
  %1673 = vmatpush2.msra.mxu0 0.0
  %1674 = vmatprep.subr.mxu0 0.0
  %1675 = vmatpush2.msra.mxu0 0.0
  %1676 = vmatprep.subr.mxu0 0.0
  %1677 = vmatpush2.msra.mxu0 0.0
  %1678 = vmatprep.subr.mxu0 0.0
  %1679 = vmatpush2.msra.mxu0 0.0
  %1680 = vmatprep.mubr.f32.mxu0 0.0
  %1681 = vmatmul.mubr.f32.gmra.mxu0 %v1614
  %v1682 = vpop.f32.mrf.mxu0
  %v1683 = vadd.f32 %v55, %v1682
  %v1684 = vpop.f32.mrf.mxu0
  %1685 = vdwg.mxu0
  %s1686 = scalar_lea.vmem %s0, 48
  %v1687 = vld [vmem:[%s1686] sm:$0xff]
  %1688 = vmatprep.subr.mxu0 0.0
  %1689 = vmatpush1.msra.mxu0 0.0
  %1690 = vmatprep.subr.mxu0 0.0
  %1691 = vmatpush1.msra.mxu0 0.0
  %1692 = vmatprep.subr.mxu0 0.0
  %1693 = vmatpush1.msra.mxu0 0.0
  %1694 = vmatprep.subr.mxu0 0.0
  %1695 = vmatpush1.msra.mxu0 0.0
  %1696 = vmatprep.subr.mxu0 0.0
  %1697 = vmatpush1.msra.mxu0 0.0
  %1698 = vmatprep.subr.mxu0 0.0
  %1699 = vmatpush1.msra.mxu0 0.0
  %1700 = vmatprep.subr.mxu0 0.0
  %1701 = vmatpush1.msra.mxu0 0.0
  %1702 = vmatprep.subr.mxu0 0.0
  %1703 = vmatpush1.msra.mxu0 0.0
  %1704 = vmatprep.subr.mxu0 0.0
  %1705 = vmatpush1.msra.mxu0 0.0
  %1706 = vmatprep.subr.mxu0 0.0
  %1707 = vmatpush1.msra.mxu0 0.0
  %1708 = vmatprep.subr.mxu0 0.0
  %1709 = vmatpush1.msra.mxu0 0.0
  %1710 = vmatprep.subr.mxu0 0.0
  %1711 = vmatpush1.msra.mxu0 0.0
  %1712 = vmatprep.subr.mxu0 0.0
  %1713 = vmatpush1.msra.mxu0 %v41
  %1714 = vmatprep.subr.mxu0 0.0
  %1715 = vmatpush1.msra.mxu0 %v40
  %1716 = vmatprep.subr.mxu0 0.0
  %1717 = vmatpush1.msra.mxu0 %v39
  %1718 = vmatprep.subr.mxu0 0.0
  %1719 = vmatpush1.msra.mxu0 %v38
  %1720 = vmatprep.subr.mxu0 0.0
  %1721 = vmatpush2.msra.mxu0 0.0
  %1722 = vmatprep.subr.mxu0 0.0
  %1723 = vmatpush2.msra.mxu0 0.0
  %1724 = vmatprep.subr.mxu0 0.0
  %1725 = vmatpush2.msra.mxu0 0.0
  %1726 = vmatprep.subr.mxu0 0.0
  %1727 = vmatpush2.msra.mxu0 0.0
  %1728 = vmatprep.subr.mxu0 0.0
  %1729 = vmatpush2.msra.mxu0 0.0
  %1730 = vmatprep.subr.mxu0 0.0
  %1731 = vmatpush2.msra.mxu0 0.0
  %1732 = vmatprep.subr.mxu0 0.0
  %1733 = vmatpush2.msra.mxu0 0.0
  %1734 = vmatprep.subr.mxu0 0.0
  %1735 = vmatpush2.msra.mxu0 0.0
  %1736 = vmatprep.subr.mxu0 0.0
  %1737 = vmatpush2.msra.mxu0 0.0
  %1738 = vmatprep.subr.mxu0 0.0
  %1739 = vmatpush2.msra.mxu0 0.0
  %1740 = vmatprep.subr.mxu0 0.0
  %1741 = vmatpush2.msra.mxu0 0.0
  %1742 = vmatprep.subr.mxu0 0.0
  %1743 = vmatpush2.msra.mxu0 0.0
  %1744 = vmatprep.subr.mxu0 0.0
  %1745 = vmatpush2.msra.mxu0 0.0
  %1746 = vmatprep.subr.mxu0 0.0
  %1747 = vmatpush2.msra.mxu0 0.0
  %1748 = vmatprep.subr.mxu0 0.0
  %1749 = vmatpush2.msra.mxu0 0.0
  %1750 = vmatprep.subr.mxu0 0.0
  %1751 = vmatpush2.msra.mxu0 0.0
  %1752 = vmatprep.mubr.f32.mxu0 0.0
  %1753 = vmatmul.mubr.f32.gmra.mxu0 %v1515
  %v1754 = vpop.f32.mrf.mxu0
  %v1755 = vadd.f32 0.0, %v1754
  %v1756 = vpop.f32.mrf.mxu0
  %1757 = vdwg.mxu0
  %v1758 = vadd.f32 %v1687, %v1755
  %v1759 = vxor.u32 %v1758, 2147483648
  %v1760 = vmul.f32 %v1759, 1.442695
  %v1761 = vpow.pop %v1760
  %v1762 = vadd.f32 %v1761, 1.0
  %v1763 = vrcp.pop %v1762
  %v1764 = vmul.f32 1.0, %v1763
  %v1765 = vtanh.pop %v1758
  %v1766 = vmul.f32 %v1764, %v1505
  %1768 = vrot.lane.b32.xlu0 %v1765, 64
  %v1769 = vpop.permute.xlu0 %1768
  %v1771 = vmul.f32 %v1764, %v1769
  %1773 = vrot.lane.b32.xlu0 %v1771, 32
  %v1774 = vpop.permute.xlu0 %1773
  %v1776 = vadd.f32 %v1766, %v1774
  %v1777 = vtanh.pop %v1776
  %1779 = vrot.lane.b32.xlu0 %v1777, 64
  %v1780 = vpop.permute.xlu0 %1779
  %v1782 = vmul.f32 %v1764, %v1780
  %1784 = vrot.lane.b32.xlu0 %v1782, 32
  %v1785 = vpop.permute.xlu0 %1784
  %v1786 = vsel %vm58, %v1785, 0
  %1788 = vmatprep.subr.mxu0 0.0
  %1789 = vmatpush1.msra.mxu0 0.0
  %1790 = vmatprep.subr.mxu0 0.0
  %1791 = vmatpush1.msra.mxu0 0.0
  %1792 = vmatprep.subr.mxu0 0.0
  %1793 = vmatpush1.msra.mxu0 0.0
  %1794 = vmatprep.subr.mxu0 0.0
  %1795 = vmatpush1.msra.mxu0 0.0
  %1796 = vmatprep.subr.mxu0 0.0
  %1797 = vmatpush1.msra.mxu0 0.0
  %1798 = vmatprep.subr.mxu0 0.0
  %1799 = vmatpush1.msra.mxu0 0.0
  %1800 = vmatprep.subr.mxu0 0.0
  %1801 = vmatpush1.msra.mxu0 0.0
  %1802 = vmatprep.subr.mxu0 0.0
  %1803 = vmatpush1.msra.mxu0 0.0
  %1804 = vmatprep.subr.mxu0 0.0
  %1805 = vmatpush1.msra.mxu0 0.0
  %1806 = vmatprep.subr.mxu0 0.0
  %1807 = vmatpush1.msra.mxu0 0.0
  %1808 = vmatprep.subr.mxu0 0.0
  %1809 = vmatpush1.msra.mxu0 0.0
  %1810 = vmatprep.subr.mxu0 0.0
  %1811 = vmatpush1.msra.mxu0 0.0
  %1812 = vmatprep.subr.mxu0 0.0
  %1813 = vmatpush1.msra.mxu0 %v45
  %1814 = vmatprep.subr.mxu0 0.0
  %1815 = vmatpush1.msra.mxu0 %v44
  %1816 = vmatprep.subr.mxu0 0.0
  %1817 = vmatpush1.msra.mxu0 %v43
  %1818 = vmatprep.subr.mxu0 0.0
  %1819 = vmatpush1.msra.mxu0 %v42
  %1820 = vmatprep.subr.mxu0 0.0
  %1821 = vmatpush2.msra.mxu0 0.0
  %1822 = vmatprep.subr.mxu0 0.0
  %1823 = vmatpush2.msra.mxu0 0.0
  %1824 = vmatprep.subr.mxu0 0.0
  %1825 = vmatpush2.msra.mxu0 0.0
  %1826 = vmatprep.subr.mxu0 0.0
  %1827 = vmatpush2.msra.mxu0 0.0
  %1828 = vmatprep.subr.mxu0 0.0
  %1829 = vmatpush2.msra.mxu0 0.0
  %1830 = vmatprep.subr.mxu0 0.0
  %1831 = vmatpush2.msra.mxu0 0.0
  %1832 = vmatprep.subr.mxu0 0.0
  %1833 = vmatpush2.msra.mxu0 0.0
  %1834 = vmatprep.subr.mxu0 0.0
  %1835 = vmatpush2.msra.mxu0 0.0
  %1836 = vmatprep.subr.mxu0 0.0
  %1837 = vmatpush2.msra.mxu0 0.0
  %1838 = vmatprep.subr.mxu0 0.0
  %1839 = vmatpush2.msra.mxu0 0.0
  %1840 = vmatprep.subr.mxu0 0.0
  %1841 = vmatpush2.msra.mxu0 0.0
  %1842 = vmatprep.subr.mxu0 0.0
  %1843 = vmatpush2.msra.mxu0 0.0
  %1844 = vmatprep.subr.mxu0 0.0
  %1845 = vmatpush2.msra.mxu0 0.0
  %1846 = vmatprep.subr.mxu0 0.0
  %1847 = vmatpush2.msra.mxu0 0.0
  %1848 = vmatprep.subr.mxu0 0.0
  %1849 = vmatpush2.msra.mxu0 0.0
  %1850 = vmatprep.subr.mxu0 0.0
  %1851 = vmatpush2.msra.mxu0 0.0
  %1852 = vmatprep.mubr.f32.mxu0 0.0
  %1853 = vmatmul.mubr.f32.gmra.mxu0 %v1786
  %v1854 = vpop.f32.mrf.mxu0
  %v1855 = vadd.f32 %v1683, %v1854
  %v1856 = vpop.f32.mrf.mxu0
  %1857 = vdwg.mxu0
  %v1858 = vxor.u32 %v1855, 2147483648
  %v1859 = vmul.f32 %v1858, 1.442695
  %v1860 = vpow.pop %v1859
  %v1861 = vadd.f32 %v1860, 1.0
  %v1862 = vrcp.pop %v1861
  %v1863 = vmul.f32 1.0, %v1862
  %v1864 = vtanh.pop %v1855
  %v1865 = vmul.f32 %v1863, %v1604
  %1867 = vrot.lane.b32.xlu0 %v1864, 64
  %v1868 = vpop.permute.xlu0 %1867
  %v1870 = vmul.f32 %v1863, %v1868
  %1872 = vrot.lane.b32.xlu0 %v1870, 32
  %v1873 = vpop.permute.xlu0 %1872
  %v1875 = vadd.f32 %v1865, %v1873
  %v1876 = vtanh.pop %v1875
  %1878 = vrot.lane.b32.xlu0 %v1876, 64
  %v1879 = vpop.permute.xlu0 %1878
  %v1881 = vmul.f32 %v1863, %v1879
  %1883 = vrot.lane.b32.xlu0 %v1881, 32
  %v1884 = vpop.permute.xlu0 %1883
  %v1885 = vsel %vm58, %v1884, 0
  %1887 = vmatprep.subr.mxu0 0.0
  %1888 = vmatpush1.msra.mxu0 0.0
  %1889 = vmatprep.subr.mxu0 0.0
  %1890 = vmatpush1.msra.mxu0 0.0
  %1891 = vmatprep.subr.mxu0 0.0
  %1892 = vmatpush1.msra.mxu0 0.0
  %1893 = vmatprep.subr.mxu0 0.0
  %1894 = vmatpush1.msra.mxu0 0.0
  %1895 = vmatprep.subr.mxu0 0.0
  %1896 = vmatpush1.msra.mxu0 0.0
  %1897 = vmatprep.subr.mxu0 0.0
  %1898 = vmatpush1.msra.mxu0 0.0
  %1899 = vmatprep.subr.mxu0 0.0
  %1900 = vmatpush1.msra.mxu0 0.0
  %1901 = vmatprep.subr.mxu0 0.0
  %1902 = vmatpush1.msra.mxu0 0.0
  %1903 = vmatprep.subr.mxu0 0.0
  %1904 = vmatpush1.msra.mxu0 0.0
  %1905 = vmatprep.subr.mxu0 0.0
  %1906 = vmatpush1.msra.mxu0 0.0
  %1907 = vmatprep.subr.mxu0 0.0
  %1908 = vmatpush1.msra.mxu0 0.0
  %1909 = vmatprep.subr.mxu0 0.0
  %1910 = vmatpush1.msra.mxu0 0.0
  %1911 = vmatprep.subr.mxu0 0.0
  %1912 = vmatpush1.msra.mxu0 %v49
  %1913 = vmatprep.subr.mxu0 0.0
  %1914 = vmatpush1.msra.mxu0 %v48
  %1915 = vmatprep.subr.mxu0 0.0
  %1916 = vmatpush1.msra.mxu0 %v47
  %1917 = vmatprep.subr.mxu0 0.0
  %1918 = vmatpush1.msra.mxu0 %v46
  %1919 = vmatprep.subr.mxu0 0.0
  %1920 = vmatpush2.msra.mxu0 0.0
  %1921 = vmatprep.subr.mxu0 0.0
  %1922 = vmatpush2.msra.mxu0 0.0
  %1923 = vmatprep.subr.mxu0 0.0
  %1924 = vmatpush2.msra.mxu0 0.0
  %1925 = vmatprep.subr.mxu0 0.0
  %1926 = vmatpush2.msra.mxu0 0.0
  %1927 = vmatprep.subr.mxu0 0.0
  %1928 = vmatpush2.msra.mxu0 0.0
  %1929 = vmatprep.subr.mxu0 0.0
  %1930 = vmatpush2.msra.mxu0 0.0
  %1931 = vmatprep.subr.mxu0 0.0
  %1932 = vmatpush2.msra.mxu0 0.0
  %1933 = vmatprep.subr.mxu0 0.0
  %1934 = vmatpush2.msra.mxu0 0.0
  %1935 = vmatprep.subr.mxu0 0.0
  %1936 = vmatpush2.msra.mxu0 0.0
  %1937 = vmatprep.subr.mxu0 0.0
  %1938 = vmatpush2.msra.mxu0 0.0
  %1939 = vmatprep.subr.mxu0 0.0
  %1940 = vmatpush2.msra.mxu0 0.0
  %1941 = vmatprep.subr.mxu0 0.0
  %1942 = vmatpush2.msra.mxu0 0.0
  %1943 = vmatprep.subr.mxu0 0.0
  %1944 = vmatpush2.msra.mxu0 0.0
  %1945 = vmatprep.subr.mxu0 0.0
  %1946 = vmatpush2.msra.mxu0 0.0
  %1947 = vmatprep.subr.mxu0 0.0
  %1948 = vmatpush2.msra.mxu0 0.0
  %1949 = vmatprep.subr.mxu0 0.0
  %1950 = vmatpush2.msra.mxu0 0.0
  %1951 = vmatprep.mubr.f32.mxu0 0.0
  %1952 = vmatmul.mubr.f32.gmra.mxu0 %v1885
  %v1953 = vpop.f32.mrf.mxu0
  %v1954 = vadd.f32 %v55, %v1953
  %v1955 = vpop.f32.mrf.mxu0
  %1956 = vdwg.mxu0
  %s1957 = scalar_lea.vmem %s0, 56
  %v1958 = vld [vmem:[%s1957] sm:$0xff]
  %1959 = vmatprep.subr.mxu0 0.0
  %1960 = vmatpush1.msra.mxu0 0.0
  %1961 = vmatprep.subr.mxu0 0.0
  %1962 = vmatpush1.msra.mxu0 0.0
  %1963 = vmatprep.subr.mxu0 0.0
  %1964 = vmatpush1.msra.mxu0 0.0
  %1965 = vmatprep.subr.mxu0 0.0
  %1966 = vmatpush1.msra.mxu0 0.0
  %1967 = vmatprep.subr.mxu0 0.0
  %1968 = vmatpush1.msra.mxu0 0.0
  %1969 = vmatprep.subr.mxu0 0.0
  %1970 = vmatpush1.msra.mxu0 0.0
  %1971 = vmatprep.subr.mxu0 0.0
  %1972 = vmatpush1.msra.mxu0 0.0
  %1973 = vmatprep.subr.mxu0 0.0
  %1974 = vmatpush1.msra.mxu0 0.0
  %1975 = vmatprep.subr.mxu0 0.0
  %1976 = vmatpush1.msra.mxu0 0.0
  %1977 = vmatprep.subr.mxu0 0.0
  %1978 = vmatpush1.msra.mxu0 0.0
  %1979 = vmatprep.subr.mxu0 0.0
  %1980 = vmatpush1.msra.mxu0 0.0
  %1981 = vmatprep.subr.mxu0 0.0
  %1982 = vmatpush1.msra.mxu0 0.0
  %1983 = vmatprep.subr.mxu0 0.0
  %1984 = vmatpush1.msra.mxu0 %v41
  %1985 = vmatprep.subr.mxu0 0.0
  %1986 = vmatpush1.msra.mxu0 %v40
  %1987 = vmatprep.subr.mxu0 0.0
  %1988 = vmatpush1.msra.mxu0 %v39
  %1989 = vmatprep.subr.mxu0 0.0
  %1990 = vmatpush1.msra.mxu0 %v38
  %1991 = vmatprep.subr.mxu0 0.0
  %1992 = vmatpush2.msra.mxu0 0.0
  %1993 = vmatprep.subr.mxu0 0.0
  %1994 = vmatpush2.msra.mxu0 0.0
  %1995 = vmatprep.subr.mxu0 0.0
  %1996 = vmatpush2.msra.mxu0 0.0
  %1997 = vmatprep.subr.mxu0 0.0
  %1998 = vmatpush2.msra.mxu0 0.0
  %1999 = vmatprep.subr.mxu0 0.0
  %2000 = vmatpush2.msra.mxu0 0.0
  %2001 = vmatprep.subr.mxu0 0.0
  %2002 = vmatpush2.msra.mxu0 0.0
  %2003 = vmatprep.subr.mxu0 0.0
  %2004 = vmatpush2.msra.mxu0 0.0
  %2005 = vmatprep.subr.mxu0 0.0
  %2006 = vmatpush2.msra.mxu0 0.0
  %2007 = vmatprep.subr.mxu0 0.0
  %2008 = vmatpush2.msra.mxu0 0.0
  %2009 = vmatprep.subr.mxu0 0.0
  %2010 = vmatpush2.msra.mxu0 0.0
  %2011 = vmatprep.subr.mxu0 0.0
  %2012 = vmatpush2.msra.mxu0 0.0
  %2013 = vmatprep.subr.mxu0 0.0
  %2014 = vmatpush2.msra.mxu0 0.0
  %2015 = vmatprep.subr.mxu0 0.0
  %2016 = vmatpush2.msra.mxu0 0.0
  %2017 = vmatprep.subr.mxu0 0.0
  %2018 = vmatpush2.msra.mxu0 0.0
  %2019 = vmatprep.subr.mxu0 0.0
  %2020 = vmatpush2.msra.mxu0 0.0
  %2021 = vmatprep.subr.mxu0 0.0
  %2022 = vmatpush2.msra.mxu0 0.0
  %2023 = vmatprep.mubr.f32.mxu0 0.0
  %2024 = vmatmul.mubr.f32.gmra.mxu0 %v1786
  %v2025 = vpop.f32.mrf.mxu0
  %v2026 = vadd.f32 0.0, %v2025
  %v2027 = vpop.f32.mrf.mxu0
  %2028 = vdwg.mxu0
  %v2029 = vadd.f32 %v1958, %v2026
  %v2030 = vxor.u32 %v2029, 2147483648
  %v2031 = vmul.f32 %v2030, 1.442695
  %v2032 = vpow.pop %v2031
  %v2033 = vadd.f32 %v2032, 1.0
  %v2034 = vrcp.pop %v2033
  %v2035 = vmul.f32 1.0, %v2034
  %v2036 = vtanh.pop %v2029
  %v2037 = vmul.f32 %v2035, %v1776
  %2039 = vrot.lane.b32.xlu0 %v2036, 64
  %v2040 = vpop.permute.xlu0 %2039
  %v2042 = vmul.f32 %v2035, %v2040
  %2044 = vrot.lane.b32.xlu0 %v2042, 32
  %v2045 = vpop.permute.xlu0 %2044
  %v2047 = vadd.f32 %v2037, %v2045
  %v2048 = vtanh.pop %v2047
  %2050 = vrot.lane.b32.xlu0 %v2048, 64
  %v2051 = vpop.permute.xlu0 %2050
  %v2053 = vmul.f32 %v2035, %v2051
  %2055 = vrot.lane.b32.xlu0 %v2053, 32
  %v2056 = vpop.permute.xlu0 %2055
  %v2057 = vsel %vm58, %v2056, 0
  %2059 = vmatprep.subr.mxu0 0.0
  %2060 = vmatpush1.msra.mxu0 0.0
  %2061 = vmatprep.subr.mxu0 0.0
  %2062 = vmatpush1.msra.mxu0 0.0
  %2063 = vmatprep.subr.mxu0 0.0
  %2064 = vmatpush1.msra.mxu0 0.0
  %2065 = vmatprep.subr.mxu0 0.0
  %2066 = vmatpush1.msra.mxu0 0.0
  %2067 = vmatprep.subr.mxu0 0.0
  %2068 = vmatpush1.msra.mxu0 0.0
  %2069 = vmatprep.subr.mxu0 0.0
  %2070 = vmatpush1.msra.mxu0 0.0
  %2071 = vmatprep.subr.mxu0 0.0
  %2072 = vmatpush1.msra.mxu0 0.0
  %2073 = vmatprep.subr.mxu0 0.0
  %2074 = vmatpush1.msra.mxu0 0.0
  %2075 = vmatprep.subr.mxu0 0.0
  %2076 = vmatpush1.msra.mxu0 0.0
  %2077 = vmatprep.subr.mxu0 0.0
  %2078 = vmatpush1.msra.mxu0 0.0
  %2079 = vmatprep.subr.mxu0 0.0
  %2080 = vmatpush1.msra.mxu0 0.0
  %2081 = vmatprep.subr.mxu0 0.0
  %2082 = vmatpush1.msra.mxu0 0.0
  %2083 = vmatprep.subr.mxu0 0.0
  %2084 = vmatpush1.msra.mxu0 %v45
  %2085 = vmatprep.subr.mxu0 0.0
  %2086 = vmatpush1.msra.mxu0 %v44
  %2087 = vmatprep.subr.mxu0 0.0
  %2088 = vmatpush1.msra.mxu0 %v43
  %2089 = vmatprep.subr.mxu0 0.0
  %2090 = vmatpush1.msra.mxu0 %v42
  %2091 = vmatprep.subr.mxu0 0.0
  %2092 = vmatpush2.msra.mxu0 0.0
  %2093 = vmatprep.subr.mxu0 0.0
  %2094 = vmatpush2.msra.mxu0 0.0
  %2095 = vmatprep.subr.mxu0 0.0
  %2096 = vmatpush2.msra.mxu0 0.0
  %2097 = vmatprep.subr.mxu0 0.0
  %2098 = vmatpush2.msra.mxu0 0.0
  %2099 = vmatprep.subr.mxu0 0.0
  %2100 = vmatpush2.msra.mxu0 0.0
  %2101 = vmatprep.subr.mxu0 0.0
  %2102 = vmatpush2.msra.mxu0 0.0
  %2103 = vmatprep.subr.mxu0 0.0
  %2104 = vmatpush2.msra.mxu0 0.0
  %2105 = vmatprep.subr.mxu0 0.0
  %2106 = vmatpush2.msra.mxu0 0.0
  %2107 = vmatprep.subr.mxu0 0.0
  %2108 = vmatpush2.msra.mxu0 0.0
  %2109 = vmatprep.subr.mxu0 0.0
  %2110 = vmatpush2.msra.mxu0 0.0
  %2111 = vmatprep.subr.mxu0 0.0
  %2112 = vmatpush2.msra.mxu0 0.0
  %2113 = vmatprep.subr.mxu0 0.0
  %2114 = vmatpush2.msra.mxu0 0.0
  %2115 = vmatprep.subr.mxu0 0.0
  %2116 = vmatpush2.msra.mxu0 0.0
  %2117 = vmatprep.subr.mxu0 0.0
  %2118 = vmatpush2.msra.mxu0 0.0
  %2119 = vmatprep.subr.mxu0 0.0
  %2120 = vmatpush2.msra.mxu0 0.0
  %2121 = vmatprep.subr.mxu0 0.0
  %2122 = vmatpush2.msra.mxu0 0.0
  %2123 = vmatprep.mubr.f32.mxu0 0.0
  %2124 = vmatmul.mubr.f32.gmra.mxu0 %v2057
  %v2125 = vpop.f32.mrf.mxu0
  %v2126 = vadd.f32 %v1954, %v2125
  %v2127 = vpop.f32.mrf.mxu0
  %2128 = vdwg.mxu0
  %v2129 = vxor.u32 %v2126, 2147483648
  %v2130 = vmul.f32 %v2129, 1.442695
  %v2131 = vpow.pop %v2130
  %v2132 = vadd.f32 %v2131, 1.0
  %v2133 = vrcp.pop %v2132
  %v2134 = vmul.f32 1.0, %v2133
  %v2135 = vtanh.pop %v2126
  %v2136 = vmul.f32 %v2134, %v1875
  %2138 = vrot.lane.b32.xlu0 %v2135, 64
  %v2139 = vpop.permute.xlu0 %2138
  %v2141 = vmul.f32 %v2134, %v2139
  %2143 = vrot.lane.b32.xlu0 %v2141, 32
  %v2144 = vpop.permute.xlu0 %2143
  %v2146 = vadd.f32 %v2136, %v2144
  %v2147 = vtanh.pop %v2146
  %2149 = vrot.lane.b32.xlu0 %v2147, 64
  %v2150 = vpop.permute.xlu0 %2149
  %v2152 = vmul.f32 %v2134, %v2150
  %v2153 = vld [vmem:[%s5] sm:$0xff]
  %v2154 = vld [vmem:[%s5 + $0x8] sm:$0xff]
  %v2155 = vld [vmem:[%s5 + $0x10] sm:$0xff]
  %v2156 = vld [vmem:[%s5 + $0x18] sm:$0xff]
  %v2157 = vld [vmem:[%s6] sm:$0x1]
  %v2159 = vlaneseq
  %v2160 = vshrl.u32 %v2159, 7
  %v2161 = vsub.s32 0, %v2160
  %v2162 = vrot.slane %v2157, %v2161
  %2165 = vrot.lane.b32.xlu0 %v2152, 32
  %v2166 = vpop.permute.xlu0 %2165
  %v2167 = vsel %vm58, %v2166, 0
  %2169 = vmatprep.subr.mxu0 0.0
  %2170 = vmatpush1.msra.mxu0 0.0
  %2171 = vmatprep.subr.mxu0 0.0
  %2172 = vmatpush1.msra.mxu0 0.0
  %2173 = vmatprep.subr.mxu0 0.0
  %2174 = vmatpush1.msra.mxu0 0.0
  %2175 = vmatprep.subr.mxu0 0.0
  %2176 = vmatpush1.msra.mxu0 0.0
  %2177 = vmatprep.subr.mxu0 0.0
  %2178 = vmatpush1.msra.mxu0 0.0
  %2179 = vmatprep.subr.mxu0 0.0
  %2180 = vmatpush1.msra.mxu0 0.0
  %2181 = vmatprep.subr.mxu0 0.0
  %2182 = vmatpush1.msra.mxu0 0.0
  %2183 = vmatprep.subr.mxu0 0.0
  %2184 = vmatpush1.msra.mxu0 0.0
  %2185 = vmatprep.subr.mxu0 0.0
  %2186 = vmatpush1.msra.mxu0 0.0
  %2187 = vmatprep.subr.mxu0 0.0
  %2188 = vmatpush1.msra.mxu0 0.0
  %2189 = vmatprep.subr.mxu0 0.0
  %2190 = vmatpush1.msra.mxu0 0.0
  %2191 = vmatprep.subr.mxu0 0.0
  %2192 = vmatpush1.msra.mxu0 0.0
  %2193 = vmatprep.subr.mxu0 0.0
  %2194 = vmatpush1.msra.mxu0 %v2156
  %2195 = vmatprep.subr.mxu0 0.0
  %2196 = vmatpush1.msra.mxu0 %v2155
  %2197 = vmatprep.subr.mxu0 0.0
  %2198 = vmatpush1.msra.mxu0 %v2154
  %2199 = vmatprep.subr.mxu0 0.0
  %2200 = vmatpush1.msra.mxu0 %v2153
  %2201 = vmatprep.subr.mxu0 0.0
  %2202 = vmatpush2.msra.mxu0 0.0
  %2203 = vmatprep.subr.mxu0 0.0
  %2204 = vmatpush2.msra.mxu0 0.0
  %2205 = vmatprep.subr.mxu0 0.0
  %2206 = vmatpush2.msra.mxu0 0.0
  %2207 = vmatprep.subr.mxu0 0.0
  %2208 = vmatpush2.msra.mxu0 0.0
  %2209 = vmatprep.subr.mxu0 0.0
  %2210 = vmatpush2.msra.mxu0 0.0
  %2211 = vmatprep.subr.mxu0 0.0
  %2212 = vmatpush2.msra.mxu0 0.0
  %2213 = vmatprep.subr.mxu0 0.0
  %2214 = vmatpush2.msra.mxu0 0.0
  %2215 = vmatprep.subr.mxu0 0.0
  %2216 = vmatpush2.msra.mxu0 0.0
  %2217 = vmatprep.subr.mxu0 0.0
  %2218 = vmatpush2.msra.mxu0 0.0
  %2219 = vmatprep.subr.mxu0 0.0
  %2220 = vmatpush2.msra.mxu0 0.0
  %2221 = vmatprep.subr.mxu0 0.0
  %2222 = vmatpush2.msra.mxu0 0.0
  %2223 = vmatprep.subr.mxu0 0.0
  %2224 = vmatpush2.msra.mxu0 0.0
  %2225 = vmatprep.subr.mxu0 0.0
  %2226 = vmatpush2.msra.mxu0 0.0
  %2227 = vmatprep.subr.mxu0 0.0
  %2228 = vmatpush2.msra.mxu0 0.0
  %2229 = vmatprep.subr.mxu0 0.0
  %2230 = vmatpush2.msra.mxu0 0.0
  %2231 = vmatprep.subr.mxu0 0.0
  %2232 = vmatpush2.msra.mxu0 0.0
  %2233 = vmatprep.mubr.f32.mxu0 0.0
  %2234 = vmatmul.mubr.f32.gmra.mxu0 %v259
  %v2235 = vpop.f32.mrf.mxu0
  %v2236 = vadd.f32 %v2162, %v2235
  %v2237 = vpop.f32.mrf.mxu0
  %2238 = vmatprep.mubr.f32.mxu0 0.0
  %2239 = vmatmul.mubr.f32.gmra.mxu0 %v530
  %v2240 = vpop.f32.mrf.mxu0
  %v2241 = vadd.f32 %v2162, %v2240
  %v2242 = vpop.f32.mrf.mxu0
  %2243 = vmatprep.mubr.f32.mxu0 0.0
  %2244 = vmatmul.mubr.f32.gmra.mxu0 %v801
  %v2245 = vpop.f32.mrf.mxu0
  %v2246 = vadd.f32 %v2162, %v2245
  %v2247 = vpop.f32.mrf.mxu0
  %2248 = vmatprep.mubr.f32.mxu0 0.0
  %2249 = vmatmul.mubr.f32.gmra.mxu0 %v1072
  %v2250 = vpop.f32.mrf.mxu0
  %v2251 = vadd.f32 %v2162, %v2250
  %v2252 = vpop.f32.mrf.mxu0
  %2253 = vmatprep.mubr.f32.mxu0 0.0
  %2254 = vmatmul.mubr.f32.gmra.mxu0 %v1343
  %v2255 = vpop.f32.mrf.mxu0
  %v2256 = vadd.f32 %v2162, %v2255
  %v2257 = vpop.f32.mrf.mxu0
  %2258 = vmatprep.mubr.f32.mxu0 0.0
  %2259 = vmatmul.mubr.f32.gmra.mxu0 %v1614
  %v2260 = vpop.f32.mrf.mxu0
  %v2261 = vadd.f32 %v2162, %v2260
  %v2262 = vpop.f32.mrf.mxu0
  %2263 = vmatprep.mubr.f32.mxu0 0.0
  %2264 = vmatmul.mubr.f32.gmra.mxu0 %v1885
  %v2265 = vpop.f32.mrf.mxu0
  %v2266 = vadd.f32 %v2162, %v2265
  %v2267 = vpop.f32.mrf.mxu0
  %2268 = vmatprep.mubr.f32.mxu0 0.0
  %2269 = vmatmul.mubr.f32.gmra.mxu0 %v2167
  %v2270 = vpop.f32.mrf.mxu0
  %v2271 = vadd.f32 %v2162, %v2270
  %v2272 = vpop.f32.mrf.mxu0
  %2273 = vdwg.mxu0
  %v2274 = vld [vmem:[%s7] sm:$0x1]
  %v2275 = vld [vmem:[%s7 + $0x1] sm:$0x1]
  %v2276 = vld [vmem:[%s7 + $0x2] sm:$0x1]
  %v2277 = vld [vmem:[%s7 + $0x3] sm:$0x1]
  %v2278 = vld [vmem:[%s7 + $0x4] sm:$0x1]
  %v2279 = vld [vmem:[%s7 + $0x5] sm:$0x1]
  %v2280 = vld [vmem:[%s7 + $0x6] sm:$0x1]
  %v2281 = vld [vmem:[%s7 + $0x7] sm:$0x1]
  %v2290 = vlaneseq
  %v2291 = vshrl.u32 %v2290, 7
  %v2292 = vsub.s32 0, %v2291
  %v2293 = vrot.slane %v2274, %v2292
  %v2294 = vlaneseq
  %v2295 = vshrl.u32 %v2294, 7
  %v2296 = vsub.s32 0, %v2295
  %v2297 = vrot.slane %v2275, %v2296
  %v2298 = vlaneseq
  %v2299 = vshrl.u32 %v2298, 7
  %v2300 = vsub.s32 0, %v2299
  %v2301 = vrot.slane %v2276, %v2300
  %v2302 = vlaneseq
  %v2303 = vshrl.u32 %v2302, 7
  %v2304 = vsub.s32 0, %v2303
  %v2305 = vrot.slane %v2277, %v2304
  %v2306 = vlaneseq
  %v2307 = vshrl.u32 %v2306, 7
  %v2308 = vsub.s32 0, %v2307
  %v2309 = vrot.slane %v2278, %v2308
  %v2310 = vlaneseq
  %v2311 = vshrl.u32 %v2310, 7
  %v2312 = vsub.s32 0, %v2311
  %v2313 = vrot.slane %v2279, %v2312
  %v2314 = vlaneseq
  %v2315 = vshrl.u32 %v2314, 7
  %v2316 = vsub.s32 0, %v2315
  %v2317 = vrot.slane %v2280, %v2316
  %v2318 = vlaneseq
  %v2319 = vshrl.u32 %v2318, 7
  %v2320 = vsub.s32 0, %v2319
  %v2321 = vrot.slane %v2281, %v2320
  %v2330 = vmul.f32 %v2236, %v2293
  %v2331 = vmul.f32 %v2241, %v2297
  %v2332 = vmul.f32 %v2246, %v2301
  %v2333 = vmul.f32 %v2251, %v2305
  %v2334 = vmul.f32 %v2256, %v2309
  %v2335 = vmul.f32 %v2261, %v2313
  %v2336 = vmul.f32 %v2266, %v2317
  %v2337 = vmul.f32 %v2271, %v2321
  %v2338 = vld [vmem:[%s8] sm:$0x1]
  %v2339 = vld [vmem:[%s8 + $0x1] sm:$0x1]
  %v2340 = vld [vmem:[%s8 + $0x2] sm:$0x1]
  %v2341 = vld [vmem:[%s8 + $0x3] sm:$0x1]
  %v2342 = vld [vmem:[%s8 + $0x4] sm:$0x1]
  %v2343 = vld [vmem:[%s8 + $0x5] sm:$0x1]
  %v2344 = vld [vmem:[%s8 + $0x6] sm:$0x1]
  %v2345 = vld [vmem:[%s8 + $0x7] sm:$0x1]
  %v2354 = vlaneseq
  %v2355 = vshrl.u32 %v2354, 7
  %v2356 = vsub.s32 0, %v2355
  %v2357 = vrot.slane %v2338, %v2356
  %v2358 = vlaneseq
  %v2359 = vshrl.u32 %v2358, 7
  %v2360 = vsub.s32 0, %v2359
  %v2361 = vrot.slane %v2339, %v2360
  %v2362 = vlaneseq
  %v2363 = vshrl.u32 %v2362, 7
  %v2364 = vsub.s32 0, %v2363
  %v2365 = vrot.slane %v2340, %v2364
  %v2366 = vlaneseq
  %v2367 = vshrl.u32 %v2366, 7
  %v2368 = vsub.s32 0, %v2367
  %v2369 = vrot.slane %v2341, %v2368
  %v2370 = vlaneseq
  %v2371 = vshrl.u32 %v2370, 7
  %v2372 = vsub.s32 0, %v2371
  %v2373 = vrot.slane %v2342, %v2372
  %v2374 = vlaneseq
  %v2375 = vshrl.u32 %v2374, 7
  %v2376 = vsub.s32 0, %v2375
  %v2377 = vrot.slane %v2343, %v2376
  %v2378 = vlaneseq
  %v2379 = vshrl.u32 %v2378, 7
  %v2380 = vsub.s32 0, %v2379
  %v2381 = vrot.slane %v2344, %v2380
  %v2382 = vlaneseq
  %v2383 = vshrl.u32 %v2382, 7
  %v2384 = vsub.s32 0, %v2383
  %v2385 = vrot.slane %v2345, %v2384
  %v2394 = vadd.f32 %v2330, %v2357
  %v2395 = vadd.f32 %v2331, %v2361
  %v2396 = vadd.f32 %v2332, %v2365
  %v2397 = vadd.f32 %v2333, %v2369
  %v2398 = vadd.f32 %v2334, %v2373
  %v2399 = vadd.f32 %v2335, %v2377
  %v2400 = vadd.f32 %v2336, %v2381
  %v2401 = vadd.f32 %v2337, %v2385
  %v2402 = vmax.f32 %v2394, 0.0
  %v2403 = vmax.f32 %v2395, 0.0
  %v2404 = vmax.f32 %v2396, 0.0
  %v2405 = vmax.f32 %v2397, 0.0
  %v2406 = vmax.f32 %v2398, 0.0
  %v2407 = vmax.f32 %v2399, 0.0
  %v2408 = vmax.f32 %v2400, 0.0
  %v2409 = vmax.f32 %v2401, 0.0
  %v2410 = vld [vmem:[%s9] sm:$0xff]
  %v2411 = vld [vmem:[%s9 + $0x8] sm:$0xff]
  %v2412 = vld [vmem:[%s9 + $0x10] sm:$0xff]
  %v2413 = vld [vmem:[%s9 + $0x18] sm:$0xff]
  %v2414 = vld [vmem:[%s9 + $0x20] sm:$0xff]
  %v2415 = vld [vmem:[%s9 + $0x28] sm:$0xff]
  %v2416 = vld [vmem:[%s9 + $0x30] sm:$0xff]
  %v2417 = vld [vmem:[%s9 + $0x38] sm:$0xff]
  %v2418 = vld [vmem:[%s9 + $0x40] sm:$0xff]
  %v2419 = vld [vmem:[%s9 + $0x48] sm:$0xff]
  %v2420 = vld [vmem:[%s9 + $0x50] sm:$0xff]
  %v2421 = vld [vmem:[%s9 + $0x58] sm:$0xff]
  %v2422 = vld [vmem:[%s9 + $0x60] sm:$0xff]
  %v2423 = vld [vmem:[%s9 + $0x68] sm:$0xff]
  %v2424 = vld [vmem:[%s9 + $0x70] sm:$0xff]
  %v2425 = vld [vmem:[%s9 + $0x78] sm:$0xff]
  %v2426 = vld [vmem:[%s10] sm:$0x1]
  %v2428 = vlaneseq
  %v2429 = vshrl.u32 %v2428, 7
  %v2430 = vsub.s32 0, %v2429
  %v2431 = vrot.slane %v2426, %v2430
  %2433 = vmatprep.subr.mxu0 0.0
  %2434 = vmatpush1.msra.mxu0 %v2425
  %2435 = vmatprep.subr.mxu0 0.0
  %2436 = vmatpush1.msra.mxu0 %v2424
  %2437 = vmatprep.subr.mxu0 0.0
  %2438 = vmatpush1.msra.mxu0 %v2423
  %2439 = vmatprep.subr.mxu0 0.0
  %2440 = vmatpush1.msra.mxu0 %v2422
  %2441 = vmatprep.subr.mxu0 0.0
  %2442 = vmatpush1.msra.mxu0 %v2421
  %2443 = vmatprep.subr.mxu0 0.0
  %2444 = vmatpush1.msra.mxu0 %v2420
  %2445 = vmatprep.subr.mxu0 0.0
  %2446 = vmatpush1.msra.mxu0 %v2419
  %2447 = vmatprep.subr.mxu0 0.0
  %2448 = vmatpush1.msra.mxu0 %v2418
  %2449 = vmatprep.subr.mxu0 0.0
  %2450 = vmatpush1.msra.mxu0 %v2417
  %2451 = vmatprep.subr.mxu0 0.0
  %2452 = vmatpush1.msra.mxu0 %v2416
  %2453 = vmatprep.subr.mxu0 0.0
  %2454 = vmatpush1.msra.mxu0 %v2415
  %2455 = vmatprep.subr.mxu0 0.0
  %2456 = vmatpush1.msra.mxu0 %v2414
  %2457 = vmatprep.subr.mxu0 0.0
  %2458 = vmatpush1.msra.mxu0 %v2413
  %2459 = vmatprep.subr.mxu0 0.0
  %2460 = vmatpush1.msra.mxu0 %v2412
  %2461 = vmatprep.subr.mxu0 0.0
  %2462 = vmatpush1.msra.mxu0 %v2411
  %2463 = vmatprep.subr.mxu0 0.0
  %2464 = vmatpush1.msra.mxu0 %v2410
  %2465 = vmatprep.subr.mxu0 0.0
  %2466 = vmatpush2.msra.mxu0 0.0
  %2467 = vmatprep.subr.mxu0 0.0
  %2468 = vmatpush2.msra.mxu0 0.0
  %2469 = vmatprep.subr.mxu0 0.0
  %2470 = vmatpush2.msra.mxu0 0.0
  %2471 = vmatprep.subr.mxu0 0.0
  %2472 = vmatpush2.msra.mxu0 0.0
  %2473 = vmatprep.subr.mxu0 0.0
  %2474 = vmatpush2.msra.mxu0 0.0
  %2475 = vmatprep.subr.mxu0 0.0
  %2476 = vmatpush2.msra.mxu0 0.0
  %2477 = vmatprep.subr.mxu0 0.0
  %2478 = vmatpush2.msra.mxu0 0.0
  %2479 = vmatprep.subr.mxu0 0.0
  %2480 = vmatpush2.msra.mxu0 0.0
  %2481 = vmatprep.subr.mxu0 0.0
  %2482 = vmatpush2.msra.mxu0 0.0
  %2483 = vmatprep.subr.mxu0 0.0
  %2484 = vmatpush2.msra.mxu0 0.0
  %2485 = vmatprep.subr.mxu0 0.0
  %2486 = vmatpush2.msra.mxu0 0.0
  %2487 = vmatprep.subr.mxu0 0.0
  %2488 = vmatpush2.msra.mxu0 0.0
  %2489 = vmatprep.subr.mxu0 0.0
  %2490 = vmatpush2.msra.mxu0 0.0
  %2491 = vmatprep.subr.mxu0 0.0
  %2492 = vmatpush2.msra.mxu0 0.0
  %2493 = vmatprep.subr.mxu0 0.0
  %2494 = vmatpush2.msra.mxu0 0.0
  %2495 = vmatprep.subr.mxu0 0.0
  %2496 = vmatpush2.msra.mxu0 0.0
  %2497 = vmatprep.mubr.f32.mxu0 0.0
  %2498 = vmatmul.mubr.f32.gmra.mxu0 %v2402
  %v2499 = vpop.f32.mrf.mxu0
  %v2500 = vadd.f32 %v2431, %v2499
  %v2501 = vpop.f32.mrf.mxu0
  %2502 = vmatprep.mubr.f32.mxu0 0.0
  %2503 = vmatmul.mubr.f32.gmra.mxu0 %v2403
  %v2504 = vpop.f32.mrf.mxu0
  %v2505 = vadd.f32 %v2431, %v2504
  %v2506 = vpop.f32.mrf.mxu0
  %2507 = vmatprep.mubr.f32.mxu0 0.0
  %2508 = vmatmul.mubr.f32.gmra.mxu0 %v2404
  %v2509 = vpop.f32.mrf.mxu0
  %v2510 = vadd.f32 %v2431, %v2509
  %v2511 = vpop.f32.mrf.mxu0
  %2512 = vmatprep.mubr.f32.mxu0 0.0
  %2513 = vmatmul.mubr.f32.gmra.mxu0 %v2405
  %v2514 = vpop.f32.mrf.mxu0
  %v2515 = vadd.f32 %v2431, %v2514
  %v2516 = vpop.f32.mrf.mxu0
  %2517 = vmatprep.mubr.f32.mxu0 0.0
  %2518 = vmatmul.mubr.f32.gmra.mxu0 %v2406
  %v2519 = vpop.f32.mrf.mxu0
  %v2520 = vadd.f32 %v2431, %v2519
  %v2521 = vpop.f32.mrf.mxu0
  %2522 = vmatprep.mubr.f32.mxu0 0.0
  %2523 = vmatmul.mubr.f32.gmra.mxu0 %v2407
  %v2524 = vpop.f32.mrf.mxu0
  %v2525 = vadd.f32 %v2431, %v2524
  %v2526 = vpop.f32.mrf.mxu0
  %2527 = vmatprep.mubr.f32.mxu0 0.0
  %2528 = vmatmul.mubr.f32.gmra.mxu0 %v2408
  %v2529 = vpop.f32.mrf.mxu0
  %v2530 = vadd.f32 %v2431, %v2529
  %v2531 = vpop.f32.mrf.mxu0
  %2532 = vmatprep.mubr.f32.mxu0 0.0
  %2533 = vmatmul.mubr.f32.gmra.mxu0 %v2409
  %v2534 = vpop.f32.mrf.mxu0
  %v2535 = vadd.f32 %v2431, %v2534
  %v2536 = vpop.f32.mrf.mxu0
  %2537 = vdwg.mxu0
  %2538 = vmax.xlane.f32.xlu0 %v2500
  %v2539 = vpop.xlane.xlu0 %2538
  %2540 = vmax.xlane.f32.xlu0 %v2505
  %v2541 = vpop.xlane.xlu0 %2540
  %2542 = vmax.xlane.f32.xlu0 %v2510
  %v2543 = vpop.xlane.xlu0 %2542
  %2544 = vmax.xlane.f32.xlu0 %v2515
  %v2545 = vpop.xlane.xlu0 %2544
  %2546 = vmax.xlane.f32.xlu0 %v2520
  %v2547 = vpop.xlane.xlu0 %2546
  %2548 = vmax.xlane.f32.xlu0 %v2525
  %v2549 = vpop.xlane.xlu0 %2548
  %2550 = vmax.xlane.f32.xlu0 %v2530
  %v2551 = vpop.xlane.xlu0 %2550
  %2552 = vmax.xlane.f32.xlu0 %v2535
  %v2553 = vpop.xlane.xlu0 %2552
  %v2554 = vsub.f32 %v2500, %v2539
  %v2555 = vsub.f32 %v2505, %v2541
  %v2556 = vsub.f32 %v2510, %v2543
  %v2557 = vsub.f32 %v2515, %v2545
  %v2558 = vsub.f32 %v2520, %v2547
  %v2559 = vsub.f32 %v2525, %v2549
  %v2560 = vsub.f32 %v2530, %v2551
  %v2561 = vsub.f32 %v2535, %v2553
  %v2562 = vmul.f32 %v2554, 1.442695
  %v2563 = vpow.pop %v2562
  %v2564 = vmul.f32 %v2555, 1.442695
  %v2565 = vpow.pop %v2564
  %v2566 = vmul.f32 %v2556, 1.442695
  %v2567 = vpow.pop %v2566
  %v2568 = vmul.f32 %v2557, 1.442695
  %v2569 = vpow.pop %v2568
  %v2570 = vmul.f32 %v2558, 1.442695
  %v2571 = vpow.pop %v2570
  %v2572 = vmul.f32 %v2559, 1.442695
  %v2573 = vpow.pop %v2572
  %v2574 = vmul.f32 %v2560, 1.442695
  %v2575 = vpow.pop %v2574
  %v2576 = vmul.f32 %v2561, 1.442695
  %v2577 = vpow.pop %v2576
  %2578 = vadd.xlane.f32.xlu0 %v2563
  %v2579 = vpop.xlane.xlu0 %2578
  %2580 = vadd.xlane.f32.xlu0 %v2565
  %v2581 = vpop.xlane.xlu0 %2580
  %2582 = vadd.xlane.f32.xlu0 %v2567
  %v2583 = vpop.xlane.xlu0 %2582
  %2584 = vadd.xlane.f32.xlu0 %v2569
  %v2585 = vpop.xlane.xlu0 %2584
  %2586 = vadd.xlane.f32.xlu0 %v2571
  %v2587 = vpop.xlane.xlu0 %2586
  %2588 = vadd.xlane.f32.xlu0 %v2573
  %v2589 = vpop.xlane.xlu0 %2588
  %2590 = vadd.xlane.f32.xlu0 %v2575
  %v2591 = vpop.xlane.xlu0 %2590
  %2592 = vadd.xlane.f32.xlu0 %v2577
  %v2593 = vpop.xlane.xlu0 %2592
  %v2594 = vlog2.pop %v2579
  %v2595 = vmul.f32 %v2594, 0.6931472
  %v2596 = vlog2.pop %v2581
  %v2597 = vmul.f32 %v2596, 0.6931472
  %v2598 = vlog2.pop %v2583
  %v2599 = vmul.f32 %v2598, 0.6931472
  %v2600 = vlog2.pop %v2585
  %v2601 = vmul.f32 %v2600, 0.6931472
  %v2602 = vlog2.pop %v2587
  %v2603 = vmul.f32 %v2602, 0.6931472
  %v2604 = vlog2.pop %v2589
  %v2605 = vmul.f32 %v2604, 0.6931472
  %v2606 = vlog2.pop %v2591
  %v2607 = vmul.f32 %v2606, 0.6931472
  %v2608 = vlog2.pop %v2593
  %v2609 = vmul.f32 %v2608, 0.6931472
  %v2610 = vsub.f32 %v2554, %v2595
  %v2611 = vsub.f32 %v2555, %v2597
  %v2612 = vsub.f32 %v2556, %v2599
  %v2613 = vsub.f32 %v2557, %v2601
  %v2614 = vsub.f32 %v2558, %v2603
  %v2615 = vsub.f32 %v2559, %v2605
  %v2616 = vsub.f32 %v2560, %v2607
  %v2617 = vsub.f32 %v2561, %v2609
  %2618 = vst [vmem:[%s11] sm:$0xff] %v2610
  %2619 = vst [vmem:[%s11 + $0x8] sm:$0xff] %v2611
  %2620 = vst [vmem:[%s11 + $0x10] sm:$0xff] %v2612
  %2621 = vst [vmem:[%s11 + $0x18] sm:$0xff] %v2613
  %2622 = vst [vmem:[%s11 + $0x20] sm:$0xff] %v2614
  %2623 = vst [vmem:[%s11 + $0x28] sm:$0xff] %v2615
  %2624 = vst [vmem:[%s11 + $0x30] sm:$0xff] %v2616
  %2625 = vst [vmem:[%s11 + $0x38] sm:$0xff] %v2617
  // Predicated region
  $region46: #{nocond_lstm_forward.1} parent=0 // pred_check
    _
  $region47: #{nocond_lstm_forward.1} parent=0 // pred_check_branch
    %2627 = sbr.rel (0) target = $region49
  $region48: #{nocond_lstm_forward.1} parent=0 // pred_region
    _
  $region49: #{nocond_lstm_forward.1} parent=0 // pred_fallthru
    _
  // Predicated region
  $region50: #{nocond_lstm_forward.1} parent=0 // pred_check
    _
  $region51: #{nocond_lstm_forward.1} parent=0 // pred_check_branch
    %2629 = sbr.rel (0) target = $region53
  $region52: #{nocond_lstm_forward.1} parent=0 // pred_region
    _
  $region53: #{nocond_lstm_forward.1} parent=0 // pred_fallthru
    _

</llo_original>
